<compile_context>
chip_gen: v7x
topology: tpu7x:2x2x1
jax: 0.10.0
libtpu: 0.0.40
codegen_flags: <defaults>
</compile_context>

<pallas_src>
import jax
import jax.numpy as jnp
from jax import lax
from jax.experimental import pallas as pl
from jax.experimental.pallas import tpu as pltpu

_EPS = 1e-5                 # PyTorch nn.LayerNorm default eps
_NB = 5                     # number of sensory branches
_HI = lax.Precision.HIGHEST


def _round_up(n: int, m: int) -> int:
    return (n + m - 1) // m * m


# --------------------------------------------------------------------------
# Fused kernel body: one (TM, Din) row tile per grid step.
# --------------------------------------------------------------------------
def _sensory_kernel(x_ref, w_ref, b_ref, r_ref, e_ref, sg_ref, bs_ref, o_ref):
    """
    x_ref  : (TM, Din)          input row tile (native dtype; cast here)
    w_ref  : (Din, 5*Dh) bf16   packed, sensory-scaled branch weights
    b_ref  : (1, 5*Dh)   f32    packed branch biases
    r_ref  : (5*Dh, 5)   f32    per-branch averaging (reduce) matrix
    e_ref  : (5, 5*Dh)   f32    per-branch broadcast (expand) matrix
    sg_ref : (5*Dh, Dh)  f32    branch-sum matrix with LayerNorm gamma folded in
    bs_ref : (1, Dh)     f32    sum of LayerNorm betas over branches
    o_ref  : (TM, Dh)    f32
    """
    # All five branch projections in one lane-dense bf16 MXU pass.
    x = x_ref[...].astype(jnp.bfloat16)
    h = jnp.dot(x, w_ref[...], preferred_element_type=jnp.float32) + b_ref[...]
    h = jnp.maximum(h, 0.0)                                           # ReLU

    # Per-branch LayerNorm statistics via skinny reduce/expand matmuls.
    mu5 = jnp.dot(h, r_ref[...], precision=_HI, preferred_element_type=jnp.float32)
    mu = jnp.dot(mu5, e_ref[...], precision=_HI, preferred_element_type=jnp.float32)
    d = h - mu
    var5 = jnp.dot(d * d, r_ref[...], precision=_HI, preferred_element_type=jnp.float32)
    inv5 = lax.rsqrt(var5 + _EPS)                                     # (TM, 5) -> cheap EUP
    inv = jnp.dot(inv5, e_ref[...], precision=_HI, preferred_element_type=jnp.float32)
    ln = d * inv

    # Sum over the 5 branches with gamma folded in; add the summed beta.
    # Note: out last dim is Dh=32 (<128 lanes) -> masked stores; negligible at
    # this size versus DMA/matmul, so we keep the natural layout.
    o_ref[...] = (jnp.dot(ln, sg_ref[...], precision=_HI,
                          preferred_element_type=jnp.float32) + bs_ref[...])


# --------------------------------------------------------------------------
# One-time parameter packing (init-time, not per forward call)
# --------------------------------------------------------------------------
def pack_sensory_params(params, mxu_dtype=jnp.bfloat16):
    sw, w, b, g, beta = (params[k] for k in ("sw", "w", "b", "ln_g", "ln_b"))
    nb, din, dh = w.shape
    # Fold sensory scaling into the weight: (x*sw_i) @ W_i == x @ (sw_i[:,None]*W_i)
    w_eff = sw[:, :, None] * w                                           # (5, Din, Dh)
    w_cat = jnp.transpose(w_eff, (1, 0, 2)).reshape(din, nb * dh).astype(mxu_dtype)
    b_cat = b.reshape(1, nb * dh).astype(jnp.float32)
    # Skinny per-branch reduce / expand matrices (replace dense (5Dh)^2 matrix).
    eye_nb = jnp.eye(nb, dtype=jnp.float32)
    r_mat = jnp.kron(eye_nb, jnp.full((dh, 1), 1.0 / dh, jnp.float32))   # (5*Dh, 5)
    e_mat = jnp.kron(eye_nb, jnp.ones((1, dh), jnp.float32))             # (5, 5*Dh)
    # Fold gamma into the branch-sum matrix; pre-sum beta.
    sum_mat = jnp.tile(jnp.eye(dh, dtype=jnp.float32), (nb, 1))          # (5*Dh, Dh)
    sum_mat_g = g.reshape(nb * dh, 1).astype(jnp.float32) * sum_mat
    beta_sum = beta.sum(axis=0).reshape(1, dh).astype(jnp.float32)
    return dict(w_cat=w_cat, b_cat=b_cat, r_mat=r_mat, e_mat=e_mat,
                sum_mat_g=sum_mat_g, beta_sum=beta_sum, dh=dh)


# --------------------------------------------------------------------------
# Wrapper: tiled pallas_call over M with VMEM-resident constants.
# --------------------------------------------------------------------------
def sensory_processor(x, packed, tm_max=1024):
    """x: (..., Din) -> (..., Dh).

    tm_max: row-tile size; 512-2048 all fit the default scoped VMEM budget on
    v5e (16 MiB) / v6e (32 MiB) / v7x (32 MiB of 64 MiB) — ~3-6 MiB live at
    TM=1024-2048 with double-buffered x/out tiles plus (TM, 5*Dh) temporaries.
    """
    lead = x.shape[:-1]
    din = x.shape[-1]
    dh = packed["dh"]
    nbw = packed["w_cat"].shape[1]                    # 5*Dh

    x2d = x.reshape(-1, din)                          # NO host-side dtype cast
    m = x2d.shape[0]
    tm = min(tm_max, _round_up(m, 8))
    m_pad = _round_up(m, tm)
    if m_pad != m:
        x2d = jnp.pad(x2d, ((0, m_pad - m), (0, 0)))
    grid = (m_pad // tm,)

    out = pl.pallas_call(
        _sensory_kernel,
        out_shape=jax.ShapeDtypeStruct((m_pad, dh), jnp.float32),
        grid_spec=pltpu.PrefetchScalarGridSpec(
            num_scalar_prefetch=0,
            grid=grid,
            in_specs=[
                pl.BlockSpec((tm, din), lambda i: (i, 0)),        # x row tile
                pl.BlockSpec((din, nbw), lambda i: (0, 0)),       # w_cat   (resident)
                pl.BlockSpec((1, nbw), lambda i: (0, 0)),         # b_cat   (resident)
                pl.BlockSpec((nbw, _NB), lambda i: (0, 0)),       # r_mat   (resident)
                pl.BlockSpec((_NB, nbw), lambda i: (0, 0)),       # e_mat   (resident)
                pl.BlockSpec((nbw, dh), lambda i: (0, 0)),        # sum_mat_g (resident)
                pl.BlockSpec((1, dh), lambda i: (0, 0)),          # beta_sum (resident)
            ],
            out_specs=pl.BlockSpec((tm, dh), lambda i: (i, 0)),
        ),
        compiler_params=pltpu.CompilerParams(
            dimension_semantics=("parallel",),        # megacore sharding on v7x
        ),
    )(x2d, packed["w_cat"], packed["b_cat"], packed["r_mat"],
      packed["e_mat"], packed["sum_mat_g"], packed["beta_sum"])

    if m_pad != m:
        out = out[:m]
    return out.reshape(*lead, dh)


# --------------------------------------------------------------------------
# Deterministic synthetic parameters + pure-JAX references for verification
# --------------------------------------------------------------------------
def init_sensory_params(key, din, dh):
    k_sw, k_w, k_b = jax.random.split(key, 3)
    bound = 1.0 / float(din) ** 0.5          # PyTorch nn.Linear default init range
    return {
        "sw": jax.random.normal(k_sw, (_NB, din), jnp.float32),          # torch.randn
        "w": jax.random.uniform(k_w, (_NB, din, dh), jnp.float32, -bound, bound),
        "b": jax.random.uniform(k_b, (_NB, dh), jnp.float32, -bound, bound),
        "ln_g": jnp.ones((_NB, dh), jnp.float32),
        "ln_b": jnp.zeros((_NB, dh), jnp.float32),
    }


def sensory_reference(x, params, proj_dtype=jnp.float32):
    """Straight transcription of the PyTorch forward (per-branch loop).

    proj_dtype=bfloat16 mirrors the kernel's bf16 MXU projection exactly
    (scale folded into the weight, f32 accumulation); float32 uses HIGHEST
    precision for a true-f32 baseline.
    """
    lead = x.shape[:-1]
    din = x.shape[-1]
    dh = params["w"].shape[2]
    x2d = x.reshape(-1, din)
    prec = _HI if proj_dtype == jnp.float32 else None
    out = jnp.zeros((x2d.shape[0], dh), jnp.float32)
    for i in range(_NB):
        w_eff = (params["sw"][i][:, None] * params["w"][i]).astype(proj_dtype)
        h = jnp.dot(x2d.astype(proj_dtype), w_eff, precision=prec,
                    preferred_element_type=jnp.float32) + params["b"][i]
        h = jnp.maximum(h, 0.0)
        mu = jnp.mean(h, axis=-1, keepdims=True)
        var = jnp.mean((h - mu) ** 2, axis=-1, keepdims=True)
        ln = (h - mu) * lax.rsqrt(var + _EPS) * params["ln_g"][i] + params["ln_b"][i]
        out = out + ln
    return out.reshape(*lead, dh)


# --------------------------------------------------------------------------
if __name__ == "__main__":
    S, B, DIN, DH = 8, 2, 32, 32          # seq, batch, input_dim, hidden_dim

    key = jax.random.PRNGKey(0)
    kx, kp = jax.random.split(key)
    x = jax.random.normal(kx, (S, B, DIN), jnp.float32)

    params = init_sensory_params(kp, DIN, DH)
    packed = pack_sensory_params(params)          # one-time packing

    out = jax.block_until_ready(sensory_processor(x, packed))
    assert out.shape == (S, B, DH)

    # Tight check vs. a reference that matches the kernel's bf16 projection.
    ref_bf16 = sensory_reference(x, params, proj_dtype=jnp.bfloat16)
    err_bf16 = float(jnp.max(jnp.abs(out - ref_bf16)))
    assert err_bf16 < 2e-3, f"mismatch vs bf16-projection reference: {err_bf16}"

    # Sanity check vs. a full-f32 reference (difference dominated by bf16 MXU rounding).
    ref_f32 = sensory_reference(x, params, proj_dtype=jnp.float32)
    err_f32 = float(jnp.max(jnp.abs(out - ref_f32)))
    assert err_f32 < 1e-1, f"mismatch vs f32 reference: {err_f32}"

    print("KERNEL_OK")
</pallas_src>

<mosaic_0001>
module attributes {stable_mosaic.version = 11 : i64} {
  func.func @_sensory_kernel(%arg0: i32, %arg1: memref<16x32xf32, #tpu.memory_space<vmem>>, %arg2: memref<32x160xbf16, #tpu.memory_space<vmem>>, %arg3: memref<1x160xf32, #tpu.memory_space<vmem>>, %arg4: memref<160x5xf32, #tpu.memory_space<vmem>>, %arg5: memref<5x160xf32, #tpu.memory_space<vmem>>, %arg6: memref<160x32xf32, #tpu.memory_space<vmem>>, %arg7: memref<1x32xf32, #tpu.memory_space<vmem>>, %arg8: memref<16x32xf32, #tpu.memory_space<vmem>>) attributes {dimension_semantics = [#tpu.dimension_semantics<parallel>], iteration_bounds = array<i64: 1>, scalar_prefetch = 0 : i64, scratch_operands = 0 : i64, tpu.core_type = #tpu.core_type<tc>, window_params = [{transform_indices = @transform_0, window_bounds = array<i64: 16, 32>}, {pipeline_mode = #tpu.pipeline_mode<synchronous>, transform_indices = @transform_1, window_bounds = array<i64: 32, 160>}, {pipeline_mode = #tpu.pipeline_mode<synchronous>, transform_indices = @transform_2, window_bounds = array<i64: 1, 160>}, {pipeline_mode = #tpu.pipeline_mode<synchronous>, transform_indices = @transform_3, window_bounds = array<i64: 160, 5>}, {pipeline_mode = #tpu.pipeline_mode<synchronous>, transform_indices = @transform_4, window_bounds = array<i64: 5, 160>}, {pipeline_mode = #tpu.pipeline_mode<synchronous>, transform_indices = @transform_5, window_bounds = array<i64: 160, 32>}, {pipeline_mode = #tpu.pipeline_mode<synchronous>, transform_indices = @transform_6, window_bounds = array<i64: 1, 32>}, {transform_indices = @transform_7, window_bounds = array<i64: 16, 32>}]} {
    %c0 = arith.constant 0 : index
    %c0_0 = arith.constant 0 : index
    %0 = vector.load %arg1[%c0, %c0_0] : memref<16x32xf32, #tpu.memory_space<vmem>>, vector<16x32xf32>
    %1 = arith.truncf %0 : vector<16x32xf32> to vector<16x32xbf16>
    %c0_1 = arith.constant 0 : index
    %c0_2 = arith.constant 0 : index
    %2 = vector.load %arg2[%c0_1, %c0_2] : memref<32x160xbf16, #tpu.memory_space<vmem>>, vector<32x160xbf16>
    %cst = arith.constant dense<0.000000e+00> : vector<16x160xf32>
    %3 = tpu.matmul %1, %2, %cst {dimension_numbers = #tpu.dot_dimension_numbers<[1], [0], [0], [1], [0, 0, 1, 1], [], []>} : vector<16x32xbf16>, vector<32x160xbf16>, vector<16x160xf32> -> vector<16x160xf32>
    %c0_3 = arith.constant 0 : index
    %c0_4 = arith.constant 0 : index
    %4 = vector.load %arg3[%c0_3, %c0_4] : memref<1x160xf32, #tpu.memory_space<vmem>>, vector<1x160xf32>
    %5 = vector.broadcast %4 : vector<1x160xf32> to vector<16x160xf32>
    %6 = arith.addf %3, %5 : vector<16x160xf32>
    %cst_5 = arith.constant 0.000000e+00 : f32
    %7 = vector.broadcast %cst_5 : f32 to vector<16x160xf32>
    %8 = arith.maximumf %6, %7 : vector<16x160xf32>
    %c0_6 = arith.constant 0 : index
    %c0_7 = arith.constant 0 : index
    %9 = vector.load %arg4[%c0_6, %c0_7] : memref<160x5xf32, #tpu.memory_space<vmem>>, vector<160x5xf32>
    %cst_8 = arith.constant dense<0.000000e+00> : vector<16x5xf32>
    %10 = tpu.matmul %8, %9, %cst_8 {dimension_numbers = #tpu.dot_dimension_numbers<[1], [0], [0], [1], [0, 0, 1, 1], [], []>, precision = #tpu.contract_precision<fp32>} : vector<16x160xf32>, vector<160x5xf32>, vector<16x5xf32> -> vector<16x5xf32>
    %c0_9 = arith.constant 0 : index
    %c0_10 = arith.constant 0 : index
    %11 = vector.load %arg5[%c0_9, %c0_10] : memref<5x160xf32, #tpu.memory_space<vmem>>, vector<5x160xf32>
    %cst_11 = arith.constant dense<0.000000e+00> : vector<16x160xf32>
    %12 = tpu.matmul %10, %11, %cst_11 {dimension_numbers = #tpu.dot_dimension_numbers<[1], [0], [0], [1], [0, 0, 1, 1], [], []>, precision = #tpu.contract_precision<fp32>} : vector<16x5xf32>, vector<5x160xf32>, vector<16x160xf32> -> vector<16x160xf32>
    %13 = arith.subf %8, %12 : vector<16x160xf32>
    %14 = arith.mulf %13, %13 : vector<16x160xf32>
    %c0_12 = arith.constant 0 : index
    %c0_13 = arith.constant 0 : index
    %15 = vector.load %arg4[%c0_12, %c0_13] : memref<160x5xf32, #tpu.memory_space<vmem>>, vector<160x5xf32>
    %cst_14 = arith.constant dense<0.000000e+00> : vector<16x5xf32>
    %16 = tpu.matmul %14, %15, %cst_14 {dimension_numbers = #tpu.dot_dimension_numbers<[1], [0], [0], [1], [0, 0, 1, 1], [], []>, precision = #tpu.contract_precision<fp32>} : vector<16x160xf32>, vector<160x5xf32>, vector<16x5xf32> -> vector<16x5xf32>
    %cst_15 = arith.constant 9.99999974E-6 : f32
    %17 = vector.broadcast %cst_15 : f32 to vector<16x5xf32>
    %18 = arith.addf %16, %17 : vector<16x5xf32>
    %19 = math.rsqrt %18 : vector<16x5xf32>
    %c0_16 = arith.constant 0 : index
    %c0_17 = arith.constant 0 : index
    %20 = vector.load %arg5[%c0_16, %c0_17] : memref<5x160xf32, #tpu.memory_space<vmem>>, vector<5x160xf32>
    %cst_18 = arith.constant dense<0.000000e+00> : vector<16x160xf32>
    %21 = tpu.matmul %19, %20, %cst_18 {dimension_numbers = #tpu.dot_dimension_numbers<[1], [0], [0], [1], [0, 0, 1, 1], [], []>, precision = #tpu.contract_precision<fp32>} : vector<16x5xf32>, vector<5x160xf32>, vector<16x160xf32> -> vector<16x160xf32>
    %22 = arith.mulf %13, %21 : vector<16x160xf32>
    %c0_19 = arith.constant 0 : index
    %c0_20 = arith.constant 0 : index
    %23 = vector.load %arg6[%c0_19, %c0_20] : memref<160x32xf32, #tpu.memory_space<vmem>>, vector<160x32xf32>
    %cst_21 = arith.constant dense<0.000000e+00> : vector<16x32xf32>
    %24 = tpu.matmul %22, %23, %cst_21 {dimension_numbers = #tpu.dot_dimension_numbers<[1], [0], [0], [1], [0, 0, 1, 1], [], []>, precision = #tpu.contract_precision<fp32>} : vector<16x160xf32>, vector<160x32xf32>, vector<16x32xf32> -> vector<16x32xf32>
    %c0_22 = arith.constant 0 : index
    %c0_23 = arith.constant 0 : index
    %25 = vector.load %arg7[%c0_22, %c0_23] : memref<1x32xf32, #tpu.memory_space<vmem>>, vector<1x32xf32>
    %26 = vector.broadcast %25 : vector<1x32xf32> to vector<16x32xf32>
    %27 = arith.addf %24, %26 : vector<16x32xf32>
    %c0_24 = arith.constant 0 : index
    %c0_25 = arith.constant 0 : index
    %28 = vector.load %arg8[%c0_24, %c0_25] : memref<16x32xf32, #tpu.memory_space<vmem>>, vector<16x32xf32>
    tpu.vector_store %arg8[%c0_24, %c0_25], %27 {strides = array<i32>} : memref<16x32xf32, #tpu.memory_space<vmem>>, vector<16x32xf32>,
    return
  }
  func.func @transform_0(%arg0: i32) -> (i32, i32) {
    %c0_i32 = arith.constant 0 : i32
    %c0_i32_0 = arith.constant 0 : i32
    return %arg0, %c0_i32 : i32, i32
  }
  func.func @transform_1(%arg0: i32) -> (i32, i32) {
    %c0_i32 = arith.constant 0 : i32
    %c0_i32_0 = arith.constant 0 : i32
    %c0_i32_1 = arith.constant 0 : i32
    return %c0_i32, %c0_i32_0 : i32, i32
  }
  func.func @transform_2(%arg0: i32) -> (i32, i32) {
    %c0_i32 = arith.constant 0 : i32
    %c0_i32_0 = arith.constant 0 : i32
    %c0_i32_1 = arith.constant 0 : i32
    return %c0_i32, %c0_i32_0 : i32, i32
  }
  func.func @transform_3(%arg0: i32) -> (i32, i32) {
    %c0_i32 = arith.constant 0 : i32
    %c0_i32_0 = arith.constant 0 : i32
    %c0_i32_1 = arith.constant 0 : i32
    return %c0_i32, %c0_i32_0 : i32, i32
  }
  func.func @transform_4(%arg0: i32) -> (i32, i32) {
    %c0_i32 = arith.constant 0 : i32
    %c0_i32_0 = arith.constant 0 : i32
    %c0_i32_1 = arith.constant 0 : i32
    return %c0_i32, %c0_i32_0 : i32, i32
  }
  func.func @transform_5(%arg0: i32) -> (i32, i32) {
    %c0_i32 = arith.constant 0 : i32
    %c0_i32_0 = arith.constant 0 : i32
    %c0_i32_1 = arith.constant 0 : i32
    return %c0_i32, %c0_i32_0 : i32, i32
  }
  func.func @transform_6(%arg0: i32) -> (i32, i32) {
    %c0_i32 = arith.constant 0 : i32
    %c0_i32_0 = arith.constant 0 : i32
    %c0_i32_1 = arith.constant 0 : i32
    return %c0_i32, %c0_i32_0 : i32, i32
  }
  func.func @transform_7(%arg0: i32) -> (i32, i32) {
    %c0_i32 = arith.constant 0 : i32
    %c0_i32_0 = arith.constant 0 : i32
    return %arg0, %c0_i32 : i32, i32
  }
}

</mosaic_0001>

<llo_original>
// kernel: tpu_custom_call.1
$region0: #{tpu_custom_call.1}
  #allocation0 [shape = 'u32[]', space=smem, size = 0x4, offset = 0x4, fixed_abs, tag = 'smem constant byte address 0x4 - core index']
  #allocation1 [shape = 'u32[144,128]{1,0:T(1,128)}', space=vmem, size = 0x12000, scoped, tag = 'internal scratch']
  %s0 = inlined_call_operand.vmem [shape: f32[16,32], index: 0, kind: input, shape index: {}]
  %s1 = inlined_call_operand.vmem [shape: bf16[32,160], index: 1, kind: input, shape index: {}]
  %s2 = inlined_call_operand.vmem [shape: f32[1,160], index: 2, kind: input, shape index: {}]
  %s3 = inlined_call_operand.vmem [shape: f32[160,5], index: 3, kind: input, shape index: {}]
  %s4 = inlined_call_operand.vmem [shape: f32[5,160], index: 4, kind: input, shape index: {}]
  %s5 = inlined_call_operand.vmem [shape: f32[160,32], index: 5, kind: input, shape index: {}]
  %s6 = inlined_call_operand.vmem [shape: f32[1,32], index: 6, kind: input, shape index: {}]
  %s7 = inlined_call_operand.hbm [shape: f32[16,32], index: 7, kind: output, shape index: {}]
  %s8 = sld [smem:[#allocation0]]
  $region38: #{tpu_custom_call.1} parent=0
    _
  %s10 = ssub.s32 1, %s8
  %s11 = scalar_select 0, %s10, %s8
  $region1: #{tpu_custom_call.1} parent=0
    #allocation2 [shape = 'u8[8192]{0}', space=vmem, size = 0x2000, scoped, tag = 'output window, operand 0, single buffered']
    #allocation3 [shape = 's32[1]{0}', space=sflag, size = 0x4, scoped, tag = 'scoped memory for tpu_custom_call.1']
    %12 = vsyncpa [#allocation3], 0
    // Predicated region
    $region2: #{tpu_custom_call.1} parent=1 // pred_check
      _
    $region3: #{tpu_custom_call.1} parent=1 // pred_check_branch
      %14 = sbr.rel (0) target = $region5
    $region4: #{tpu_custom_call.1} parent=1 // pred_region
      _
    $region5: #{tpu_custom_call.1} parent=1 // pred_fallthru
      _
    // Predicated region
    $region6: #{tpu_custom_call.1} parent=1 // pred_check
      _
    $region7: #{tpu_custom_call.1} parent=1 // pred_check_branch
      %16 = sbr.rel (0) target = $region9
    $region8: #{tpu_custom_call.1} parent=1 // pred_region
      _
    $region9: #{tpu_custom_call.1} parent=1 // pred_fallthru
      _
    // Predicated region
    $region10: #{tpu_custom_call.1} parent=1 // pred_check
      _
    $region11: #{tpu_custom_call.1} parent=1 // pred_check_branch
      %18 = sbr.rel (0) target = $region13
    $region12: #{tpu_custom_call.1} parent=1 // pred_region
      _
    $region13: #{tpu_custom_call.1} parent=1 // pred_fallthru
      _
    // Predicated region
    $region14: #{tpu_custom_call.1} parent=1 // pred_check
      _
    $region15: #{tpu_custom_call.1} parent=1 // pred_check_branch
      %20 = sbr.rel (0) target = $region17
    $region16: #{tpu_custom_call.1} parent=1 // pred_region
      _
    $region17: #{tpu_custom_call.1} parent=1 // pred_fallthru
      _
    // Predicated region
    $region18: #{tpu_custom_call.1} parent=1 // pred_check
      _
    $region19: #{tpu_custom_call.1} parent=1 // pred_check_branch
      %22 = sbr.rel (0) target = $region21
    $region20: #{tpu_custom_call.1} parent=1 // pred_region
      _
    $region21: #{tpu_custom_call.1} parent=1 // pred_fallthru
      _
    // Predicated region
    $region22: #{tpu_custom_call.1} parent=1 // pred_check
      _
    $region23: #{tpu_custom_call.1} parent=1 // pred_check_branch
      %24 = sbr.rel (0) target = $region25
    $region24: #{tpu_custom_call.1} parent=1 // pred_region
      _
    $region25: #{tpu_custom_call.1} parent=1 // pred_fallthru
      _
    // Predicated region
    $region26: #{tpu_custom_call.1} parent=1 // pred_check
      _
    $region27: #{tpu_custom_call.1} parent=1 // pred_check_branch
      %26 = sbr.rel (0) target = $region29
    $region28: #{tpu_custom_call.1} parent=1 // pred_region
      _
    $region29: #{tpu_custom_call.1} parent=1 // pred_fallthru
      _
    %v28 = vld [vmem:[%s0] sm:$0xff]
    %v29 = vld [vmem:[%s0 + $0x8] sm:$0xff]
    %v30 = vpack.c.bf16 %v29, %v28
    %v31 = vld [vmem:[%s1] sm:$0xff]
    %v32 = vld [vmem:[%s1 + $0x8] sm:$0xff]
    %v33 = vld [vmem:[%s1 + $0x10] sm:$0xff]
    %v34 = vld [vmem:[%s1 + $0x18] sm:$0xff]
    %v35 = vld [vmem:[%s2] sm:$0x3]
    %v37 = vlaneseq
    %v38 = vshrl.u32 %v37, 7
    %v39 = vsub.s32 0, %v38
    %v40 = vrot.slane %v35, %v39
    %v41 = vlaneseq
    %v42 = vshrl.u32 %v41, 7
    %v43 = vsub.s32 1, %v42
    %v44 = vrot.slane %v35, %v43
    %v51 = vunpack.c.l.b16 %v31
    %v52 = vunpack.c.h.b16 %v31
    %v53 = vunpack.c.l.b16 %v32
    %v54 = vunpack.c.h.b16 %v32
    %v55 = vunpack.c.l.b16 %v33
    %v56 = vunpack.c.h.b16 %v33
    %v57 = vunpack.c.l.b16 %v34
    %v58 = vunpack.c.h.b16 %v34
    %v59 = vpack.c.b16 %v53, %v51
    %v60 = vpack.c.b16 %v54, %v52
    %v61 = vpack.c.b16 %v57, %v55
    %v62 = vpack.c.b16 %v58, %v56
    %vm67 = vcmask 261120
    %v69 = vsel %vm67, %v30, 0
    %71 = vmatprep.subr.bf16.mxu0 %v60
    %72 = vmatpush1.bf16.msra.mxu0 %v59
    %73 = vmatprep.subr.bf16.mxu0 %v62
    %74 = vmatpush1.bf16.msra.mxu0 %v61
    %75 = vmatprep.subr.bf16.mxu0 0
    %76 = vmatpush1.bf16.msra.mxu0 0
    %77 = vmatprep.subr.bf16.mxu0 0
    %78 = vmatpush1.bf16.msra.mxu0 0
    %79 = vmatprep.subr.bf16.mxu0 0
    %80 = vmatpush1.bf16.msra.mxu0 0
    %81 = vmatprep.subr.bf16.mxu0 0
    %82 = vmatpush1.bf16.msra.mxu0 0
    %83 = vmatprep.subr.bf16.mxu0 0
    %84 = vmatpush1.bf16.msra.mxu0 0
    %85 = vmatprep.subr.bf16.mxu0 0
    %86 = vmatpush1.bf16.msra.mxu0 0
    %87 = vmatprep.subr.bf16.mxu0 0
    %88 = vmatpush1.bf16.msra.mxu0 0
    %89 = vmatprep.subr.bf16.mxu0 0
    %90 = vmatpush1.bf16.msra.mxu0 0
    %91 = vmatprep.subr.bf16.mxu0 0
    %92 = vmatpush1.bf16.msra.mxu0 0
    %93 = vmatprep.subr.bf16.mxu0 0
    %94 = vmatpush1.bf16.msra.mxu0 0
    %95 = vmatprep.subr.bf16.mxu0 0
    %96 = vmatpush1.bf16.msra.mxu0 0
    %97 = vmatprep.subr.bf16.mxu0 0
    %98 = vmatpush1.bf16.msra.mxu0 0
    %99 = vmatprep.subr.bf16.mxu0 0
    %100 = vmatpush1.bf16.msra.mxu0 0
    %101 = vmatprep.subr.bf16.mxu0 0
    %102 = vmatpush1.bf16.msra.mxu0 0
    %103 = vmatprep.mubr.bf16.mxu0 0
    %104 = vmatmul.mubr.bf16.gmra.mrb[0].mxu0 %v69
    %v105 = vpop.f32.mrb[0].mxu0
    %v106 = vadd.f32 %v40, %v105
    %v107 = vpop.f32.mrb[0].mxu0
    %v108 = vadd.f32 %v44, %v107
    %v109 = vpop.f32.mrb[0].mxu0
    %v110 = vadd.f32 %v40, %v109
    %v111 = vpop.f32.mrb[0].mxu0
    %v112 = vadd.f32 %v44, %v111
    %113 = vdwg.mxu0
    %v114 = vmax.f32 %v106, 0.0
    %v115 = vmax.f32 %v108, 0.0
    %v116 = vmax.f32 %v110, 0.0
    %v117 = vmax.f32 %v112, 0.0
    %v118 = vld [vmem:[%s3] sm:$0xff]
    %v119 = vld [vmem:[%s3 + $0x8] sm:$0xff]
    %v120 = vld [vmem:[%s3 + $0x10] sm:$0xff]
    %v121 = vld [vmem:[%s3 + $0x18] sm:$0xff]
    %v122 = vld [vmem:[%s3 + $0x20] sm:$0xff]
    %v123 = vld [vmem:[%s3 + $0x28] sm:$0xff]
    %v124 = vld [vmem:[%s3 + $0x30] sm:$0xff]
    %v125 = vld [vmem:[%s3 + $0x38] sm:$0xff]
    %v126 = vld [vmem:[%s3 + $0x40] sm:$0xff]
    %v127 = vld [vmem:[%s3 + $0x48] sm:$0xff]
    %v128 = vld [vmem:[%s3 + $0x50] sm:$0xff]
    %v129 = vld [vmem:[%s3 + $0x58] sm:$0xff]
    %v130 = vld [vmem:[%s3 + $0x60] sm:$0xff]
    %v131 = vld [vmem:[%s3 + $0x68] sm:$0xff]
    %v132 = vld [vmem:[%s3 + $0x70] sm:$0xff]
    %v133 = vld [vmem:[%s3 + $0x78] sm:$0xff]
    %v134 = vld [vmem:[%s3 + $0x80] sm:$0xff]
    %v135 = vld [vmem:[%s3 + $0x88] sm:$0xff]
    %v136 = vld [vmem:[%s3 + $0x90] sm:$0xff]
    %v137 = vld [vmem:[%s3 + $0x98] sm:$0xff]
    %v139 = vsel %vm67, %v115, 0
    %v142 = vsel %vm67, %v117, 0
    %144 = vmatprep.subr.mxu0 0.0
    %v145 = vand.u32 %v118, 4294901760
    %146 = vmatpush1.msra.mxu0 %v145
    %147 = vmatprep.subr.mxu0 0.0
    %v148 = vand.u32 %v119, 4294901760
    %149 = vmatpush1.msra.mxu0 %v148
    %150 = vmatprep.subr.mxu0 0.0
    %v151 = vand.u32 %v120, 4294901760
    %152 = vmatpush1.msra.mxu0 %v151
    %153 = vmatprep.subr.mxu0 0.0
    %v154 = vand.u32 %v121, 4294901760
    %155 = vmatpush1.msra.mxu0 %v154
    %156 = vmatprep.subr.mxu0 0.0
    %v157 = vand.u32 %v122, 4294901760
    %158 = vmatpush1.msra.mxu0 %v157
    %159 = vmatprep.subr.mxu0 0.0
    %v160 = vand.u32 %v123, 4294901760
    %161 = vmatpush1.msra.mxu0 %v160
    %162 = vmatprep.subr.mxu0 0.0
    %v163 = vand.u32 %v124, 4294901760
    %164 = vmatpush1.msra.mxu0 %v163
    %165 = vmatprep.subr.mxu0 0.0
    %v166 = vand.u32 %v125, 4294901760
    %167 = vmatpush1.msra.mxu0 %v166
    %168 = vmatprep.subr.mxu0 0.0
    %v169 = vand.u32 %v126, 4294901760
    %170 = vmatpush1.msra.mxu0 %v169
    %171 = vmatprep.subr.mxu0 0.0
    %v172 = vand.u32 %v127, 4294901760
    %173 = vmatpush1.msra.mxu0 %v172
    %174 = vmatprep.subr.mxu0 0.0
    %v175 = vand.u32 %v128, 4294901760
    %176 = vmatpush1.msra.mxu0 %v175
    %177 = vmatprep.subr.mxu0 0.0
    %v178 = vand.u32 %v129, 4294901760
    %179 = vmatpush1.msra.mxu0 %v178
    %180 = vmatprep.subr.mxu0 0.0
    %v181 = vand.u32 %v130, 4294901760
    %182 = vmatpush1.msra.mxu0 %v181
    %183 = vmatprep.subr.mxu0 0.0
    %v184 = vand.u32 %v131, 4294901760
    %185 = vmatpush1.msra.mxu0 %v184
    %186 = vmatprep.subr.mxu0 0.0
    %v187 = vand.u32 %v132, 4294901760
    %188 = vmatpush1.msra.mxu0 %v187
    %189 = vmatprep.subr.mxu0 0.0
    %v190 = vand.u32 %v133, 4294901760
    %191 = vmatpush1.msra.mxu0 %v190
    %192 = vmatprep.subr.mxu0 0.0
    %v193 = vand.u32 %v134, 4294901760
    %194 = vmatpush1.msra.mxu0 %v193
    %195 = vmatprep.subr.mxu0 0.0
    %v196 = vand.u32 %v135, 4294901760
    %197 = vmatpush1.msra.mxu0 %v196
    %198 = vmatprep.subr.mxu0 0.0
    %v199 = vand.u32 %v136, 4294901760
    %200 = vmatpush1.msra.mxu0 %v199
    %201 = vmatprep.subr.mxu0 0.0
    %v202 = vand.u32 %v137, 4294901760
    %203 = vmatpush1.msra.mxu0 %v202
    %204 = vmatprep.subr.mxu0 0.0
    %205 = vmatpush1.msra.mxu0 0.0
    %206 = vmatprep.subr.mxu0 0.0
    %207 = vmatpush1.msra.mxu0 0.0
    %208 = vmatprep.subr.mxu0 0.0
    %209 = vmatpush1.msra.mxu0 0.0
    %210 = vmatprep.subr.mxu0 0.0
    %211 = vmatpush1.msra.mxu0 0.0
    %212 = vmatprep.subr.mxu0 0.0
    %213 = vmatpush1.msra.mxu0 0.0
    %214 = vmatprep.subr.mxu0 0.0
    %215 = vmatpush1.msra.mxu0 0.0
    %216 = vmatprep.subr.mxu0 0.0
    %217 = vmatpush1.msra.mxu0 0.0
    %218 = vmatprep.subr.mxu0 0.0
    %219 = vmatpush1.msra.mxu0 0.0
    %220 = vmatprep.subr.mxu0 0.0
    %221 = vmatpush1.msra.mxu0 0.0
    %222 = vmatprep.subr.mxu0 0.0
    %223 = vmatpush1.msra.mxu0 0.0
    %224 = vmatprep.subr.mxu0 0.0
    %225 = vmatpush1.msra.mxu0 0.0
    %226 = vmatprep.subr.mxu0 0.0
    %227 = vmatpush1.msra.mxu0 0.0
    %v228 = vand.u32 %v139, 4294901760
    %v229 = vsub.f32 %v139, %v228
    %v230 = vand.u32 %v229, 4294901760
    %v231 = vsub.f32 %v229, %v230
    %v232 = vand.u32 %v231, 4294901760
    %233 = vmatprep.mubr.f32.mxu0 %v232
    %v234 = vand.u32 %v114, 4294901760
    %v235 = vsub.f32 %v114, %v234
    %v236 = vand.u32 %v235, 4294901760
    %v237 = vsub.f32 %v235, %v236
    %v238 = vand.u32 %v237, 4294901760
    %239 = vmatmul.mubr.f32.gmra.mrb[0].mxu0 %v238
    %v240 = vpop.f32.mrb[0].mxu0
    %v241 = vadd.f32 0.0, %v240
    %v242 = vpop.f32.mrb[0].mxu0
    %v243 = vand.u32 %v142, 4294901760
    %v244 = vsub.f32 %v142, %v243
    %v245 = vand.u32 %v244, 4294901760
    %v246 = vsub.f32 %v244, %v245
    %v247 = vand.u32 %v246, 4294901760
    %248 = vmatprep.mubr.f32.mxu0 %v247
    %v249 = vand.u32 %v116, 4294901760
    %v250 = vsub.f32 %v116, %v249
    %v251 = vand.u32 %v250, 4294901760
    %v252 = vsub.f32 %v250, %v251
    %v253 = vand.u32 %v252, 4294901760
    %254 = vmatmul.mubr.f32.gmra.mrb[0].mxu0 %v253
    %v255 = vpop.f32.mrb[0].mxu0
    %v256 = vadd.f32 0.0, %v255
    %v257 = vpop.f32.mrb[0].mxu0
    %258 = vdwg.mxu0
    %259 = vmatprep.subr.mxu0 0.0
    %v260 = vand.u32 %v118, 4294901760
    %v261 = vsub.f32 %v118, %v260
    %v262 = vand.u32 %v261, 4294901760
    %v263 = vsub.f32 %v261, %v262
    %v264 = vand.u32 %v263, 4294901760
    %265 = vmatpush1.msra.mxu0 %v264
    %266 = vmatprep.subr.mxu0 0.0
    %v267 = vand.u32 %v119, 4294901760
    %v268 = vsub.f32 %v119, %v267
    %v269 = vand.u32 %v268, 4294901760
    %v270 = vsub.f32 %v268, %v269
    %v271 = vand.u32 %v270, 4294901760
    %272 = vmatpush1.msra.mxu0 %v271
    %273 = vmatprep.subr.mxu0 0.0
    %v274 = vand.u32 %v120, 4294901760
    %v275 = vsub.f32 %v120, %v274
    %v276 = vand.u32 %v275, 4294901760
    %v277 = vsub.f32 %v275, %v276
    %v278 = vand.u32 %v277, 4294901760
    %279 = vmatpush1.msra.mxu0 %v278
    %280 = vmatprep.subr.mxu0 0.0
    %v281 = vand.u32 %v121, 4294901760
    %v282 = vsub.f32 %v121, %v281
    %v283 = vand.u32 %v282, 4294901760
    %v284 = vsub.f32 %v282, %v283
    %v285 = vand.u32 %v284, 4294901760
    %286 = vmatpush1.msra.mxu0 %v285
    %287 = vmatprep.subr.mxu0 0.0
    %v288 = vand.u32 %v122, 4294901760
    %v289 = vsub.f32 %v122, %v288
    %v290 = vand.u32 %v289, 4294901760
    %v291 = vsub.f32 %v289, %v290
    %v292 = vand.u32 %v291, 4294901760
    %293 = vmatpush1.msra.mxu0 %v292
    %294 = vmatprep.subr.mxu0 0.0
    %v295 = vand.u32 %v123, 4294901760
    %v296 = vsub.f32 %v123, %v295
    %v297 = vand.u32 %v296, 4294901760
    %v298 = vsub.f32 %v296, %v297
    %v299 = vand.u32 %v298, 4294901760
    %300 = vmatpush1.msra.mxu0 %v299
    %301 = vmatprep.subr.mxu0 0.0
    %v302 = vand.u32 %v124, 4294901760
    %v303 = vsub.f32 %v124, %v302
    %v304 = vand.u32 %v303, 4294901760
    %v305 = vsub.f32 %v303, %v304
    %v306 = vand.u32 %v305, 4294901760
    %307 = vmatpush1.msra.mxu0 %v306
    %308 = vmatprep.subr.mxu0 0.0
    %v309 = vand.u32 %v125, 4294901760
    %v310 = vsub.f32 %v125, %v309
    %v311 = vand.u32 %v310, 4294901760
    %v312 = vsub.f32 %v310, %v311
    %v313 = vand.u32 %v312, 4294901760
    %314 = vmatpush1.msra.mxu0 %v313
    %315 = vmatprep.subr.mxu0 0.0
    %v316 = vand.u32 %v126, 4294901760
    %v317 = vsub.f32 %v126, %v316
    %v318 = vand.u32 %v317, 4294901760
    %v319 = vsub.f32 %v317, %v318
    %v320 = vand.u32 %v319, 4294901760
    %321 = vmatpush1.msra.mxu0 %v320
    %322 = vmatprep.subr.mxu0 0.0
    %v323 = vand.u32 %v127, 4294901760
    %v324 = vsub.f32 %v127, %v323
    %v325 = vand.u32 %v324, 4294901760
    %v326 = vsub.f32 %v324, %v325
    %v327 = vand.u32 %v326, 4294901760
    %328 = vmatpush1.msra.mxu0 %v327
    %329 = vmatprep.subr.mxu0 0.0
    %v330 = vand.u32 %v128, 4294901760
    %v331 = vsub.f32 %v128, %v330
    %v332 = vand.u32 %v331, 4294901760
    %v333 = vsub.f32 %v331, %v332
    %v334 = vand.u32 %v333, 4294901760
    %335 = vmatpush1.msra.mxu0 %v334
    %336 = vmatprep.subr.mxu0 0.0
    %v337 = vand.u32 %v129, 4294901760
    %v338 = vsub.f32 %v129, %v337
    %v339 = vand.u32 %v338, 4294901760
    %v340 = vsub.f32 %v338, %v339
    %v341 = vand.u32 %v340, 4294901760
    %342 = vmatpush1.msra.mxu0 %v341
    %343 = vmatprep.subr.mxu0 0.0
    %v344 = vand.u32 %v130, 4294901760
    %v345 = vsub.f32 %v130, %v344
    %v346 = vand.u32 %v345, 4294901760
    %v347 = vsub.f32 %v345, %v346
    %v348 = vand.u32 %v347, 4294901760
    %349 = vmatpush1.msra.mxu0 %v348
    %350 = vmatprep.subr.mxu0 0.0
    %v351 = vand.u32 %v131, 4294901760
    %v352 = vsub.f32 %v131, %v351
    %v353 = vand.u32 %v352, 4294901760
    %v354 = vsub.f32 %v352, %v353
    %v355 = vand.u32 %v354, 4294901760
    %356 = vmatpush1.msra.mxu0 %v355
    %357 = vmatprep.subr.mxu0 0.0
    %v358 = vand.u32 %v132, 4294901760
    %v359 = vsub.f32 %v132, %v358
    %v360 = vand.u32 %v359, 4294901760
    %v361 = vsub.f32 %v359, %v360
    %v362 = vand.u32 %v361, 4294901760
    %363 = vmatpush1.msra.mxu0 %v362
    %364 = vmatprep.subr.mxu0 0.0
    %v365 = vand.u32 %v133, 4294901760
    %v366 = vsub.f32 %v133, %v365
    %v367 = vand.u32 %v366, 4294901760
    %v368 = vsub.f32 %v366, %v367
    %v369 = vand.u32 %v368, 4294901760
    %370 = vmatpush1.msra.mxu0 %v369
    %371 = vmatprep.subr.mxu0 0.0
    %v372 = vand.u32 %v134, 4294901760
    %v373 = vsub.f32 %v134, %v372
    %v374 = vand.u32 %v373, 4294901760
    %v375 = vsub.f32 %v373, %v374
    %v376 = vand.u32 %v375, 4294901760
    %377 = vmatpush1.msra.mxu0 %v376
    %378 = vmatprep.subr.mxu0 0.0
    %v379 = vand.u32 %v135, 4294901760
    %v380 = vsub.f32 %v135, %v379
    %v381 = vand.u32 %v380, 4294901760
    %v382 = vsub.f32 %v380, %v381
    %v383 = vand.u32 %v382, 4294901760
    %384 = vmatpush1.msra.mxu0 %v383
    %385 = vmatprep.subr.mxu0 0.0
    %v386 = vand.u32 %v136, 4294901760
    %v387 = vsub.f32 %v136, %v386
    %v388 = vand.u32 %v387, 4294901760
    %v389 = vsub.f32 %v387, %v388
    %v390 = vand.u32 %v389, 4294901760
    %391 = vmatpush1.msra.mxu0 %v390
    %392 = vmatprep.subr.mxu0 0.0
    %v393 = vand.u32 %v137, 4294901760
    %v394 = vsub.f32 %v137, %v393
    %v395 = vand.u32 %v394, 4294901760
    %v396 = vsub.f32 %v394, %v395
    %v397 = vand.u32 %v396, 4294901760
    %398 = vmatpush1.msra.mxu0 %v397
    %399 = vmatprep.subr.mxu0 0.0
    %400 = vmatpush1.msra.mxu0 0.0
    %401 = vmatprep.subr.mxu0 0.0
    %402 = vmatpush1.msra.mxu0 0.0
    %403 = vmatprep.subr.mxu0 0.0
    %404 = vmatpush1.msra.mxu0 0.0
    %405 = vmatprep.subr.mxu0 0.0
    %406 = vmatpush1.msra.mxu0 0.0
    %407 = vmatprep.subr.mxu0 0.0
    %408 = vmatpush1.msra.mxu0 0.0
    %409 = vmatprep.subr.mxu0 0.0
    %410 = vmatpush1.msra.mxu0 0.0
    %411 = vmatprep.subr.mxu0 0.0
    %412 = vmatpush1.msra.mxu0 0.0
    %413 = vmatprep.subr.mxu0 0.0
    %414 = vmatpush1.msra.mxu0 0.0
    %415 = vmatprep.subr.mxu0 0.0
    %416 = vmatpush1.msra.mxu0 0.0
    %417 = vmatprep.subr.mxu0 0.0
    %418 = vmatpush1.msra.mxu0 0.0
    %419 = vmatprep.subr.mxu0 0.0
    %420 = vmatpush1.msra.mxu0 0.0
    %421 = vmatprep.subr.mxu0 0.0
    %422 = vmatpush1.msra.mxu0 0.0
    %v423 = vand.u32 %v139, 4294901760
    %424 = vmatprep.mubr.f32.mxu0 %v423
    %v425 = vand.u32 %v114, 4294901760
    %426 = vmatmul.mubr.f32.gmra.mrb[0].mxu0 %v425
    %v427 = vpop.f32.mrb[0].mxu0
    %v428 = vadd.f32 %v241, %v427
    %v429 = vpop.f32.mrb[0].mxu0
    %v430 = vand.u32 %v142, 4294901760
    %431 = vmatprep.mubr.f32.mxu0 %v430
    %v432 = vand.u32 %v116, 4294901760
    %433 = vmatmul.mubr.f32.gmra.mrb[0].mxu0 %v432
    %v434 = vpop.f32.mrb[0].mxu0
    %v435 = vadd.f32 %v256, %v434
    %v436 = vpop.f32.mrb[0].mxu0
    %437 = vdwg.mxu0
    %438 = vmatprep.subr.mxu0 0.0
    %v439 = vand.u32 %v118, 4294901760
    %v440 = vsub.f32 %v118, %v439
    %441 = vmatpush1.msra.mxu0 %v440
    %442 = vmatprep.subr.mxu0 0.0
    %v443 = vand.u32 %v119, 4294901760
    %v444 = vsub.f32 %v119, %v443
    %445 = vmatpush1.msra.mxu0 %v444
    %446 = vmatprep.subr.mxu0 0.0
    %v447 = vand.u32 %v120, 4294901760
    %v448 = vsub.f32 %v120, %v447
    %449 = vmatpush1.msra.mxu0 %v448
    %450 = vmatprep.subr.mxu0 0.0
    %v451 = vand.u32 %v121, 4294901760
    %v452 = vsub.f32 %v121, %v451
    %453 = vmatpush1.msra.mxu0 %v452
    %454 = vmatprep.subr.mxu0 0.0
    %v455 = vand.u32 %v122, 4294901760
    %v456 = vsub.f32 %v122, %v455
    %457 = vmatpush1.msra.mxu0 %v456
    %458 = vmatprep.subr.mxu0 0.0
    %v459 = vand.u32 %v123, 4294901760
    %v460 = vsub.f32 %v123, %v459
    %461 = vmatpush1.msra.mxu0 %v460
    %462 = vmatprep.subr.mxu0 0.0
    %v463 = vand.u32 %v124, 4294901760
    %v464 = vsub.f32 %v124, %v463
    %465 = vmatpush1.msra.mxu0 %v464
    %466 = vmatprep.subr.mxu0 0.0
    %v467 = vand.u32 %v125, 4294901760
    %v468 = vsub.f32 %v125, %v467
    %469 = vmatpush1.msra.mxu0 %v468
    %470 = vmatprep.subr.mxu0 0.0
    %v471 = vand.u32 %v126, 4294901760
    %v472 = vsub.f32 %v126, %v471
    %473 = vmatpush1.msra.mxu0 %v472
    %474 = vmatprep.subr.mxu0 0.0
    %v475 = vand.u32 %v127, 4294901760
    %v476 = vsub.f32 %v127, %v475
    %477 = vmatpush1.msra.mxu0 %v476
    %478 = vmatprep.subr.mxu0 0.0
    %v479 = vand.u32 %v128, 4294901760
    %v480 = vsub.f32 %v128, %v479
    %481 = vmatpush1.msra.mxu0 %v480
    %482 = vmatprep.subr.mxu0 0.0
    %v483 = vand.u32 %v129, 4294901760
    %v484 = vsub.f32 %v129, %v483
    %485 = vmatpush1.msra.mxu0 %v484
    %486 = vmatprep.subr.mxu0 0.0
    %v487 = vand.u32 %v130, 4294901760
    %v488 = vsub.f32 %v130, %v487
    %489 = vmatpush1.msra.mxu0 %v488
    %490 = vmatprep.subr.mxu0 0.0
    %v491 = vand.u32 %v131, 4294901760
    %v492 = vsub.f32 %v131, %v491
    %493 = vmatpush1.msra.mxu0 %v492
    %494 = vmatprep.subr.mxu0 0.0
    %v495 = vand.u32 %v132, 4294901760
    %v496 = vsub.f32 %v132, %v495
    %497 = vmatpush1.msra.mxu0 %v496
    %498 = vmatprep.subr.mxu0 0.0
    %v499 = vand.u32 %v133, 4294901760
    %v500 = vsub.f32 %v133, %v499
    %501 = vmatpush1.msra.mxu0 %v500
    %502 = vmatprep.subr.mxu0 0.0
    %v503 = vand.u32 %v134, 4294901760
    %v504 = vsub.f32 %v134, %v503
    %505 = vmatpush1.msra.mxu0 %v504
    %506 = vmatprep.subr.mxu0 0.0
    %v507 = vand.u32 %v135, 4294901760
    %v508 = vsub.f32 %v135, %v507
    %509 = vmatpush1.msra.mxu0 %v508
    %510 = vmatprep.subr.mxu0 0.0
    %v511 = vand.u32 %v136, 4294901760
    %v512 = vsub.f32 %v136, %v511
    %513 = vmatpush1.msra.mxu0 %v512
    %514 = vmatprep.subr.mxu0 0.0
    %v515 = vand.u32 %v137, 4294901760
    %v516 = vsub.f32 %v137, %v515
    %517 = vmatpush1.msra.mxu0 %v516
    %518 = vmatprep.subr.mxu0 0.0
    %519 = vmatpush1.msra.mxu0 0.0
    %520 = vmatprep.subr.mxu0 0.0
    %521 = vmatpush1.msra.mxu0 0.0
    %522 = vmatprep.subr.mxu0 0.0
    %523 = vmatpush1.msra.mxu0 0.0
    %524 = vmatprep.subr.mxu0 0.0
    %525 = vmatpush1.msra.mxu0 0.0
    %526 = vmatprep.subr.mxu0 0.0
    %527 = vmatpush1.msra.mxu0 0.0
    %528 = vmatprep.subr.mxu0 0.0
    %529 = vmatpush1.msra.mxu0 0.0
    %530 = vmatprep.subr.mxu0 0.0
    %531 = vmatpush1.msra.mxu0 0.0
    %532 = vmatprep.subr.mxu0 0.0
    %533 = vmatpush1.msra.mxu0 0.0
    %534 = vmatprep.subr.mxu0 0.0
    %535 = vmatpush1.msra.mxu0 0.0
    %536 = vmatprep.subr.mxu0 0.0
    %537 = vmatpush1.msra.mxu0 0.0
    %538 = vmatprep.subr.mxu0 0.0
    %539 = vmatpush1.msra.mxu0 0.0
    %540 = vmatprep.subr.mxu0 0.0
    %541 = vmatpush1.msra.mxu0 0.0
    %v542 = vand.u32 %v139, 4294901760
    %v543 = vsub.f32 %v139, %v542
    %544 = vmatprep.mubr.f32.mxu0 %v543
    %v545 = vand.u32 %v114, 4294901760
    %v546 = vsub.f32 %v114, %v545
    %547 = vmatmul.mubr.f32.gmra.mrb[0].mxu0 %v546
    %v548 = vpop.f32.mrb[0].mxu0
    %v549 = vadd.f32 %v428, %v548
    %v550 = vpop.f32.mrb[0].mxu0
    %v551 = vand.u32 %v142, 4294901760
    %v552 = vsub.f32 %v142, %v551
    %553 = vmatprep.mubr.f32.mxu0 %v552
    %v554 = vand.u32 %v116, 4294901760
    %v555 = vsub.f32 %v116, %v554
    %556 = vmatmul.mubr.f32.gmra.mrb[0].mxu0 %v555
    %v557 = vpop.f32.mrb[0].mxu0
    %v558 = vadd.f32 %v435, %v557
    %v559 = vpop.f32.mrb[0].mxu0
    %560 = vdwg.mxu0
    %561 = vmatprep.subr.mxu0 0.0
    %v562 = vand.u32 %v118, 4294901760
    %563 = vmatpush1.msra.mxu0 %v562
    %564 = vmatprep.subr.mxu0 0.0
    %v565 = vand.u32 %v119, 4294901760
    %566 = vmatpush1.msra.mxu0 %v565
    %567 = vmatprep.subr.mxu0 0.0
    %v568 = vand.u32 %v120, 4294901760
    %569 = vmatpush1.msra.mxu0 %v568
    %570 = vmatprep.subr.mxu0 0.0
    %v571 = vand.u32 %v121, 4294901760
    %572 = vmatpush1.msra.mxu0 %v571
    %573 = vmatprep.subr.mxu0 0.0
    %v574 = vand.u32 %v122, 4294901760
    %575 = vmatpush1.msra.mxu0 %v574
    %576 = vmatprep.subr.mxu0 0.0
    %v577 = vand.u32 %v123, 4294901760
    %578 = vmatpush1.msra.mxu0 %v577
    %579 = vmatprep.subr.mxu0 0.0
    %v580 = vand.u32 %v124, 4294901760
    %581 = vmatpush1.msra.mxu0 %v580
    %582 = vmatprep.subr.mxu0 0.0
    %v583 = vand.u32 %v125, 4294901760
    %584 = vmatpush1.msra.mxu0 %v583
    %585 = vmatprep.subr.mxu0 0.0
    %v586 = vand.u32 %v126, 4294901760
    %587 = vmatpush1.msra.mxu0 %v586
    %588 = vmatprep.subr.mxu0 0.0
    %v589 = vand.u32 %v127, 4294901760
    %590 = vmatpush1.msra.mxu0 %v589
    %591 = vmatprep.subr.mxu0 0.0
    %v592 = vand.u32 %v128, 4294901760
    %593 = vmatpush1.msra.mxu0 %v592
    %594 = vmatprep.subr.mxu0 0.0
    %v595 = vand.u32 %v129, 4294901760
    %596 = vmatpush1.msra.mxu0 %v595
    %597 = vmatprep.subr.mxu0 0.0
    %v598 = vand.u32 %v130, 4294901760
    %599 = vmatpush1.msra.mxu0 %v598
    %600 = vmatprep.subr.mxu0 0.0
    %v601 = vand.u32 %v131, 4294901760
    %602 = vmatpush1.msra.mxu0 %v601
    %603 = vmatprep.subr.mxu0 0.0
    %v604 = vand.u32 %v132, 4294901760
    %605 = vmatpush1.msra.mxu0 %v604
    %606 = vmatprep.subr.mxu0 0.0
    %v607 = vand.u32 %v133, 4294901760
    %608 = vmatpush1.msra.mxu0 %v607
    %609 = vmatprep.subr.mxu0 0.0
    %v610 = vand.u32 %v134, 4294901760
    %611 = vmatpush1.msra.mxu0 %v610
    %612 = vmatprep.subr.mxu0 0.0
    %v613 = vand.u32 %v135, 4294901760
    %614 = vmatpush1.msra.mxu0 %v613
    %615 = vmatprep.subr.mxu0 0.0
    %v616 = vand.u32 %v136, 4294901760
    %617 = vmatpush1.msra.mxu0 %v616
    %618 = vmatprep.subr.mxu0 0.0
    %v619 = vand.u32 %v137, 4294901760
    %620 = vmatpush1.msra.mxu0 %v619
    %621 = vmatprep.subr.mxu0 0.0
    %622 = vmatpush1.msra.mxu0 0.0
    %623 = vmatprep.subr.mxu0 0.0
    %624 = vmatpush1.msra.mxu0 0.0
    %625 = vmatprep.subr.mxu0 0.0
    %626 = vmatpush1.msra.mxu0 0.0
    %627 = vmatprep.subr.mxu0 0.0
    %628 = vmatpush1.msra.mxu0 0.0
    %629 = vmatprep.subr.mxu0 0.0
    %630 = vmatpush1.msra.mxu0 0.0
    %631 = vmatprep.subr.mxu0 0.0
    %632 = vmatpush1.msra.mxu0 0.0
    %633 = vmatprep.subr.mxu0 0.0
    %634 = vmatpush1.msra.mxu0 0.0
    %635 = vmatprep.subr.mxu0 0.0
    %636 = vmatpush1.msra.mxu0 0.0
    %637 = vmatprep.subr.mxu0 0.0
    %638 = vmatpush1.msra.mxu0 0.0
    %639 = vmatprep.subr.mxu0 0.0
    %640 = vmatpush1.msra.mxu0 0.0
    %641 = vmatprep.subr.mxu0 0.0
    %642 = vmatpush1.msra.mxu0 0.0
    %643 = vmatprep.subr.mxu0 0.0
    %644 = vmatpush1.msra.mxu0 0.0
    %v645 = vand.u32 %v139, 4294901760
    %v646 = vsub.f32 %v139, %v645
    %v647 = vand.u32 %v646, 4294901760
    %648 = vmatprep.mubr.f32.mxu0 %v647
    %v649 = vand.u32 %v114, 4294901760
    %v650 = vsub.f32 %v114, %v649
    %v651 = vand.u32 %v650, 4294901760
    %652 = vmatmul.mubr.f32.gmra.mrb[0].mxu0 %v651
    %v653 = vpop.f32.mrb[0].mxu0
    %v654 = vadd.f32 %v549, %v653
    %v655 = vpop.f32.mrb[0].mxu0
    %v656 = vand.u32 %v142, 4294901760
    %v657 = vsub.f32 %v142, %v656
    %v658 = vand.u32 %v657, 4294901760
    %659 = vmatprep.mubr.f32.mxu0 %v658
    %v660 = vand.u32 %v116, 4294901760
    %v661 = vsub.f32 %v116, %v660
    %v662 = vand.u32 %v661, 4294901760
    %663 = vmatmul.mubr.f32.gmra.mrb[0].mxu0 %v662
    %v664 = vpop.f32.mrb[0].mxu0
    %v665 = vadd.f32 %v558, %v664
    %v666 = vpop.f32.mrb[0].mxu0
    %667 = vdwg.mxu0
    %668 = vmatprep.subr.mxu0 0.0
    %v669 = vand.u32 %v118, 4294901760
    %v670 = vsub.f32 %v118, %v669
    %v671 = vand.u32 %v670, 4294901760
    %672 = vmatpush1.msra.mxu0 %v671
    %673 = vmatprep.subr.mxu0 0.0
    %v674 = vand.u32 %v119, 4294901760
    %v675 = vsub.f32 %v119, %v674
    %v676 = vand.u32 %v675, 4294901760
    %677 = vmatpush1.msra.mxu0 %v676
    %678 = vmatprep.subr.mxu0 0.0
    %v679 = vand.u32 %v120, 4294901760
    %v680 = vsub.f32 %v120, %v679
    %v681 = vand.u32 %v680, 4294901760
    %682 = vmatpush1.msra.mxu0 %v681
    %683 = vmatprep.subr.mxu0 0.0
    %v684 = vand.u32 %v121, 4294901760
    %v685 = vsub.f32 %v121, %v684
    %v686 = vand.u32 %v685, 4294901760
    %687 = vmatpush1.msra.mxu0 %v686
    %688 = vmatprep.subr.mxu0 0.0
    %v689 = vand.u32 %v122, 4294901760
    %v690 = vsub.f32 %v122, %v689
    %v691 = vand.u32 %v690, 4294901760
    %692 = vmatpush1.msra.mxu0 %v691
    %693 = vmatprep.subr.mxu0 0.0
    %v694 = vand.u32 %v123, 4294901760
    %v695 = vsub.f32 %v123, %v694
    %v696 = vand.u32 %v695, 4294901760
    %697 = vmatpush1.msra.mxu0 %v696
    %698 = vmatprep.subr.mxu0 0.0
    %v699 = vand.u32 %v124, 4294901760
    %v700 = vsub.f32 %v124, %v699
    %v701 = vand.u32 %v700, 4294901760
    %702 = vmatpush1.msra.mxu0 %v701
    %703 = vmatprep.subr.mxu0 0.0
    %v704 = vand.u32 %v125, 4294901760
    %v705 = vsub.f32 %v125, %v704
    %v706 = vand.u32 %v705, 4294901760
    %707 = vmatpush1.msra.mxu0 %v706
    %708 = vmatprep.subr.mxu0 0.0
    %v709 = vand.u32 %v126, 4294901760
    %v710 = vsub.f32 %v126, %v709
    %v711 = vand.u32 %v710, 4294901760
    %712 = vmatpush1.msra.mxu0 %v711
    %713 = vmatprep.subr.mxu0 0.0
    %v714 = vand.u32 %v127, 4294901760
    %v715 = vsub.f32 %v127, %v714
    %v716 = vand.u32 %v715, 4294901760
    %717 = vmatpush1.msra.mxu0 %v716
    %718 = vmatprep.subr.mxu0 0.0
    %v719 = vand.u32 %v128, 4294901760
    %v720 = vsub.f32 %v128, %v719
    %v721 = vand.u32 %v720, 4294901760
    %722 = vmatpush1.msra.mxu0 %v721
    %723 = vmatprep.subr.mxu0 0.0
    %v724 = vand.u32 %v129, 4294901760
    %v725 = vsub.f32 %v129, %v724
    %v726 = vand.u32 %v725, 4294901760
    %727 = vmatpush1.msra.mxu0 %v726
    %728 = vmatprep.subr.mxu0 0.0
    %v729 = vand.u32 %v130, 4294901760
    %v730 = vsub.f32 %v130, %v729
    %v731 = vand.u32 %v730, 4294901760
    %732 = vmatpush1.msra.mxu0 %v731
    %733 = vmatprep.subr.mxu0 0.0
    %v734 = vand.u32 %v131, 4294901760
    %v735 = vsub.f32 %v131, %v734
    %v736 = vand.u32 %v735, 4294901760
    %737 = vmatpush1.msra.mxu0 %v736
    %738 = vmatprep.subr.mxu0 0.0
    %v739 = vand.u32 %v132, 4294901760
    %v740 = vsub.f32 %v132, %v739
    %v741 = vand.u32 %v740, 4294901760
    %742 = vmatpush1.msra.mxu0 %v741
    %743 = vmatprep.subr.mxu0 0.0
    %v744 = vand.u32 %v133, 4294901760
    %v745 = vsub.f32 %v133, %v744
    %v746 = vand.u32 %v745, 4294901760
    %747 = vmatpush1.msra.mxu0 %v746
    %748 = vmatprep.subr.mxu0 0.0
    %v749 = vand.u32 %v134, 4294901760
    %v750 = vsub.f32 %v134, %v749
    %v751 = vand.u32 %v750, 4294901760
    %752 = vmatpush1.msra.mxu0 %v751
    %753 = vmatprep.subr.mxu0 0.0
    %v754 = vand.u32 %v135, 4294901760
    %v755 = vsub.f32 %v135, %v754
    %v756 = vand.u32 %v755, 4294901760
    %757 = vmatpush1.msra.mxu0 %v756
    %758 = vmatprep.subr.mxu0 0.0
    %v759 = vand.u32 %v136, 4294901760
    %v760 = vsub.f32 %v136, %v759
    %v761 = vand.u32 %v760, 4294901760
    %762 = vmatpush1.msra.mxu0 %v761
    %763 = vmatprep.subr.mxu0 0.0
    %v764 = vand.u32 %v137, 4294901760
    %v765 = vsub.f32 %v137, %v764
    %v766 = vand.u32 %v765, 4294901760
    %767 = vmatpush1.msra.mxu0 %v766
    %768 = vmatprep.subr.mxu0 0.0
    %769 = vmatpush1.msra.mxu0 0.0
    %770 = vmatprep.subr.mxu0 0.0
    %771 = vmatpush1.msra.mxu0 0.0
    %772 = vmatprep.subr.mxu0 0.0
    %773 = vmatpush1.msra.mxu0 0.0
    %774 = vmatprep.subr.mxu0 0.0
    %775 = vmatpush1.msra.mxu0 0.0
    %776 = vmatprep.subr.mxu0 0.0
    %777 = vmatpush1.msra.mxu0 0.0
    %778 = vmatprep.subr.mxu0 0.0
    %779 = vmatpush1.msra.mxu0 0.0
    %780 = vmatprep.subr.mxu0 0.0
    %781 = vmatpush1.msra.mxu0 0.0
    %782 = vmatprep.subr.mxu0 0.0
    %783 = vmatpush1.msra.mxu0 0.0
    %784 = vmatprep.subr.mxu0 0.0
    %785 = vmatpush1.msra.mxu0 0.0
    %786 = vmatprep.subr.mxu0 0.0
    %787 = vmatpush1.msra.mxu0 0.0
    %788 = vmatprep.subr.mxu0 0.0
    %789 = vmatpush1.msra.mxu0 0.0
    %790 = vmatprep.subr.mxu0 0.0
    %791 = vmatpush1.msra.mxu0 0.0
    %v792 = vand.u32 %v139, 4294901760
    %793 = vmatprep.mubr.f32.mxu0 %v792
    %v794 = vand.u32 %v114, 4294901760
    %795 = vmatmul.mubr.f32.gmra.mrb[0].mxu0 %v794
    %v796 = vpop.f32.mrb[0].mxu0
    %v797 = vadd.f32 %v654, %v796
    %v798 = vpop.f32.mrb[0].mxu0
    %v799 = vand.u32 %v142, 4294901760
    %800 = vmatprep.mubr.f32.mxu0 %v799
    %v801 = vand.u32 %v116, 4294901760
    %802 = vmatmul.mubr.f32.gmra.mrb[0].mxu0 %v801
    %v803 = vpop.f32.mrb[0].mxu0
    %v804 = vadd.f32 %v665, %v803
    %v805 = vpop.f32.mrb[0].mxu0
    %806 = vdwg.mxu0
    %807 = vmatprep.subr.mxu0 0.0
    %v808 = vand.u32 %v118, 4294901760
    %809 = vmatpush1.msra.mxu0 %v808
    %810 = vmatprep.subr.mxu0 0.0
    %v811 = vand.u32 %v119, 4294901760
    %812 = vmatpush1.msra.mxu0 %v811
    %813 = vmatprep.subr.mxu0 0.0
    %v814 = vand.u32 %v120, 4294901760
    %815 = vmatpush1.msra.mxu0 %v814
    %816 = vmatprep.subr.mxu0 0.0
    %v817 = vand.u32 %v121, 4294901760
    %818 = vmatpush1.msra.mxu0 %v817
    %819 = vmatprep.subr.mxu0 0.0
    %v820 = vand.u32 %v122, 4294901760
    %821 = vmatpush1.msra.mxu0 %v820
    %822 = vmatprep.subr.mxu0 0.0
    %v823 = vand.u32 %v123, 4294901760
    %824 = vmatpush1.msra.mxu0 %v823
    %825 = vmatprep.subr.mxu0 0.0
    %v826 = vand.u32 %v124, 4294901760
    %827 = vmatpush1.msra.mxu0 %v826
    %828 = vmatprep.subr.mxu0 0.0
    %v829 = vand.u32 %v125, 4294901760
    %830 = vmatpush1.msra.mxu0 %v829
    %831 = vmatprep.subr.mxu0 0.0
    %v832 = vand.u32 %v126, 4294901760
    %833 = vmatpush1.msra.mxu0 %v832
    %834 = vmatprep.subr.mxu0 0.0
    %v835 = vand.u32 %v127, 4294901760
    %836 = vmatpush1.msra.mxu0 %v835
    %837 = vmatprep.subr.mxu0 0.0
    %v838 = vand.u32 %v128, 4294901760
    %839 = vmatpush1.msra.mxu0 %v838
    %840 = vmatprep.subr.mxu0 0.0
    %v841 = vand.u32 %v129, 4294901760
    %842 = vmatpush1.msra.mxu0 %v841
    %843 = vmatprep.subr.mxu0 0.0
    %v844 = vand.u32 %v130, 4294901760
    %845 = vmatpush1.msra.mxu0 %v844
    %846 = vmatprep.subr.mxu0 0.0
    %v847 = vand.u32 %v131, 4294901760
    %848 = vmatpush1.msra.mxu0 %v847
    %849 = vmatprep.subr.mxu0 0.0
    %v850 = vand.u32 %v132, 4294901760
    %851 = vmatpush1.msra.mxu0 %v850
    %852 = vmatprep.subr.mxu0 0.0
    %v853 = vand.u32 %v133, 4294901760
    %854 = vmatpush1.msra.mxu0 %v853
    %855 = vmatprep.subr.mxu0 0.0
    %v856 = vand.u32 %v134, 4294901760
    %857 = vmatpush1.msra.mxu0 %v856
    %858 = vmatprep.subr.mxu0 0.0
    %v859 = vand.u32 %v135, 4294901760
    %860 = vmatpush1.msra.mxu0 %v859
    %861 = vmatprep.subr.mxu0 0.0
    %v862 = vand.u32 %v136, 4294901760
    %863 = vmatpush1.msra.mxu0 %v862
    %864 = vmatprep.subr.mxu0 0.0
    %v865 = vand.u32 %v137, 4294901760
    %866 = vmatpush1.msra.mxu0 %v865
    %867 = vmatprep.subr.mxu0 0.0
    %868 = vmatpush1.msra.mxu0 0.0
    %869 = vmatprep.subr.mxu0 0.0
    %870 = vmatpush1.msra.mxu0 0.0
    %871 = vmatprep.subr.mxu0 0.0
    %872 = vmatpush1.msra.mxu0 0.0
    %873 = vmatprep.subr.mxu0 0.0
    %874 = vmatpush1.msra.mxu0 0.0
    %875 = vmatprep.subr.mxu0 0.0
    %876 = vmatpush1.msra.mxu0 0.0
    %877 = vmatprep.subr.mxu0 0.0
    %878 = vmatpush1.msra.mxu0 0.0
    %879 = vmatprep.subr.mxu0 0.0
    %880 = vmatpush1.msra.mxu0 0.0
    %881 = vmatprep.subr.mxu0 0.0
    %882 = vmatpush1.msra.mxu0 0.0
    %883 = vmatprep.subr.mxu0 0.0
    %884 = vmatpush1.msra.mxu0 0.0
    %885 = vmatprep.subr.mxu0 0.0
    %886 = vmatpush1.msra.mxu0 0.0
    %887 = vmatprep.subr.mxu0 0.0
    %888 = vmatpush1.msra.mxu0 0.0
    %889 = vmatprep.subr.mxu0 0.0
    %890 = vmatpush1.msra.mxu0 0.0
    %v891 = vand.u32 %v139, 4294901760
    %892 = vmatprep.mubr.f32.mxu0 %v891
    %v893 = vand.u32 %v114, 4294901760
    %894 = vmatmul.mubr.f32.gmra.mrb[0].mxu0 %v893
    %v895 = vpop.f32.mrb[0].mxu0
    %v896 = vadd.f32 %v797, %v895
    %v897 = vpop.f32.mrb[0].mxu0
    %v898 = vand.u32 %v142, 4294901760
    %899 = vmatprep.mubr.f32.mxu0 %v898
    %v900 = vand.u32 %v116, 4294901760
    %901 = vmatmul.mubr.f32.gmra.mrb[0].mxu0 %v900
    %v902 = vpop.f32.mrb[0].mxu0
    %v903 = vadd.f32 %v804, %v902
    %v904 = vpop.f32.mrb[0].mxu0
    %905 = vdwg.mxu0
    %v906 = vld [vmem:[%s4] sm:$0x1f]
    %v907 = vld [vmem:[%s4 + $0x8] sm:$0x1f]
    %vm908 = vcmask 39936
    %v910 = vsel %vm908, %v896, 0
    %v913 = vsel %vm908, %v903, 0
    %vm915 = vcmask 1044480
    %v917 = vsel %vm915, %v906, 0
    %v920 = vsel %vm915, %v907, 0
    %v922 = vand.u32 %v920, 4294901760
    %923 = vmatprep.subr.mxu0 %v922
    %v924 = vand.u32 %v917, 4294901760
    %925 = vmatpush1.msra.mxu0 %v924
    %926 = vmatprep.subr.mxu0 0.0
    %927 = vmatpush1.msra.mxu0 0.0
    %928 = vmatprep.subr.mxu0 0.0
    %929 = vmatpush1.msra.mxu0 0.0
    %930 = vmatprep.subr.mxu0 0.0
    %931 = vmatpush1.msra.mxu0 0.0
    %932 = vmatprep.subr.mxu0 0.0
    %933 = vmatpush1.msra.mxu0 0.0
    %934 = vmatprep.subr.mxu0 0.0
    %935 = vmatpush1.msra.mxu0 0.0
    %936 = vmatprep.subr.mxu0 0.0
    %937 = vmatpush1.msra.mxu0 0.0
    %938 = vmatprep.subr.mxu0 0.0
    %939 = vmatpush1.msra.mxu0 0.0
    %940 = vmatprep.subr.mxu0 0.0
    %941 = vmatpush1.msra.mxu0 0.0
    %942 = vmatprep.subr.mxu0 0.0
    %943 = vmatpush1.msra.mxu0 0.0
    %944 = vmatprep.subr.mxu0 0.0
    %945 = vmatpush1.msra.mxu0 0.0
    %946 = vmatprep.subr.mxu0 0.0
    %947 = vmatpush1.msra.mxu0 0.0
    %948 = vmatprep.subr.mxu0 0.0
    %949 = vmatpush1.msra.mxu0 0.0
    %950 = vmatprep.subr.mxu0 0.0
    %951 = vmatpush1.msra.mxu0 0.0
    %952 = vmatprep.subr.mxu0 0.0
    %953 = vmatpush1.msra.mxu0 0.0
    %954 = vmatprep.subr.mxu0 0.0
    %955 = vmatpush1.msra.mxu0 0.0
    %956 = vmatprep.subr.mxu0 0.0
    %957 = vmatpush1.msra.mxu0 0.0
    %958 = vmatprep.subr.mxu0 0.0
    %959 = vmatpush1.msra.mxu0 0.0
    %960 = vmatprep.subr.mxu0 0.0
    %961 = vmatpush1.msra.mxu0 0.0
    %962 = vmatprep.subr.mxu0 0.0
    %963 = vmatpush1.msra.mxu0 0.0
    %964 = vmatprep.subr.mxu0 0.0
    %965 = vmatpush1.msra.mxu0 0.0
    %966 = vmatprep.subr.mxu0 0.0
    %967 = vmatpush1.msra.mxu0 0.0
    %968 = vmatprep.subr.mxu0 0.0
    %969 = vmatpush1.msra.mxu0 0.0
    %970 = vmatprep.subr.mxu0 0.0
    %971 = vmatpush1.msra.mxu0 0.0
    %972 = vmatprep.subr.mxu0 0.0
    %973 = vmatpush1.msra.mxu0 0.0
    %974 = vmatprep.subr.mxu0 0.0
    %975 = vmatpush1.msra.mxu0 0.0
    %976 = vmatprep.subr.mxu0 0.0
    %977 = vmatpush1.msra.mxu0 0.0
    %978 = vmatprep.subr.mxu0 0.0
    %979 = vmatpush1.msra.mxu0 0.0
    %980 = vmatprep.subr.mxu0 0.0
    %981 = vmatpush1.msra.mxu0 0.0
    %982 = vmatprep.subr.mxu0 0.0
    %983 = vmatpush1.msra.mxu0 0.0
    %984 = vmatprep.subr.mxu0 0.0
    %985 = vmatpush1.msra.mxu0 0.0
    %986 = vmatprep.subr.mxu0 0.0
    %987 = vmatpush1.msra.mxu0 0.0
    %988 = vmatprep.mubr.f32.mxu0 0.0
    %v989 = vand.u32 %v910, 4294901760
    %v990 = vsub.f32 %v910, %v989
    %v991 = vand.u32 %v990, 4294901760
    %v992 = vsub.f32 %v990, %v991
    %v993 = vand.u32 %v992, 4294901760
    %994 = vmatmul.mubr.f32.gmra.mrb[0].mxu0 %v993
    %v995 = vpop.f32.mrb[0].mxu0
    %v996 = vadd.f32 0.0, %v995
    %v997 = vpop.f32.mrb[0].mxu0
    %v998 = vadd.f32 0.0, %v997
    %999 = vmatprep.mubr.f32.mxu0 0.0
    %v1000 = vand.u32 %v913, 4294901760
    %v1001 = vsub.f32 %v913, %v1000
    %v1002 = vand.u32 %v1001, 4294901760
    %v1003 = vsub.f32 %v1001, %v1002
    %v1004 = vand.u32 %v1003, 4294901760
    %1005 = vmatmul.mubr.f32.gmra.mrb[0].mxu0 %v1004
    %v1006 = vpop.f32.mrb[0].mxu0
    %v1007 = vadd.f32 0.0, %v1006
    %v1008 = vpop.f32.mrb[0].mxu0
    %v1009 = vadd.f32 0.0, %v1008
    %1010 = vdwg.mxu0
    %v1011 = vand.u32 %v920, 4294901760
    %v1012 = vsub.f32 %v920, %v1011
    %v1013 = vand.u32 %v1012, 4294901760
    %v1014 = vsub.f32 %v1012, %v1013
    %v1015 = vand.u32 %v1014, 4294901760
    %1016 = vmatprep.subr.mxu0 %v1015
    %v1017 = vand.u32 %v917, 4294901760
    %v1018 = vsub.f32 %v917, %v1017
    %v1019 = vand.u32 %v1018, 4294901760
    %v1020 = vsub.f32 %v1018, %v1019
    %v1021 = vand.u32 %v1020, 4294901760
    %1022 = vmatpush1.msra.mxu0 %v1021
    %1023 = vmatprep.subr.mxu0 0.0
    %1024 = vmatpush1.msra.mxu0 0.0
    %1025 = vmatprep.subr.mxu0 0.0
    %1026 = vmatpush1.msra.mxu0 0.0
    %1027 = vmatprep.subr.mxu0 0.0
    %1028 = vmatpush1.msra.mxu0 0.0
    %1029 = vmatprep.subr.mxu0 0.0
    %1030 = vmatpush1.msra.mxu0 0.0
    %1031 = vmatprep.subr.mxu0 0.0
    %1032 = vmatpush1.msra.mxu0 0.0
    %1033 = vmatprep.subr.mxu0 0.0
    %1034 = vmatpush1.msra.mxu0 0.0
    %1035 = vmatprep.subr.mxu0 0.0
    %1036 = vmatpush1.msra.mxu0 0.0
    %1037 = vmatprep.subr.mxu0 0.0
    %1038 = vmatpush1.msra.mxu0 0.0
    %1039 = vmatprep.subr.mxu0 0.0
    %1040 = vmatpush1.msra.mxu0 0.0
    %1041 = vmatprep.subr.mxu0 0.0
    %1042 = vmatpush1.msra.mxu0 0.0
    %1043 = vmatprep.subr.mxu0 0.0
    %1044 = vmatpush1.msra.mxu0 0.0
    %1045 = vmatprep.subr.mxu0 0.0
    %1046 = vmatpush1.msra.mxu0 0.0
    %1047 = vmatprep.subr.mxu0 0.0
    %1048 = vmatpush1.msra.mxu0 0.0
    %1049 = vmatprep.subr.mxu0 0.0
    %1050 = vmatpush1.msra.mxu0 0.0
    %1051 = vmatprep.subr.mxu0 0.0
    %1052 = vmatpush1.msra.mxu0 0.0
    %1053 = vmatprep.subr.mxu0 0.0
    %1054 = vmatpush1.msra.mxu0 0.0
    %1055 = vmatprep.subr.mxu0 0.0
    %1056 = vmatpush1.msra.mxu0 0.0
    %1057 = vmatprep.subr.mxu0 0.0
    %1058 = vmatpush1.msra.mxu0 0.0
    %1059 = vmatprep.subr.mxu0 0.0
    %1060 = vmatpush1.msra.mxu0 0.0
    %1061 = vmatprep.subr.mxu0 0.0
    %1062 = vmatpush1.msra.mxu0 0.0
    %1063 = vmatprep.subr.mxu0 0.0
    %1064 = vmatpush1.msra.mxu0 0.0
    %1065 = vmatprep.subr.mxu0 0.0
    %1066 = vmatpush1.msra.mxu0 0.0
    %1067 = vmatprep.subr.mxu0 0.0
    %1068 = vmatpush1.msra.mxu0 0.0
    %1069 = vmatprep.subr.mxu0 0.0
    %1070 = vmatpush1.msra.mxu0 0.0
    %1071 = vmatprep.subr.mxu0 0.0
    %1072 = vmatpush1.msra.mxu0 0.0
    %1073 = vmatprep.subr.mxu0 0.0
    %1074 = vmatpush1.msra.mxu0 0.0
    %1075 = vmatprep.subr.mxu0 0.0
    %1076 = vmatpush1.msra.mxu0 0.0
    %1077 = vmatprep.subr.mxu0 0.0
    %1078 = vmatpush1.msra.mxu0 0.0
    %1079 = vmatprep.subr.mxu0 0.0
    %1080 = vmatpush1.msra.mxu0 0.0
    %1081 = vmatprep.subr.mxu0 0.0
    %1082 = vmatpush1.msra.mxu0 0.0
    %1083 = vmatprep.subr.mxu0 0.0
    %1084 = vmatpush1.msra.mxu0 0.0
    %1085 = vmatprep.mubr.f32.mxu0 0.0
    %v1086 = vand.u32 %v910, 4294901760
    %1087 = vmatmul.mubr.f32.gmra.mrb[0].mxu0 %v1086
    %v1088 = vpop.f32.mrb[0].mxu0
    %v1089 = vadd.f32 %v996, %v1088
    %v1090 = vpop.f32.mrb[0].mxu0
    %v1091 = vadd.f32 %v998, %v1090
    %1092 = vmatprep.mubr.f32.mxu0 0.0
    %v1093 = vand.u32 %v913, 4294901760
    %1094 = vmatmul.mubr.f32.gmra.mrb[0].mxu0 %v1093
    %v1095 = vpop.f32.mrb[0].mxu0
    %v1096 = vadd.f32 %v1007, %v1095
    %v1097 = vpop.f32.mrb[0].mxu0
    %v1098 = vadd.f32 %v1009, %v1097
    %1099 = vdwg.mxu0
    %v1100 = vand.u32 %v920, 4294901760
    %v1101 = vsub.f32 %v920, %v1100
    %1102 = vmatprep.subr.mxu0 %v1101
    %v1103 = vand.u32 %v917, 4294901760
    %v1104 = vsub.f32 %v917, %v1103
    %1105 = vmatpush1.msra.mxu0 %v1104
    %1106 = vmatprep.subr.mxu0 0.0
    %1107 = vmatpush1.msra.mxu0 0.0
    %1108 = vmatprep.subr.mxu0 0.0
    %1109 = vmatpush1.msra.mxu0 0.0
    %1110 = vmatprep.subr.mxu0 0.0
    %1111 = vmatpush1.msra.mxu0 0.0
    %1112 = vmatprep.subr.mxu0 0.0
    %1113 = vmatpush1.msra.mxu0 0.0
    %1114 = vmatprep.subr.mxu0 0.0
    %1115 = vmatpush1.msra.mxu0 0.0
    %1116 = vmatprep.subr.mxu0 0.0
    %1117 = vmatpush1.msra.mxu0 0.0
    %1118 = vmatprep.subr.mxu0 0.0
    %1119 = vmatpush1.msra.mxu0 0.0
    %1120 = vmatprep.subr.mxu0 0.0
    %1121 = vmatpush1.msra.mxu0 0.0
    %1122 = vmatprep.subr.mxu0 0.0
    %1123 = vmatpush1.msra.mxu0 0.0
    %1124 = vmatprep.subr.mxu0 0.0
    %1125 = vmatpush1.msra.mxu0 0.0
    %1126 = vmatprep.subr.mxu0 0.0
    %1127 = vmatpush1.msra.mxu0 0.0
    %1128 = vmatprep.subr.mxu0 0.0
    %1129 = vmatpush1.msra.mxu0 0.0
    %1130 = vmatprep.subr.mxu0 0.0
    %1131 = vmatpush1.msra.mxu0 0.0
    %1132 = vmatprep.subr.mxu0 0.0
    %1133 = vmatpush1.msra.mxu0 0.0
    %1134 = vmatprep.subr.mxu0 0.0
    %1135 = vmatpush1.msra.mxu0 0.0
    %1136 = vmatprep.subr.mxu0 0.0
    %1137 = vmatpush1.msra.mxu0 0.0
    %1138 = vmatprep.subr.mxu0 0.0
    %1139 = vmatpush1.msra.mxu0 0.0
    %1140 = vmatprep.subr.mxu0 0.0
    %1141 = vmatpush1.msra.mxu0 0.0
    %1142 = vmatprep.subr.mxu0 0.0
    %1143 = vmatpush1.msra.mxu0 0.0
    %1144 = vmatprep.subr.mxu0 0.0
    %1145 = vmatpush1.msra.mxu0 0.0
    %1146 = vmatprep.subr.mxu0 0.0
    %1147 = vmatpush1.msra.mxu0 0.0
    %1148 = vmatprep.subr.mxu0 0.0
    %1149 = vmatpush1.msra.mxu0 0.0
    %1150 = vmatprep.subr.mxu0 0.0
    %1151 = vmatpush1.msra.mxu0 0.0
    %1152 = vmatprep.subr.mxu0 0.0
    %1153 = vmatpush1.msra.mxu0 0.0
    %1154 = vmatprep.subr.mxu0 0.0
    %1155 = vmatpush1.msra.mxu0 0.0
    %1156 = vmatprep.subr.mxu0 0.0
    %1157 = vmatpush1.msra.mxu0 0.0
    %1158 = vmatprep.subr.mxu0 0.0
    %1159 = vmatpush1.msra.mxu0 0.0
    %1160 = vmatprep.subr.mxu0 0.0
    %1161 = vmatpush1.msra.mxu0 0.0
    %1162 = vmatprep.subr.mxu0 0.0
    %1163 = vmatpush1.msra.mxu0 0.0
    %1164 = vmatprep.subr.mxu0 0.0
    %1165 = vmatpush1.msra.mxu0 0.0
    %1166 = vmatprep.subr.mxu0 0.0
    %1167 = vmatpush1.msra.mxu0 0.0
    %1168 = vmatprep.mubr.f32.mxu0 0.0
    %v1169 = vand.u32 %v910, 4294901760
    %v1170 = vsub.f32 %v910, %v1169
    %1171 = vmatmul.mubr.f32.gmra.mrb[0].mxu0 %v1170
    %v1172 = vpop.f32.mrb[0].mxu0
    %v1173 = vadd.f32 %v1089, %v1172
    %v1174 = vpop.f32.mrb[0].mxu0
    %v1175 = vadd.f32 %v1091, %v1174
    %1176 = vmatprep.mubr.f32.mxu0 0.0
    %v1177 = vand.u32 %v913, 4294901760
    %v1178 = vsub.f32 %v913, %v1177
    %1179 = vmatmul.mubr.f32.gmra.mrb[0].mxu0 %v1178
    %v1180 = vpop.f32.mrb[0].mxu0
    %v1181 = vadd.f32 %v1096, %v1180
    %v1182 = vpop.f32.mrb[0].mxu0
    %v1183 = vadd.f32 %v1098, %v1182
    %1184 = vdwg.mxu0
    %v1185 = vand.u32 %v920, 4294901760
    %1186 = vmatprep.subr.mxu0 %v1185
    %v1187 = vand.u32 %v917, 4294901760
    %1188 = vmatpush1.msra.mxu0 %v1187
    %1189 = vmatprep.subr.mxu0 0.0
    %1190 = vmatpush1.msra.mxu0 0.0
    %1191 = vmatprep.subr.mxu0 0.0
    %1192 = vmatpush1.msra.mxu0 0.0
    %1193 = vmatprep.subr.mxu0 0.0
    %1194 = vmatpush1.msra.mxu0 0.0
    %1195 = vmatprep.subr.mxu0 0.0
    %1196 = vmatpush1.msra.mxu0 0.0
    %1197 = vmatprep.subr.mxu0 0.0
    %1198 = vmatpush1.msra.mxu0 0.0
    %1199 = vmatprep.subr.mxu0 0.0
    %1200 = vmatpush1.msra.mxu0 0.0
    %1201 = vmatprep.subr.mxu0 0.0
    %1202 = vmatpush1.msra.mxu0 0.0
    %1203 = vmatprep.subr.mxu0 0.0
    %1204 = vmatpush1.msra.mxu0 0.0
    %1205 = vmatprep.subr.mxu0 0.0
    %1206 = vmatpush1.msra.mxu0 0.0
    %1207 = vmatprep.subr.mxu0 0.0
    %1208 = vmatpush1.msra.mxu0 0.0
    %1209 = vmatprep.subr.mxu0 0.0
    %1210 = vmatpush1.msra.mxu0 0.0
    %1211 = vmatprep.subr.mxu0 0.0
    %1212 = vmatpush1.msra.mxu0 0.0
    %1213 = vmatprep.subr.mxu0 0.0
    %1214 = vmatpush1.msra.mxu0 0.0
    %1215 = vmatprep.subr.mxu0 0.0
    %1216 = vmatpush1.msra.mxu0 0.0
    %1217 = vmatprep.subr.mxu0 0.0
    %1218 = vmatpush1.msra.mxu0 0.0
    %1219 = vmatprep.subr.mxu0 0.0
    %1220 = vmatpush1.msra.mxu0 0.0
    %1221 = vmatprep.subr.mxu0 0.0
    %1222 = vmatpush1.msra.mxu0 0.0
    %1223 = vmatprep.subr.mxu0 0.0
    %1224 = vmatpush1.msra.mxu0 0.0
    %1225 = vmatprep.subr.mxu0 0.0
    %1226 = vmatpush1.msra.mxu0 0.0
    %1227 = vmatprep.subr.mxu0 0.0
    %1228 = vmatpush1.msra.mxu0 0.0
    %1229 = vmatprep.subr.mxu0 0.0
    %1230 = vmatpush1.msra.mxu0 0.0
    %1231 = vmatprep.subr.mxu0 0.0
    %1232 = vmatpush1.msra.mxu0 0.0
    %1233 = vmatprep.subr.mxu0 0.0
    %1234 = vmatpush1.msra.mxu0 0.0
    %1235 = vmatprep.subr.mxu0 0.0
    %1236 = vmatpush1.msra.mxu0 0.0
    %1237 = vmatprep.subr.mxu0 0.0
    %1238 = vmatpush1.msra.mxu0 0.0
    %1239 = vmatprep.subr.mxu0 0.0
    %1240 = vmatpush1.msra.mxu0 0.0
    %1241 = vmatprep.subr.mxu0 0.0
    %1242 = vmatpush1.msra.mxu0 0.0
    %1243 = vmatprep.subr.mxu0 0.0
    %1244 = vmatpush1.msra.mxu0 0.0
    %1245 = vmatprep.subr.mxu0 0.0
    %1246 = vmatpush1.msra.mxu0 0.0
    %1247 = vmatprep.subr.mxu0 0.0
    %1248 = vmatpush1.msra.mxu0 0.0
    %1249 = vmatprep.subr.mxu0 0.0
    %1250 = vmatpush1.msra.mxu0 0.0
    %1251 = vmatprep.mubr.f32.mxu0 0.0
    %v1252 = vand.u32 %v910, 4294901760
    %v1253 = vsub.f32 %v910, %v1252
    %v1254 = vand.u32 %v1253, 4294901760
    %1255 = vmatmul.mubr.f32.gmra.mrb[0].mxu0 %v1254
    %v1256 = vpop.f32.mrb[0].mxu0
    %v1257 = vadd.f32 %v1173, %v1256
    %v1258 = vpop.f32.mrb[0].mxu0
    %v1259 = vadd.f32 %v1175, %v1258
    %1260 = vmatprep.mubr.f32.mxu0 0.0
    %v1261 = vand.u32 %v913, 4294901760
    %v1262 = vsub.f32 %v913, %v1261
    %v1263 = vand.u32 %v1262, 4294901760
    %1264 = vmatmul.mubr.f32.gmra.mrb[0].mxu0 %v1263
    %v1265 = vpop.f32.mrb[0].mxu0
    %v1266 = vadd.f32 %v1181, %v1265
    %v1267 = vpop.f32.mrb[0].mxu0
    %v1268 = vadd.f32 %v1183, %v1267
    %1269 = vdwg.mxu0
    %v1270 = vand.u32 %v920, 4294901760
    %v1271 = vsub.f32 %v920, %v1270
    %v1272 = vand.u32 %v1271, 4294901760
    %1273 = vmatprep.subr.mxu0 %v1272
    %v1274 = vand.u32 %v917, 4294901760
    %v1275 = vsub.f32 %v917, %v1274
    %v1276 = vand.u32 %v1275, 4294901760
    %1277 = vmatpush1.msra.mxu0 %v1276
    %1278 = vmatprep.subr.mxu0 0.0
    %1279 = vmatpush1.msra.mxu0 0.0
    %1280 = vmatprep.subr.mxu0 0.0
    %1281 = vmatpush1.msra.mxu0 0.0
    %1282 = vmatprep.subr.mxu0 0.0
    %1283 = vmatpush1.msra.mxu0 0.0
    %1284 = vmatprep.subr.mxu0 0.0
    %1285 = vmatpush1.msra.mxu0 0.0
    %1286 = vmatprep.subr.mxu0 0.0
    %1287 = vmatpush1.msra.mxu0 0.0
    %1288 = vmatprep.subr.mxu0 0.0
    %1289 = vmatpush1.msra.mxu0 0.0
    %1290 = vmatprep.subr.mxu0 0.0
    %1291 = vmatpush1.msra.mxu0 0.0
    %1292 = vmatprep.subr.mxu0 0.0
    %1293 = vmatpush1.msra.mxu0 0.0
    %1294 = vmatprep.subr.mxu0 0.0
    %1295 = vmatpush1.msra.mxu0 0.0
    %1296 = vmatprep.subr.mxu0 0.0
    %1297 = vmatpush1.msra.mxu0 0.0
    %1298 = vmatprep.subr.mxu0 0.0
    %1299 = vmatpush1.msra.mxu0 0.0
    %1300 = vmatprep.subr.mxu0 0.0
    %1301 = vmatpush1.msra.mxu0 0.0
    %1302 = vmatprep.subr.mxu0 0.0
    %1303 = vmatpush1.msra.mxu0 0.0
    %1304 = vmatprep.subr.mxu0 0.0
    %1305 = vmatpush1.msra.mxu0 0.0
    %1306 = vmatprep.subr.mxu0 0.0
    %1307 = vmatpush1.msra.mxu0 0.0
    %1308 = vmatprep.subr.mxu0 0.0
    %1309 = vmatpush1.msra.mxu0 0.0
    %1310 = vmatprep.subr.mxu0 0.0
    %1311 = vmatpush1.msra.mxu0 0.0
    %1312 = vmatprep.subr.mxu0 0.0
    %1313 = vmatpush1.msra.mxu0 0.0
    %1314 = vmatprep.subr.mxu0 0.0
    %1315 = vmatpush1.msra.mxu0 0.0
    %1316 = vmatprep.subr.mxu0 0.0
    %1317 = vmatpush1.msra.mxu0 0.0
    %1318 = vmatprep.subr.mxu0 0.0
    %1319 = vmatpush1.msra.mxu0 0.0
    %1320 = vmatprep.subr.mxu0 0.0
    %1321 = vmatpush1.msra.mxu0 0.0
    %1322 = vmatprep.subr.mxu0 0.0
    %1323 = vmatpush1.msra.mxu0 0.0
    %1324 = vmatprep.subr.mxu0 0.0
    %1325 = vmatpush1.msra.mxu0 0.0
    %1326 = vmatprep.subr.mxu0 0.0
    %1327 = vmatpush1.msra.mxu0 0.0
    %1328 = vmatprep.subr.mxu0 0.0
    %1329 = vmatpush1.msra.mxu0 0.0
    %1330 = vmatprep.subr.mxu0 0.0
    %1331 = vmatpush1.msra.mxu0 0.0
    %1332 = vmatprep.subr.mxu0 0.0
    %1333 = vmatpush1.msra.mxu0 0.0
    %1334 = vmatprep.subr.mxu0 0.0
    %1335 = vmatpush1.msra.mxu0 0.0
    %1336 = vmatprep.subr.mxu0 0.0
    %1337 = vmatpush1.msra.mxu0 0.0
    %1338 = vmatprep.subr.mxu0 0.0
    %1339 = vmatpush1.msra.mxu0 0.0
    %1340 = vmatprep.mubr.f32.mxu0 0.0
    %v1341 = vand.u32 %v910, 4294901760
    %1342 = vmatmul.mubr.f32.gmra.mrb[0].mxu0 %v1341
    %v1343 = vpop.f32.mrb[0].mxu0
    %v1344 = vadd.f32 %v1257, %v1343
    %v1345 = vpop.f32.mrb[0].mxu0
    %v1346 = vadd.f32 %v1259, %v1345
    %1347 = vmatprep.mubr.f32.mxu0 0.0
    %v1348 = vand.u32 %v913, 4294901760
    %1349 = vmatmul.mubr.f32.gmra.mrb[0].mxu0 %v1348
    %v1350 = vpop.f32.mrb[0].mxu0
    %v1351 = vadd.f32 %v1266, %v1350
    %v1352 = vpop.f32.mrb[0].mxu0
    %v1353 = vadd.f32 %v1268, %v1352
    %1354 = vdwg.mxu0
    %v1355 = vand.u32 %v920, 4294901760
    %1356 = vmatprep.subr.mxu0 %v1355
    %v1357 = vand.u32 %v917, 4294901760
    %1358 = vmatpush1.msra.mxu0 %v1357
    %1359 = vmatprep.subr.mxu0 0.0
    %1360 = vmatpush1.msra.mxu0 0.0
    %1361 = vmatprep.subr.mxu0 0.0
    %1362 = vmatpush1.msra.mxu0 0.0
    %1363 = vmatprep.subr.mxu0 0.0
    %1364 = vmatpush1.msra.mxu0 0.0
    %1365 = vmatprep.subr.mxu0 0.0
    %1366 = vmatpush1.msra.mxu0 0.0
    %1367 = vmatprep.subr.mxu0 0.0
    %1368 = vmatpush1.msra.mxu0 0.0
    %1369 = vmatprep.subr.mxu0 0.0
    %1370 = vmatpush1.msra.mxu0 0.0
    %1371 = vmatprep.subr.mxu0 0.0
    %1372 = vmatpush1.msra.mxu0 0.0
    %1373 = vmatprep.subr.mxu0 0.0
    %1374 = vmatpush1.msra.mxu0 0.0
    %1375 = vmatprep.subr.mxu0 0.0
    %1376 = vmatpush1.msra.mxu0 0.0
    %1377 = vmatprep.subr.mxu0 0.0
    %1378 = vmatpush1.msra.mxu0 0.0
    %1379 = vmatprep.subr.mxu0 0.0
    %1380 = vmatpush1.msra.mxu0 0.0
    %1381 = vmatprep.subr.mxu0 0.0
    %1382 = vmatpush1.msra.mxu0 0.0
    %1383 = vmatprep.subr.mxu0 0.0
    %1384 = vmatpush1.msra.mxu0 0.0
    %1385 = vmatprep.subr.mxu0 0.0
    %1386 = vmatpush1.msra.mxu0 0.0
    %1387 = vmatprep.subr.mxu0 0.0
    %1388 = vmatpush1.msra.mxu0 0.0
    %1389 = vmatprep.subr.mxu0 0.0
    %1390 = vmatpush1.msra.mxu0 0.0
    %1391 = vmatprep.subr.mxu0 0.0
    %1392 = vmatpush1.msra.mxu0 0.0
    %1393 = vmatprep.subr.mxu0 0.0
    %1394 = vmatpush1.msra.mxu0 0.0
    %1395 = vmatprep.subr.mxu0 0.0
    %1396 = vmatpush1.msra.mxu0 0.0
    %1397 = vmatprep.subr.mxu0 0.0
    %1398 = vmatpush1.msra.mxu0 0.0
    %1399 = vmatprep.subr.mxu0 0.0
    %1400 = vmatpush1.msra.mxu0 0.0
    %1401 = vmatprep.subr.mxu0 0.0
    %1402 = vmatpush1.msra.mxu0 0.0
    %1403 = vmatprep.subr.mxu0 0.0
    %1404 = vmatpush1.msra.mxu0 0.0
    %1405 = vmatprep.subr.mxu0 0.0
    %1406 = vmatpush1.msra.mxu0 0.0
    %1407 = vmatprep.subr.mxu0 0.0
    %1408 = vmatpush1.msra.mxu0 0.0
    %1409 = vmatprep.subr.mxu0 0.0
    %1410 = vmatpush1.msra.mxu0 0.0
    %1411 = vmatprep.subr.mxu0 0.0
    %1412 = vmatpush1.msra.mxu0 0.0
    %1413 = vmatprep.subr.mxu0 0.0
    %1414 = vmatpush1.msra.mxu0 0.0
    %1415 = vmatprep.subr.mxu0 0.0
    %1416 = vmatpush1.msra.mxu0 0.0
    %1417 = vmatprep.subr.mxu0 0.0
    %1418 = vmatpush1.msra.mxu0 0.0
    %1419 = vmatprep.subr.mxu0 0.0
    %1420 = vmatpush1.msra.mxu0 0.0
    %1421 = vmatprep.mubr.f32.mxu0 0.0
    %v1422 = vand.u32 %v910, 4294901760
    %1423 = vmatmul.mubr.f32.gmra.mrb[0].mxu0 %v1422
    %v1424 = vpop.f32.mrb[0].mxu0
    %v1425 = vadd.f32 %v1344, %v1424
    %v1426 = vpop.f32.mrb[0].mxu0
    %v1427 = vadd.f32 %v1346, %v1426
    %1428 = vmatprep.mubr.f32.mxu0 0.0
    %v1429 = vand.u32 %v913, 4294901760
    %1430 = vmatmul.mubr.f32.gmra.mrb[0].mxu0 %v1429
    %v1431 = vpop.f32.mrb[0].mxu0
    %v1432 = vadd.f32 %v1351, %v1431
    %v1433 = vpop.f32.mrb[0].mxu0
    %v1434 = vadd.f32 %v1353, %v1433
    %1435 = vdwg.mxu0
    %v1436 = vsub.f32 %v114, %v1425
    %v1437 = vsub.f32 %v115, %v1427
    %v1438 = vsub.f32 %v116, %v1432
    %v1439 = vsub.f32 %v117, %v1434
    %v1440 = vmul.f32 %v1436, %v1436
    %v1441 = vmul.f32 %v1437, %v1437
    %v1442 = vmul.f32 %v1438, %v1438
    %v1443 = vmul.f32 %v1439, %v1439
    %v1445 = vsel %vm67, %v1441, 0
    %v1448 = vsel %vm67, %v1443, 0
    %1450 = vmatprep.subr.mxu0 0.0
    %v1451 = vand.u32 %v118, 4294901760
    %1452 = vmatpush1.msra.mxu0 %v1451
    %1453 = vmatprep.subr.mxu0 0.0
    %v1454 = vand.u32 %v119, 4294901760
    %1455 = vmatpush1.msra.mxu0 %v1454
    %1456 = vmatprep.subr.mxu0 0.0
    %v1457 = vand.u32 %v120, 4294901760
    %1458 = vmatpush1.msra.mxu0 %v1457
    %1459 = vmatprep.subr.mxu0 0.0
    %v1460 = vand.u32 %v121, 4294901760
    %1461 = vmatpush1.msra.mxu0 %v1460
    %1462 = vmatprep.subr.mxu0 0.0
    %v1463 = vand.u32 %v122, 4294901760
    %1464 = vmatpush1.msra.mxu0 %v1463
    %1465 = vmatprep.subr.mxu0 0.0
    %v1466 = vand.u32 %v123, 4294901760
    %1467 = vmatpush1.msra.mxu0 %v1466
    %1468 = vmatprep.subr.mxu0 0.0
    %v1469 = vand.u32 %v124, 4294901760
    %1470 = vmatpush1.msra.mxu0 %v1469
    %1471 = vmatprep.subr.mxu0 0.0
    %v1472 = vand.u32 %v125, 4294901760
    %1473 = vmatpush1.msra.mxu0 %v1472
    %1474 = vmatprep.subr.mxu0 0.0
    %v1475 = vand.u32 %v126, 4294901760
    %1476 = vmatpush1.msra.mxu0 %v1475
    %1477 = vmatprep.subr.mxu0 0.0
    %v1478 = vand.u32 %v127, 4294901760
    %1479 = vmatpush1.msra.mxu0 %v1478
    %1480 = vmatprep.subr.mxu0 0.0
    %v1481 = vand.u32 %v128, 4294901760
    %1482 = vmatpush1.msra.mxu0 %v1481
    %1483 = vmatprep.subr.mxu0 0.0
    %v1484 = vand.u32 %v129, 4294901760
    %1485 = vmatpush1.msra.mxu0 %v1484
    %1486 = vmatprep.subr.mxu0 0.0
    %v1487 = vand.u32 %v130, 4294901760
    %1488 = vmatpush1.msra.mxu0 %v1487
    %1489 = vmatprep.subr.mxu0 0.0
    %v1490 = vand.u32 %v131, 4294901760
    %1491 = vmatpush1.msra.mxu0 %v1490
    %1492 = vmatprep.subr.mxu0 0.0
    %v1493 = vand.u32 %v132, 4294901760
    %1494 = vmatpush1.msra.mxu0 %v1493
    %1495 = vmatprep.subr.mxu0 0.0
    %v1496 = vand.u32 %v133, 4294901760
    %1497 = vmatpush1.msra.mxu0 %v1496
    %1498 = vmatprep.subr.mxu0 0.0
    %v1499 = vand.u32 %v134, 4294901760
    %1500 = vmatpush1.msra.mxu0 %v1499
    %1501 = vmatprep.subr.mxu0 0.0
    %v1502 = vand.u32 %v135, 4294901760
    %1503 = vmatpush1.msra.mxu0 %v1502
    %1504 = vmatprep.subr.mxu0 0.0
    %v1505 = vand.u32 %v136, 4294901760
    %1506 = vmatpush1.msra.mxu0 %v1505
    %1507 = vmatprep.subr.mxu0 0.0
    %v1508 = vand.u32 %v137, 4294901760
    %1509 = vmatpush1.msra.mxu0 %v1508
    %1510 = vmatprep.subr.mxu0 0.0
    %1511 = vmatpush1.msra.mxu0 0.0
    %1512 = vmatprep.subr.mxu0 0.0
    %1513 = vmatpush1.msra.mxu0 0.0
    %1514 = vmatprep.subr.mxu0 0.0
    %1515 = vmatpush1.msra.mxu0 0.0
    %1516 = vmatprep.subr.mxu0 0.0
    %1517 = vmatpush1.msra.mxu0 0.0
    %1518 = vmatprep.subr.mxu0 0.0
    %1519 = vmatpush1.msra.mxu0 0.0
    %1520 = vmatprep.subr.mxu0 0.0
    %1521 = vmatpush1.msra.mxu0 0.0
    %1522 = vmatprep.subr.mxu0 0.0
    %1523 = vmatpush1.msra.mxu0 0.0
    %1524 = vmatprep.subr.mxu0 0.0
    %1525 = vmatpush1.msra.mxu0 0.0
    %1526 = vmatprep.subr.mxu0 0.0
    %1527 = vmatpush1.msra.mxu0 0.0
    %1528 = vmatprep.subr.mxu0 0.0
    %1529 = vmatpush1.msra.mxu0 0.0
    %1530 = vmatprep.subr.mxu0 0.0
    %1531 = vmatpush1.msra.mxu0 0.0
    %1532 = vmatprep.subr.mxu0 0.0
    %1533 = vmatpush1.msra.mxu0 0.0
    %v1534 = vand.u32 %v1445, 4294901760
    %v1535 = vsub.f32 %v1445, %v1534
    %v1536 = vand.u32 %v1535, 4294901760
    %v1537 = vsub.f32 %v1535, %v1536
    %v1538 = vand.u32 %v1537, 4294901760
    %1539 = vmatprep.mubr.f32.mxu0 %v1538
    %v1540 = vand.u32 %v1440, 4294901760
    %v1541 = vsub.f32 %v1440, %v1540
    %v1542 = vand.u32 %v1541, 4294901760
    %v1543 = vsub.f32 %v1541, %v1542
    %v1544 = vand.u32 %v1543, 4294901760
    %1545 = vmatmul.mubr.f32.gmra.mrb[0].mxu0 %v1544
    %v1546 = vpop.f32.mrb[0].mxu0
    %v1547 = vadd.f32 1e-05, %v1546
    %v1548 = vpop.f32.mrb[0].mxu0
    %v1549 = vand.u32 %v1448, 4294901760
    %v1550 = vsub.f32 %v1448, %v1549
    %v1551 = vand.u32 %v1550, 4294901760
    %v1552 = vsub.f32 %v1550, %v1551
    %v1553 = vand.u32 %v1552, 4294901760
    %1554 = vmatprep.mubr.f32.mxu0 %v1553
    %v1555 = vand.u32 %v1442, 4294901760
    %v1556 = vsub.f32 %v1442, %v1555
    %v1557 = vand.u32 %v1556, 4294901760
    %v1558 = vsub.f32 %v1556, %v1557
    %v1559 = vand.u32 %v1558, 4294901760
    %1560 = vmatmul.mubr.f32.gmra.mrb[0].mxu0 %v1559
    %v1561 = vpop.f32.mrb[0].mxu0
    %v1562 = vadd.f32 1e-05, %v1561
    %v1563 = vpop.f32.mrb[0].mxu0
    %1564 = vdwg.mxu0
    %1565 = vmatprep.subr.mxu0 0.0
    %v1566 = vand.u32 %v118, 4294901760
    %v1567 = vsub.f32 %v118, %v1566
    %v1568 = vand.u32 %v1567, 4294901760
    %v1569 = vsub.f32 %v1567, %v1568
    %v1570 = vand.u32 %v1569, 4294901760
    %1571 = vmatpush1.msra.mxu0 %v1570
    %1572 = vmatprep.subr.mxu0 0.0
    %v1573 = vand.u32 %v119, 4294901760
    %v1574 = vsub.f32 %v119, %v1573
    %v1575 = vand.u32 %v1574, 4294901760
    %v1576 = vsub.f32 %v1574, %v1575
    %v1577 = vand.u32 %v1576, 4294901760
    %1578 = vmatpush1.msra.mxu0 %v1577
    %1579 = vmatprep.subr.mxu0 0.0
    %v1580 = vand.u32 %v120, 4294901760
    %v1581 = vsub.f32 %v120, %v1580
    %v1582 = vand.u32 %v1581, 4294901760
    %v1583 = vsub.f32 %v1581, %v1582
    %v1584 = vand.u32 %v1583, 4294901760
    %1585 = vmatpush1.msra.mxu0 %v1584
    %1586 = vmatprep.subr.mxu0 0.0
    %v1587 = vand.u32 %v121, 4294901760
    %v1588 = vsub.f32 %v121, %v1587
    %v1589 = vand.u32 %v1588, 4294901760
    %v1590 = vsub.f32 %v1588, %v1589
    %v1591 = vand.u32 %v1590, 4294901760
    %1592 = vmatpush1.msra.mxu0 %v1591
    %1593 = vmatprep.subr.mxu0 0.0
    %v1594 = vand.u32 %v122, 4294901760
    %v1595 = vsub.f32 %v122, %v1594
    %v1596 = vand.u32 %v1595, 4294901760
    %v1597 = vsub.f32 %v1595, %v1596
    %v1598 = vand.u32 %v1597, 4294901760
    %1599 = vmatpush1.msra.mxu0 %v1598
    %1600 = vmatprep.subr.mxu0 0.0
    %v1601 = vand.u32 %v123, 4294901760
    %v1602 = vsub.f32 %v123, %v1601
    %v1603 = vand.u32 %v1602, 4294901760
    %v1604 = vsub.f32 %v1602, %v1603
    %v1605 = vand.u32 %v1604, 4294901760
    %1606 = vmatpush1.msra.mxu0 %v1605
    %1607 = vmatprep.subr.mxu0 0.0
    %v1608 = vand.u32 %v124, 4294901760
    %v1609 = vsub.f32 %v124, %v1608
    %v1610 = vand.u32 %v1609, 4294901760
    %v1611 = vsub.f32 %v1609, %v1610
    %v1612 = vand.u32 %v1611, 4294901760
    %1613 = vmatpush1.msra.mxu0 %v1612
    %1614 = vmatprep.subr.mxu0 0.0
    %v1615 = vand.u32 %v125, 4294901760
    %v1616 = vsub.f32 %v125, %v1615
    %v1617 = vand.u32 %v1616, 4294901760
    %v1618 = vsub.f32 %v1616, %v1617
    %v1619 = vand.u32 %v1618, 4294901760
    %1620 = vmatpush1.msra.mxu0 %v1619
    %1621 = vmatprep.subr.mxu0 0.0
    %v1622 = vand.u32 %v126, 4294901760
    %v1623 = vsub.f32 %v126, %v1622
    %v1624 = vand.u32 %v1623, 4294901760
    %v1625 = vsub.f32 %v1623, %v1624
    %v1626 = vand.u32 %v1625, 4294901760
    %1627 = vmatpush1.msra.mxu0 %v1626
    %1628 = vmatprep.subr.mxu0 0.0
    %v1629 = vand.u32 %v127, 4294901760
    %v1630 = vsub.f32 %v127, %v1629
    %v1631 = vand.u32 %v1630, 4294901760
    %v1632 = vsub.f32 %v1630, %v1631
    %v1633 = vand.u32 %v1632, 4294901760
    %1634 = vmatpush1.msra.mxu0 %v1633
    %1635 = vmatprep.subr.mxu0 0.0
    %v1636 = vand.u32 %v128, 4294901760
    %v1637 = vsub.f32 %v128, %v1636
    %v1638 = vand.u32 %v1637, 4294901760
    %v1639 = vsub.f32 %v1637, %v1638
    %v1640 = vand.u32 %v1639, 4294901760
    %1641 = vmatpush1.msra.mxu0 %v1640
    %1642 = vmatprep.subr.mxu0 0.0
    %v1643 = vand.u32 %v129, 4294901760
    %v1644 = vsub.f32 %v129, %v1643
    %v1645 = vand.u32 %v1644, 4294901760
    %v1646 = vsub.f32 %v1644, %v1645
    %v1647 = vand.u32 %v1646, 4294901760
    %1648 = vmatpush1.msra.mxu0 %v1647
    %1649 = vmatprep.subr.mxu0 0.0
    %v1650 = vand.u32 %v130, 4294901760
    %v1651 = vsub.f32 %v130, %v1650
    %v1652 = vand.u32 %v1651, 4294901760
    %v1653 = vsub.f32 %v1651, %v1652
    %v1654 = vand.u32 %v1653, 4294901760
    %1655 = vmatpush1.msra.mxu0 %v1654
    %1656 = vmatprep.subr.mxu0 0.0
    %v1657 = vand.u32 %v131, 4294901760
    %v1658 = vsub.f32 %v131, %v1657
    %v1659 = vand.u32 %v1658, 4294901760
    %v1660 = vsub.f32 %v1658, %v1659
    %v1661 = vand.u32 %v1660, 4294901760
    %1662 = vmatpush1.msra.mxu0 %v1661
    %1663 = vmatprep.subr.mxu0 0.0
    %v1664 = vand.u32 %v132, 4294901760
    %v1665 = vsub.f32 %v132, %v1664
    %v1666 = vand.u32 %v1665, 4294901760
    %v1667 = vsub.f32 %v1665, %v1666
    %v1668 = vand.u32 %v1667, 4294901760
    %1669 = vmatpush1.msra.mxu0 %v1668
    %1670 = vmatprep.subr.mxu0 0.0
    %v1671 = vand.u32 %v133, 4294901760
    %v1672 = vsub.f32 %v133, %v1671
    %v1673 = vand.u32 %v1672, 4294901760
    %v1674 = vsub.f32 %v1672, %v1673
    %v1675 = vand.u32 %v1674, 4294901760
    %1676 = vmatpush1.msra.mxu0 %v1675
    %1677 = vmatprep.subr.mxu0 0.0
    %v1678 = vand.u32 %v134, 4294901760
    %v1679 = vsub.f32 %v134, %v1678
    %v1680 = vand.u32 %v1679, 4294901760
    %v1681 = vsub.f32 %v1679, %v1680
    %v1682 = vand.u32 %v1681, 4294901760
    %1683 = vmatpush1.msra.mxu0 %v1682
    %1684 = vmatprep.subr.mxu0 0.0
    %v1685 = vand.u32 %v135, 4294901760
    %v1686 = vsub.f32 %v135, %v1685
    %v1687 = vand.u32 %v1686, 4294901760
    %v1688 = vsub.f32 %v1686, %v1687
    %v1689 = vand.u32 %v1688, 4294901760
    %1690 = vmatpush1.msra.mxu0 %v1689
    %1691 = vmatprep.subr.mxu0 0.0
    %v1692 = vand.u32 %v136, 4294901760
    %v1693 = vsub.f32 %v136, %v1692
    %v1694 = vand.u32 %v1693, 4294901760
    %v1695 = vsub.f32 %v1693, %v1694
    %v1696 = vand.u32 %v1695, 4294901760
    %1697 = vmatpush1.msra.mxu0 %v1696
    %1698 = vmatprep.subr.mxu0 0.0
    %v1699 = vand.u32 %v137, 4294901760
    %v1700 = vsub.f32 %v137, %v1699
    %v1701 = vand.u32 %v1700, 4294901760
    %v1702 = vsub.f32 %v1700, %v1701
    %v1703 = vand.u32 %v1702, 4294901760
    %1704 = vmatpush1.msra.mxu0 %v1703
    %1705 = vmatprep.subr.mxu0 0.0
    %1706 = vmatpush1.msra.mxu0 0.0
    %1707 = vmatprep.subr.mxu0 0.0
    %1708 = vmatpush1.msra.mxu0 0.0
    %1709 = vmatprep.subr.mxu0 0.0
    %1710 = vmatpush1.msra.mxu0 0.0
    %1711 = vmatprep.subr.mxu0 0.0
    %1712 = vmatpush1.msra.mxu0 0.0
    %1713 = vmatprep.subr.mxu0 0.0
    %1714 = vmatpush1.msra.mxu0 0.0
    %1715 = vmatprep.subr.mxu0 0.0
    %1716 = vmatpush1.msra.mxu0 0.0
    %1717 = vmatprep.subr.mxu0 0.0
    %1718 = vmatpush1.msra.mxu0 0.0
    %1719 = vmatprep.subr.mxu0 0.0
    %1720 = vmatpush1.msra.mxu0 0.0
    %1721 = vmatprep.subr.mxu0 0.0
    %1722 = vmatpush1.msra.mxu0 0.0
    %1723 = vmatprep.subr.mxu0 0.0
    %1724 = vmatpush1.msra.mxu0 0.0
    %1725 = vmatprep.subr.mxu0 0.0
    %1726 = vmatpush1.msra.mxu0 0.0
    %1727 = vmatprep.subr.mxu0 0.0
    %1728 = vmatpush1.msra.mxu0 0.0
    %v1729 = vand.u32 %v1445, 4294901760
    %1730 = vmatprep.mubr.f32.mxu0 %v1729
    %v1731 = vand.u32 %v1440, 4294901760
    %1732 = vmatmul.mubr.f32.gmra.mrb[0].mxu0 %v1731
    %v1733 = vpop.f32.mrb[0].mxu0
    %v1734 = vadd.f32 %v1547, %v1733
    %v1735 = vpop.f32.mrb[0].mxu0
    %v1736 = vand.u32 %v1448, 4294901760
    %1737 = vmatprep.mubr.f32.mxu0 %v1736
    %v1738 = vand.u32 %v1442, 4294901760
    %1739 = vmatmul.mubr.f32.gmra.mrb[0].mxu0 %v1738
    %v1740 = vpop.f32.mrb[0].mxu0
    %v1741 = vadd.f32 %v1562, %v1740
    %v1742 = vpop.f32.mrb[0].mxu0
    %1743 = vdwg.mxu0
    %1744 = vmatprep.subr.mxu0 0.0
    %v1745 = vand.u32 %v118, 4294901760
    %v1746 = vsub.f32 %v118, %v1745
    %1747 = vmatpush1.msra.mxu0 %v1746
    %1748 = vmatprep.subr.mxu0 0.0
    %v1749 = vand.u32 %v119, 4294901760
    %v1750 = vsub.f32 %v119, %v1749
    %1751 = vmatpush1.msra.mxu0 %v1750
    %1752 = vmatprep.subr.mxu0 0.0
    %v1753 = vand.u32 %v120, 4294901760
    %v1754 = vsub.f32 %v120, %v1753
    %1755 = vmatpush1.msra.mxu0 %v1754
    %1756 = vmatprep.subr.mxu0 0.0
    %v1757 = vand.u32 %v121, 4294901760
    %v1758 = vsub.f32 %v121, %v1757
    %1759 = vmatpush1.msra.mxu0 %v1758
    %1760 = vmatprep.subr.mxu0 0.0
    %v1761 = vand.u32 %v122, 4294901760
    %v1762 = vsub.f32 %v122, %v1761
    %1763 = vmatpush1.msra.mxu0 %v1762
    %1764 = vmatprep.subr.mxu0 0.0
    %v1765 = vand.u32 %v123, 4294901760
    %v1766 = vsub.f32 %v123, %v1765
    %1767 = vmatpush1.msra.mxu0 %v1766
    %1768 = vmatprep.subr.mxu0 0.0
    %v1769 = vand.u32 %v124, 4294901760
    %v1770 = vsub.f32 %v124, %v1769
    %1771 = vmatpush1.msra.mxu0 %v1770
    %1772 = vmatprep.subr.mxu0 0.0
    %v1773 = vand.u32 %v125, 4294901760
    %v1774 = vsub.f32 %v125, %v1773
    %1775 = vmatpush1.msra.mxu0 %v1774
    %1776 = vmatprep.subr.mxu0 0.0
    %v1777 = vand.u32 %v126, 4294901760
    %v1778 = vsub.f32 %v126, %v1777
    %1779 = vmatpush1.msra.mxu0 %v1778
    %1780 = vmatprep.subr.mxu0 0.0
    %v1781 = vand.u32 %v127, 4294901760
    %v1782 = vsub.f32 %v127, %v1781
    %1783 = vmatpush1.msra.mxu0 %v1782
    %1784 = vmatprep.subr.mxu0 0.0
    %v1785 = vand.u32 %v128, 4294901760
    %v1786 = vsub.f32 %v128, %v1785
    %1787 = vmatpush1.msra.mxu0 %v1786
    %1788 = vmatprep.subr.mxu0 0.0
    %v1789 = vand.u32 %v129, 4294901760
    %v1790 = vsub.f32 %v129, %v1789
    %1791 = vmatpush1.msra.mxu0 %v1790
    %1792 = vmatprep.subr.mxu0 0.0
    %v1793 = vand.u32 %v130, 4294901760
    %v1794 = vsub.f32 %v130, %v1793
    %1795 = vmatpush1.msra.mxu0 %v1794
    %1796 = vmatprep.subr.mxu0 0.0
    %v1797 = vand.u32 %v131, 4294901760
    %v1798 = vsub.f32 %v131, %v1797
    %1799 = vmatpush1.msra.mxu0 %v1798
    %1800 = vmatprep.subr.mxu0 0.0
    %v1801 = vand.u32 %v132, 4294901760
    %v1802 = vsub.f32 %v132, %v1801
    %1803 = vmatpush1.msra.mxu0 %v1802
    %1804 = vmatprep.subr.mxu0 0.0
    %v1805 = vand.u32 %v133, 4294901760
    %v1806 = vsub.f32 %v133, %v1805
    %1807 = vmatpush1.msra.mxu0 %v1806
    %1808 = vmatprep.subr.mxu0 0.0
    %v1809 = vand.u32 %v134, 4294901760
    %v1810 = vsub.f32 %v134, %v1809
    %1811 = vmatpush1.msra.mxu0 %v1810
    %1812 = vmatprep.subr.mxu0 0.0
    %v1813 = vand.u32 %v135, 4294901760
    %v1814 = vsub.f32 %v135, %v1813
    %1815 = vmatpush1.msra.mxu0 %v1814
    %1816 = vmatprep.subr.mxu0 0.0
    %v1817 = vand.u32 %v136, 4294901760
    %v1818 = vsub.f32 %v136, %v1817
    %1819 = vmatpush1.msra.mxu0 %v1818
    %1820 = vmatprep.subr.mxu0 0.0
    %v1821 = vand.u32 %v137, 4294901760
    %v1822 = vsub.f32 %v137, %v1821
    %1823 = vmatpush1.msra.mxu0 %v1822
    %1824 = vmatprep.subr.mxu0 0.0
    %1825 = vmatpush1.msra.mxu0 0.0
    %1826 = vmatprep.subr.mxu0 0.0
    %1827 = vmatpush1.msra.mxu0 0.0
    %1828 = vmatprep.subr.mxu0 0.0
    %1829 = vmatpush1.msra.mxu0 0.0
    %1830 = vmatprep.subr.mxu0 0.0
    %1831 = vmatpush1.msra.mxu0 0.0
    %1832 = vmatprep.subr.mxu0 0.0
    %1833 = vmatpush1.msra.mxu0 0.0
    %1834 = vmatprep.subr.mxu0 0.0
    %1835 = vmatpush1.msra.mxu0 0.0
    %1836 = vmatprep.subr.mxu0 0.0
    %1837 = vmatpush1.msra.mxu0 0.0
    %1838 = vmatprep.subr.mxu0 0.0
    %1839 = vmatpush1.msra.mxu0 0.0
    %1840 = vmatprep.subr.mxu0 0.0
    %1841 = vmatpush1.msra.mxu0 0.0
    %1842 = vmatprep.subr.mxu0 0.0
    %1843 = vmatpush1.msra.mxu0 0.0
    %1844 = vmatprep.subr.mxu0 0.0
    %1845 = vmatpush1.msra.mxu0 0.0
    %1846 = vmatprep.subr.mxu0 0.0
    %1847 = vmatpush1.msra.mxu0 0.0
    %v1848 = vand.u32 %v1445, 4294901760
    %v1849 = vsub.f32 %v1445, %v1848
    %1850 = vmatprep.mubr.f32.mxu0 %v1849
    %v1851 = vand.u32 %v1440, 4294901760
    %v1852 = vsub.f32 %v1440, %v1851
    %1853 = vmatmul.mubr.f32.gmra.mrb[0].mxu0 %v1852
    %v1854 = vpop.f32.mrb[0].mxu0
    %v1855 = vadd.f32 %v1734, %v1854
    %v1856 = vpop.f32.mrb[0].mxu0
    %v1857 = vand.u32 %v1448, 4294901760
    %v1858 = vsub.f32 %v1448, %v1857
    %1859 = vmatprep.mubr.f32.mxu0 %v1858
    %v1860 = vand.u32 %v1442, 4294901760
    %v1861 = vsub.f32 %v1442, %v1860
    %1862 = vmatmul.mubr.f32.gmra.mrb[0].mxu0 %v1861
    %v1863 = vpop.f32.mrb[0].mxu0
    %v1864 = vadd.f32 %v1741, %v1863
    %v1865 = vpop.f32.mrb[0].mxu0
    %1866 = vdwg.mxu0
    %1867 = vmatprep.subr.mxu0 0.0
    %v1868 = vand.u32 %v118, 4294901760
    %1869 = vmatpush1.msra.mxu0 %v1868
    %1870 = vmatprep.subr.mxu0 0.0
    %v1871 = vand.u32 %v119, 4294901760
    %1872 = vmatpush1.msra.mxu0 %v1871
    %1873 = vmatprep.subr.mxu0 0.0
    %v1874 = vand.u32 %v120, 4294901760
    %1875 = vmatpush1.msra.mxu0 %v1874
    %1876 = vmatprep.subr.mxu0 0.0
    %v1877 = vand.u32 %v121, 4294901760
    %1878 = vmatpush1.msra.mxu0 %v1877
    %1879 = vmatprep.subr.mxu0 0.0
    %v1880 = vand.u32 %v122, 4294901760
    %1881 = vmatpush1.msra.mxu0 %v1880
    %1882 = vmatprep.subr.mxu0 0.0
    %v1883 = vand.u32 %v123, 4294901760
    %1884 = vmatpush1.msra.mxu0 %v1883
    %1885 = vmatprep.subr.mxu0 0.0
    %v1886 = vand.u32 %v124, 4294901760
    %1887 = vmatpush1.msra.mxu0 %v1886
    %1888 = vmatprep.subr.mxu0 0.0
    %v1889 = vand.u32 %v125, 4294901760
    %1890 = vmatpush1.msra.mxu0 %v1889
    %1891 = vmatprep.subr.mxu0 0.0
    %v1892 = vand.u32 %v126, 4294901760
    %1893 = vmatpush1.msra.mxu0 %v1892
    %1894 = vmatprep.subr.mxu0 0.0
    %v1895 = vand.u32 %v127, 4294901760
    %1896 = vmatpush1.msra.mxu0 %v1895
    %1897 = vmatprep.subr.mxu0 0.0
    %v1898 = vand.u32 %v128, 4294901760
    %1899 = vmatpush1.msra.mxu0 %v1898
    %1900 = vmatprep.subr.mxu0 0.0
    %v1901 = vand.u32 %v129, 4294901760
    %1902 = vmatpush1.msra.mxu0 %v1901
    %1903 = vmatprep.subr.mxu0 0.0
    %v1904 = vand.u32 %v130, 4294901760
    %1905 = vmatpush1.msra.mxu0 %v1904
    %1906 = vmatprep.subr.mxu0 0.0
    %v1907 = vand.u32 %v131, 4294901760
    %1908 = vmatpush1.msra.mxu0 %v1907
    %1909 = vmatprep.subr.mxu0 0.0
    %v1910 = vand.u32 %v132, 4294901760
    %1911 = vmatpush1.msra.mxu0 %v1910
    %1912 = vmatprep.subr.mxu0 0.0
    %v1913 = vand.u32 %v133, 4294901760
    %1914 = vmatpush1.msra.mxu0 %v1913
    %1915 = vmatprep.subr.mxu0 0.0
    %v1916 = vand.u32 %v134, 4294901760
    %1917 = vmatpush1.msra.mxu0 %v1916
    %1918 = vmatprep.subr.mxu0 0.0
    %v1919 = vand.u32 %v135, 4294901760
    %1920 = vmatpush1.msra.mxu0 %v1919
    %1921 = vmatprep.subr.mxu0 0.0
    %v1922 = vand.u32 %v136, 4294901760
    %1923 = vmatpush1.msra.mxu0 %v1922
    %1924 = vmatprep.subr.mxu0 0.0
    %v1925 = vand.u32 %v137, 4294901760
    %1926 = vmatpush1.msra.mxu0 %v1925
    %1927 = vmatprep.subr.mxu0 0.0
    %1928 = vmatpush1.msra.mxu0 0.0
    %1929 = vmatprep.subr.mxu0 0.0
    %1930 = vmatpush1.msra.mxu0 0.0
    %1931 = vmatprep.subr.mxu0 0.0
    %1932 = vmatpush1.msra.mxu0 0.0
    %1933 = vmatprep.subr.mxu0 0.0
    %1934 = vmatpush1.msra.mxu0 0.0
    %1935 = vmatprep.subr.mxu0 0.0
    %1936 = vmatpush1.msra.mxu0 0.0
    %1937 = vmatprep.subr.mxu0 0.0
    %1938 = vmatpush1.msra.mxu0 0.0
    %1939 = vmatprep.subr.mxu0 0.0
    %1940 = vmatpush1.msra.mxu0 0.0
    %1941 = vmatprep.subr.mxu0 0.0
    %1942 = vmatpush1.msra.mxu0 0.0
    %1943 = vmatprep.subr.mxu0 0.0
    %1944 = vmatpush1.msra.mxu0 0.0
    %1945 = vmatprep.subr.mxu0 0.0
    %1946 = vmatpush1.msra.mxu0 0.0
    %1947 = vmatprep.subr.mxu0 0.0
    %1948 = vmatpush1.msra.mxu0 0.0
    %1949 = vmatprep.subr.mxu0 0.0
    %1950 = vmatpush1.msra.mxu0 0.0
    %v1951 = vand.u32 %v1445, 4294901760
    %v1952 = vsub.f32 %v1445, %v1951
    %v1953 = vand.u32 %v1952, 4294901760
    %1954 = vmatprep.mubr.f32.mxu0 %v1953
    %v1955 = vand.u32 %v1440, 4294901760
    %v1956 = vsub.f32 %v1440, %v1955
    %v1957 = vand.u32 %v1956, 4294901760
    %1958 = vmatmul.mubr.f32.gmra.mrb[0].mxu0 %v1957
    %v1959 = vpop.f32.mrb[0].mxu0
    %v1960 = vadd.f32 %v1855, %v1959
    %v1961 = vpop.f32.mrb[0].mxu0
    %v1962 = vand.u32 %v1448, 4294901760
    %v1963 = vsub.f32 %v1448, %v1962
    %v1964 = vand.u32 %v1963, 4294901760
    %1965 = vmatprep.mubr.f32.mxu0 %v1964
    %v1966 = vand.u32 %v1442, 4294901760
    %v1967 = vsub.f32 %v1442, %v1966
    %v1968 = vand.u32 %v1967, 4294901760
    %1969 = vmatmul.mubr.f32.gmra.mrb[0].mxu0 %v1968
    %v1970 = vpop.f32.mrb[0].mxu0
    %v1971 = vadd.f32 %v1864, %v1970
    %v1972 = vpop.f32.mrb[0].mxu0
    %1973 = vdwg.mxu0
    %1974 = vmatprep.subr.mxu0 0.0
    %v1975 = vand.u32 %v118, 4294901760
    %v1976 = vsub.f32 %v118, %v1975
    %v1977 = vand.u32 %v1976, 4294901760
    %1978 = vmatpush1.msra.mxu0 %v1977
    %1979 = vmatprep.subr.mxu0 0.0
    %v1980 = vand.u32 %v119, 4294901760
    %v1981 = vsub.f32 %v119, %v1980
    %v1982 = vand.u32 %v1981, 4294901760
    %1983 = vmatpush1.msra.mxu0 %v1982
    %1984 = vmatprep.subr.mxu0 0.0
    %v1985 = vand.u32 %v120, 4294901760
    %v1986 = vsub.f32 %v120, %v1985
    %v1987 = vand.u32 %v1986, 4294901760
    %1988 = vmatpush1.msra.mxu0 %v1987
    %1989 = vmatprep.subr.mxu0 0.0
    %v1990 = vand.u32 %v121, 4294901760
    %v1991 = vsub.f32 %v121, %v1990
    %v1992 = vand.u32 %v1991, 4294901760
    %1993 = vmatpush1.msra.mxu0 %v1992
    %1994 = vmatprep.subr.mxu0 0.0
    %v1995 = vand.u32 %v122, 4294901760
    %v1996 = vsub.f32 %v122, %v1995
    %v1997 = vand.u32 %v1996, 4294901760
    %1998 = vmatpush1.msra.mxu0 %v1997
    %1999 = vmatprep.subr.mxu0 0.0
    %v2000 = vand.u32 %v123, 4294901760
    %v2001 = vsub.f32 %v123, %v2000
    %v2002 = vand.u32 %v2001, 4294901760
    %2003 = vmatpush1.msra.mxu0 %v2002
    %2004 = vmatprep.subr.mxu0 0.0
    %v2005 = vand.u32 %v124, 4294901760
    %v2006 = vsub.f32 %v124, %v2005
    %v2007 = vand.u32 %v2006, 4294901760
    %2008 = vmatpush1.msra.mxu0 %v2007
    %2009 = vmatprep.subr.mxu0 0.0
    %v2010 = vand.u32 %v125, 4294901760
    %v2011 = vsub.f32 %v125, %v2010
    %v2012 = vand.u32 %v2011, 4294901760
    %2013 = vmatpush1.msra.mxu0 %v2012
    %2014 = vmatprep.subr.mxu0 0.0
    %v2015 = vand.u32 %v126, 4294901760
    %v2016 = vsub.f32 %v126, %v2015
    %v2017 = vand.u32 %v2016, 4294901760
    %2018 = vmatpush1.msra.mxu0 %v2017
    %2019 = vmatprep.subr.mxu0 0.0
    %v2020 = vand.u32 %v127, 4294901760
    %v2021 = vsub.f32 %v127, %v2020
    %v2022 = vand.u32 %v2021, 4294901760
    %2023 = vmatpush1.msra.mxu0 %v2022
    %2024 = vmatprep.subr.mxu0 0.0
    %v2025 = vand.u32 %v128, 4294901760
    %v2026 = vsub.f32 %v128, %v2025
    %v2027 = vand.u32 %v2026, 4294901760
    %2028 = vmatpush1.msra.mxu0 %v2027
    %2029 = vmatprep.subr.mxu0 0.0
    %v2030 = vand.u32 %v129, 4294901760
    %v2031 = vsub.f32 %v129, %v2030
    %v2032 = vand.u32 %v2031, 4294901760
    %2033 = vmatpush1.msra.mxu0 %v2032
    %2034 = vmatprep.subr.mxu0 0.0
    %v2035 = vand.u32 %v130, 4294901760
    %v2036 = vsub.f32 %v130, %v2035
    %v2037 = vand.u32 %v2036, 4294901760
    %2038 = vmatpush1.msra.mxu0 %v2037
    %2039 = vmatprep.subr.mxu0 0.0
    %v2040 = vand.u32 %v131, 4294901760
    %v2041 = vsub.f32 %v131, %v2040
    %v2042 = vand.u32 %v2041, 4294901760
    %2043 = vmatpush1.msra.mxu0 %v2042
    %2044 = vmatprep.subr.mxu0 0.0
    %v2045 = vand.u32 %v132, 4294901760
    %v2046 = vsub.f32 %v132, %v2045
    %v2047 = vand.u32 %v2046, 4294901760
    %2048 = vmatpush1.msra.mxu0 %v2047
    %2049 = vmatprep.subr.mxu0 0.0
    %v2050 = vand.u32 %v133, 4294901760
    %v2051 = vsub.f32 %v133, %v2050
    %v2052 = vand.u32 %v2051, 4294901760
    %2053 = vmatpush1.msra.mxu0 %v2052
    %2054 = vmatprep.subr.mxu0 0.0
    %v2055 = vand.u32 %v134, 4294901760
    %v2056 = vsub.f32 %v134, %v2055
    %v2057 = vand.u32 %v2056, 4294901760
    %2058 = vmatpush1.msra.mxu0 %v2057
    %2059 = vmatprep.subr.mxu0 0.0
    %v2060 = vand.u32 %v135, 4294901760
    %v2061 = vsub.f32 %v135, %v2060
    %v2062 = vand.u32 %v2061, 4294901760
    %2063 = vmatpush1.msra.mxu0 %v2062
    %2064 = vmatprep.subr.mxu0 0.0
    %v2065 = vand.u32 %v136, 4294901760
    %v2066 = vsub.f32 %v136, %v2065
    %v2067 = vand.u32 %v2066, 4294901760
    %2068 = vmatpush1.msra.mxu0 %v2067
    %2069 = vmatprep.subr.mxu0 0.0
    %v2070 = vand.u32 %v137, 4294901760
    %v2071 = vsub.f32 %v137, %v2070
    %v2072 = vand.u32 %v2071, 4294901760
    %2073 = vmatpush1.msra.mxu0 %v2072
    %2074 = vmatprep.subr.mxu0 0.0
    %2075 = vmatpush1.msra.mxu0 0.0
    %2076 = vmatprep.subr.mxu0 0.0
    %2077 = vmatpush1.msra.mxu0 0.0
    %2078 = vmatprep.subr.mxu0 0.0
    %2079 = vmatpush1.msra.mxu0 0.0
    %2080 = vmatprep.subr.mxu0 0.0
    %2081 = vmatpush1.msra.mxu0 0.0
    %2082 = vmatprep.subr.mxu0 0.0
    %2083 = vmatpush1.msra.mxu0 0.0
    %2084 = vmatprep.subr.mxu0 0.0
    %2085 = vmatpush1.msra.mxu0 0.0
    %2086 = vmatprep.subr.mxu0 0.0
    %2087 = vmatpush1.msra.mxu0 0.0
    %2088 = vmatprep.subr.mxu0 0.0
    %2089 = vmatpush1.msra.mxu0 0.0
    %2090 = vmatprep.subr.mxu0 0.0
    %2091 = vmatpush1.msra.mxu0 0.0
    %2092 = vmatprep.subr.mxu0 0.0
    %2093 = vmatpush1.msra.mxu0 0.0
    %2094 = vmatprep.subr.mxu0 0.0
    %2095 = vmatpush1.msra.mxu0 0.0
    %2096 = vmatprep.subr.mxu0 0.0
    %2097 = vmatpush1.msra.mxu0 0.0
    %v2098 = vand.u32 %v1445, 4294901760
    %2099 = vmatprep.mubr.f32.mxu0 %v2098
    %v2100 = vand.u32 %v1440, 4294901760
    %2101 = vmatmul.mubr.f32.gmra.mrb[0].mxu0 %v2100
    %v2102 = vpop.f32.mrb[0].mxu0
    %v2103 = vadd.f32 %v1960, %v2102
    %v2104 = vpop.f32.mrb[0].mxu0
    %v2105 = vand.u32 %v1448, 4294901760
    %2106 = vmatprep.mubr.f32.mxu0 %v2105
    %v2107 = vand.u32 %v1442, 4294901760
    %2108 = vmatmul.mubr.f32.gmra.mrb[0].mxu0 %v2107
    %v2109 = vpop.f32.mrb[0].mxu0
    %v2110 = vadd.f32 %v1971, %v2109
    %v2111 = vpop.f32.mrb[0].mxu0
    %2112 = vdwg.mxu0
    %2113 = vmatprep.subr.mxu0 0.0
    %v2114 = vand.u32 %v118, 4294901760
    %2115 = vmatpush1.msra.mxu0 %v2114
    %2116 = vmatprep.subr.mxu0 0.0
    %v2117 = vand.u32 %v119, 4294901760
    %2118 = vmatpush1.msra.mxu0 %v2117
    %2119 = vmatprep.subr.mxu0 0.0
    %v2120 = vand.u32 %v120, 4294901760
    %2121 = vmatpush1.msra.mxu0 %v2120
    %2122 = vmatprep.subr.mxu0 0.0
    %v2123 = vand.u32 %v121, 4294901760
    %2124 = vmatpush1.msra.mxu0 %v2123
    %2125 = vmatprep.subr.mxu0 0.0
    %v2126 = vand.u32 %v122, 4294901760
    %2127 = vmatpush1.msra.mxu0 %v2126
    %2128 = vmatprep.subr.mxu0 0.0
    %v2129 = vand.u32 %v123, 4294901760
    %2130 = vmatpush1.msra.mxu0 %v2129
    %2131 = vmatprep.subr.mxu0 0.0
    %v2132 = vand.u32 %v124, 4294901760
    %2133 = vmatpush1.msra.mxu0 %v2132
    %2134 = vmatprep.subr.mxu0 0.0
    %v2135 = vand.u32 %v125, 4294901760
    %2136 = vmatpush1.msra.mxu0 %v2135
    %2137 = vmatprep.subr.mxu0 0.0
    %v2138 = vand.u32 %v126, 4294901760
    %2139 = vmatpush1.msra.mxu0 %v2138
    %2140 = vmatprep.subr.mxu0 0.0
    %v2141 = vand.u32 %v127, 4294901760
    %2142 = vmatpush1.msra.mxu0 %v2141
    %2143 = vmatprep.subr.mxu0 0.0
    %v2144 = vand.u32 %v128, 4294901760
    %2145 = vmatpush1.msra.mxu0 %v2144
    %2146 = vmatprep.subr.mxu0 0.0
    %v2147 = vand.u32 %v129, 4294901760
    %2148 = vmatpush1.msra.mxu0 %v2147
    %2149 = vmatprep.subr.mxu0 0.0
    %v2150 = vand.u32 %v130, 4294901760
    %2151 = vmatpush1.msra.mxu0 %v2150
    %2152 = vmatprep.subr.mxu0 0.0
    %v2153 = vand.u32 %v131, 4294901760
    %2154 = vmatpush1.msra.mxu0 %v2153
    %2155 = vmatprep.subr.mxu0 0.0
    %v2156 = vand.u32 %v132, 4294901760
    %2157 = vmatpush1.msra.mxu0 %v2156
    %2158 = vmatprep.subr.mxu0 0.0
    %v2159 = vand.u32 %v133, 4294901760
    %2160 = vmatpush1.msra.mxu0 %v2159
    %2161 = vmatprep.subr.mxu0 0.0
    %v2162 = vand.u32 %v134, 4294901760
    %2163 = vmatpush1.msra.mxu0 %v2162
    %2164 = vmatprep.subr.mxu0 0.0
    %v2165 = vand.u32 %v135, 4294901760
    %2166 = vmatpush1.msra.mxu0 %v2165
    %2167 = vmatprep.subr.mxu0 0.0
    %v2168 = vand.u32 %v136, 4294901760
    %2169 = vmatpush1.msra.mxu0 %v2168
    %2170 = vmatprep.subr.mxu0 0.0
    %v2171 = vand.u32 %v137, 4294901760
    %2172 = vmatpush1.msra.mxu0 %v2171
    %2173 = vmatprep.subr.mxu0 0.0
    %2174 = vmatpush1.msra.mxu0 0.0
    %2175 = vmatprep.subr.mxu0 0.0
    %2176 = vmatpush1.msra.mxu0 0.0
    %2177 = vmatprep.subr.mxu0 0.0
    %2178 = vmatpush1.msra.mxu0 0.0
    %2179 = vmatprep.subr.mxu0 0.0
    %2180 = vmatpush1.msra.mxu0 0.0
    %2181 = vmatprep.subr.mxu0 0.0
    %2182 = vmatpush1.msra.mxu0 0.0
    %2183 = vmatprep.subr.mxu0 0.0
    %2184 = vmatpush1.msra.mxu0 0.0
    %2185 = vmatprep.subr.mxu0 0.0
    %2186 = vmatpush1.msra.mxu0 0.0
    %2187 = vmatprep.subr.mxu0 0.0
    %2188 = vmatpush1.msra.mxu0 0.0
    %2189 = vmatprep.subr.mxu0 0.0
    %2190 = vmatpush1.msra.mxu0 0.0
    %2191 = vmatprep.subr.mxu0 0.0
    %2192 = vmatpush1.msra.mxu0 0.0
    %2193 = vmatprep.subr.mxu0 0.0
    %2194 = vmatpush1.msra.mxu0 0.0
    %2195 = vmatprep.subr.mxu0 0.0
    %2196 = vmatpush1.msra.mxu0 0.0
    %v2197 = vand.u32 %v1445, 4294901760
    %2198 = vmatprep.mubr.f32.mxu0 %v2197
    %v2199 = vand.u32 %v1440, 4294901760
    %2200 = vmatmul.mubr.f32.gmra.mrb[0].mxu0 %v2199
    %v2201 = vpop.f32.mrb[0].mxu0
    %v2202 = vadd.f32 %v2103, %v2201
    %v2203 = vpop.f32.mrb[0].mxu0
    %v2204 = vand.u32 %v1448, 4294901760
    %2205 = vmatprep.mubr.f32.mxu0 %v2204
    %v2206 = vand.u32 %v1442, 4294901760
    %2207 = vmatmul.mubr.f32.gmra.mrb[0].mxu0 %v2206
    %v2208 = vpop.f32.mrb[0].mxu0
    %v2209 = vadd.f32 %v2110, %v2208
    %v2210 = vpop.f32.mrb[0].mxu0
    %2211 = vdwg.mxu0
    %v2212 = vrsqrt.pop %v2202
    %v2213 = vrsqrt.pop %v2209
    %v2215 = vsel %vm908, %v2212, 0
    %v2218 = vsel %vm908, %v2213, 0
    %v2220 = vand.u32 %v920, 4294901760
    %2221 = vmatprep.subr.mxu0 %v2220
    %v2222 = vand.u32 %v917, 4294901760
    %2223 = vmatpush1.msra.mxu0 %v2222
    %2224 = vmatprep.subr.mxu0 0.0
    %2225 = vmatpush1.msra.mxu0 0.0
    %2226 = vmatprep.subr.mxu0 0.0
    %2227 = vmatpush1.msra.mxu0 0.0
    %2228 = vmatprep.subr.mxu0 0.0
    %2229 = vmatpush1.msra.mxu0 0.0
    %2230 = vmatprep.subr.mxu0 0.0
    %2231 = vmatpush1.msra.mxu0 0.0
    %2232 = vmatprep.subr.mxu0 0.0
    %2233 = vmatpush1.msra.mxu0 0.0
    %2234 = vmatprep.subr.mxu0 0.0
    %2235 = vmatpush1.msra.mxu0 0.0
    %2236 = vmatprep.subr.mxu0 0.0
    %2237 = vmatpush1.msra.mxu0 0.0
    %2238 = vmatprep.subr.mxu0 0.0
    %2239 = vmatpush1.msra.mxu0 0.0
    %2240 = vmatprep.subr.mxu0 0.0
    %2241 = vmatpush1.msra.mxu0 0.0
    %2242 = vmatprep.subr.mxu0 0.0
    %2243 = vmatpush1.msra.mxu0 0.0
    %2244 = vmatprep.subr.mxu0 0.0
    %2245 = vmatpush1.msra.mxu0 0.0
    %2246 = vmatprep.subr.mxu0 0.0
    %2247 = vmatpush1.msra.mxu0 0.0
    %2248 = vmatprep.subr.mxu0 0.0
    %2249 = vmatpush1.msra.mxu0 0.0
    %2250 = vmatprep.subr.mxu0 0.0
    %2251 = vmatpush1.msra.mxu0 0.0
    %2252 = vmatprep.subr.mxu0 0.0
    %2253 = vmatpush1.msra.mxu0 0.0
    %2254 = vmatprep.subr.mxu0 0.0
    %2255 = vmatpush1.msra.mxu0 0.0
    %2256 = vmatprep.subr.mxu0 0.0
    %2257 = vmatpush1.msra.mxu0 0.0
    %2258 = vmatprep.subr.mxu0 0.0
    %2259 = vmatpush1.msra.mxu0 0.0
    %2260 = vmatprep.subr.mxu0 0.0
    %2261 = vmatpush1.msra.mxu0 0.0
    %2262 = vmatprep.subr.mxu0 0.0
    %2263 = vmatpush1.msra.mxu0 0.0
    %2264 = vmatprep.subr.mxu0 0.0
    %2265 = vmatpush1.msra.mxu0 0.0
    %2266 = vmatprep.subr.mxu0 0.0
    %2267 = vmatpush1.msra.mxu0 0.0
    %2268 = vmatprep.subr.mxu0 0.0
    %2269 = vmatpush1.msra.mxu0 0.0
    %2270 = vmatprep.subr.mxu0 0.0
    %2271 = vmatpush1.msra.mxu0 0.0
    %2272 = vmatprep.subr.mxu0 0.0
    %2273 = vmatpush1.msra.mxu0 0.0
    %2274 = vmatprep.subr.mxu0 0.0
    %2275 = vmatpush1.msra.mxu0 0.0
    %2276 = vmatprep.subr.mxu0 0.0
    %2277 = vmatpush1.msra.mxu0 0.0
    %2278 = vmatprep.subr.mxu0 0.0
    %2279 = vmatpush1.msra.mxu0 0.0
    %2280 = vmatprep.subr.mxu0 0.0
    %2281 = vmatpush1.msra.mxu0 0.0
    %2282 = vmatprep.subr.mxu0 0.0
    %2283 = vmatpush1.msra.mxu0 0.0
    %2284 = vmatprep.subr.mxu0 0.0
    %2285 = vmatpush1.msra.mxu0 0.0
    %2286 = vmatprep.mubr.f32.mxu0 0.0
    %v2287 = vand.u32 %v2215, 4294901760
    %v2288 = vsub.f32 %v2215, %v2287
    %v2289 = vand.u32 %v2288, 4294901760
    %v2290 = vsub.f32 %v2288, %v2289
    %v2291 = vand.u32 %v2290, 4294901760
    %2292 = vmatmul.mubr.f32.gmra.mrb[0].mxu0 %v2291
    %v2293 = vpop.f32.mrb[0].mxu0
    %v2294 = vadd.f32 0.0, %v2293
    %v2295 = vpop.f32.mrb[0].mxu0
    %v2296 = vadd.f32 0.0, %v2295
    %2297 = vmatprep.mubr.f32.mxu0 0.0
    %v2298 = vand.u32 %v2218, 4294901760
    %v2299 = vsub.f32 %v2218, %v2298
    %v2300 = vand.u32 %v2299, 4294901760
    %v2301 = vsub.f32 %v2299, %v2300
    %v2302 = vand.u32 %v2301, 4294901760
    %2303 = vmatmul.mubr.f32.gmra.mrb[0].mxu0 %v2302
    %v2304 = vpop.f32.mrb[0].mxu0
    %v2305 = vadd.f32 0.0, %v2304
    %v2306 = vpop.f32.mrb[0].mxu0
    %v2307 = vadd.f32 0.0, %v2306
    %2308 = vdwg.mxu0
    %v2309 = vand.u32 %v920, 4294901760
    %v2310 = vsub.f32 %v920, %v2309
    %v2311 = vand.u32 %v2310, 4294901760
    %v2312 = vsub.f32 %v2310, %v2311
    %v2313 = vand.u32 %v2312, 4294901760
    %2314 = vmatprep.subr.mxu0 %v2313
    %v2315 = vand.u32 %v917, 4294901760
    %v2316 = vsub.f32 %v917, %v2315
    %v2317 = vand.u32 %v2316, 4294901760
    %v2318 = vsub.f32 %v2316, %v2317
    %v2319 = vand.u32 %v2318, 4294901760
    %2320 = vmatpush1.msra.mxu0 %v2319
    %2321 = vmatprep.subr.mxu0 0.0
    %2322 = vmatpush1.msra.mxu0 0.0
    %2323 = vmatprep.subr.mxu0 0.0
    %2324 = vmatpush1.msra.mxu0 0.0
    %2325 = vmatprep.subr.mxu0 0.0
    %2326 = vmatpush1.msra.mxu0 0.0
    %2327 = vmatprep.subr.mxu0 0.0
    %2328 = vmatpush1.msra.mxu0 0.0
    %2329 = vmatprep.subr.mxu0 0.0
    %2330 = vmatpush1.msra.mxu0 0.0
    %2331 = vmatprep.subr.mxu0 0.0
    %2332 = vmatpush1.msra.mxu0 0.0
    %2333 = vmatprep.subr.mxu0 0.0
    %2334 = vmatpush1.msra.mxu0 0.0
    %2335 = vmatprep.subr.mxu0 0.0
    %2336 = vmatpush1.msra.mxu0 0.0
    %2337 = vmatprep.subr.mxu0 0.0
    %2338 = vmatpush1.msra.mxu0 0.0
    %2339 = vmatprep.subr.mxu0 0.0
    %2340 = vmatpush1.msra.mxu0 0.0
    %2341 = vmatprep.subr.mxu0 0.0
    %2342 = vmatpush1.msra.mxu0 0.0
    %2343 = vmatprep.subr.mxu0 0.0
    %2344 = vmatpush1.msra.mxu0 0.0
    %2345 = vmatprep.subr.mxu0 0.0
    %2346 = vmatpush1.msra.mxu0 0.0
    %2347 = vmatprep.subr.mxu0 0.0
    %2348 = vmatpush1.msra.mxu0 0.0
    %2349 = vmatprep.subr.mxu0 0.0
    %2350 = vmatpush1.msra.mxu0 0.0
    %2351 = vmatprep.subr.mxu0 0.0
    %2352 = vmatpush1.msra.mxu0 0.0
    %2353 = vmatprep.subr.mxu0 0.0
    %2354 = vmatpush1.msra.mxu0 0.0
    %2355 = vmatprep.subr.mxu0 0.0
    %2356 = vmatpush1.msra.mxu0 0.0
    %2357 = vmatprep.subr.mxu0 0.0
    %2358 = vmatpush1.msra.mxu0 0.0
    %2359 = vmatprep.subr.mxu0 0.0
    %2360 = vmatpush1.msra.mxu0 0.0
    %2361 = vmatprep.subr.mxu0 0.0
    %2362 = vmatpush1.msra.mxu0 0.0
    %2363 = vmatprep.subr.mxu0 0.0
    %2364 = vmatpush1.msra.mxu0 0.0
    %2365 = vmatprep.subr.mxu0 0.0
    %2366 = vmatpush1.msra.mxu0 0.0
    %2367 = vmatprep.subr.mxu0 0.0
    %2368 = vmatpush1.msra.mxu0 0.0
    %2369 = vmatprep.subr.mxu0 0.0
    %2370 = vmatpush1.msra.mxu0 0.0
    %2371 = vmatprep.subr.mxu0 0.0
    %2372 = vmatpush1.msra.mxu0 0.0
    %2373 = vmatprep.subr.mxu0 0.0
    %2374 = vmatpush1.msra.mxu0 0.0
    %2375 = vmatprep.subr.mxu0 0.0
    %2376 = vmatpush1.msra.mxu0 0.0
    %2377 = vmatprep.subr.mxu0 0.0
    %2378 = vmatpush1.msra.mxu0 0.0
    %2379 = vmatprep.subr.mxu0 0.0
    %2380 = vmatpush1.msra.mxu0 0.0
    %2381 = vmatprep.subr.mxu0 0.0
    %2382 = vmatpush1.msra.mxu0 0.0
    %2383 = vmatprep.mubr.f32.mxu0 0.0
    %v2384 = vand.u32 %v2215, 4294901760
    %2385 = vmatmul.mubr.f32.gmra.mrb[0].mxu0 %v2384
    %v2386 = vpop.f32.mrb[0].mxu0
    %v2387 = vadd.f32 %v2294, %v2386
    %v2388 = vpop.f32.mrb[0].mxu0
    %v2389 = vadd.f32 %v2296, %v2388
    %2390 = vmatprep.mubr.f32.mxu0 0.0
    %v2391 = vand.u32 %v2218, 4294901760
    %2392 = vmatmul.mubr.f32.gmra.mrb[0].mxu0 %v2391
    %v2393 = vpop.f32.mrb[0].mxu0
    %v2394 = vadd.f32 %v2305, %v2393
    %v2395 = vpop.f32.mrb[0].mxu0
    %v2396 = vadd.f32 %v2307, %v2395
    %2397 = vdwg.mxu0
    %v2398 = vand.u32 %v920, 4294901760
    %v2399 = vsub.f32 %v920, %v2398
    %2400 = vmatprep.subr.mxu0 %v2399
    %v2401 = vand.u32 %v917, 4294901760
    %v2402 = vsub.f32 %v917, %v2401
    %2403 = vmatpush1.msra.mxu0 %v2402
    %2404 = vmatprep.subr.mxu0 0.0
    %2405 = vmatpush1.msra.mxu0 0.0
    %2406 = vmatprep.subr.mxu0 0.0
    %2407 = vmatpush1.msra.mxu0 0.0
    %2408 = vmatprep.subr.mxu0 0.0
    %2409 = vmatpush1.msra.mxu0 0.0
    %2410 = vmatprep.subr.mxu0 0.0
    %2411 = vmatpush1.msra.mxu0 0.0
    %2412 = vmatprep.subr.mxu0 0.0
    %2413 = vmatpush1.msra.mxu0 0.0
    %2414 = vmatprep.subr.mxu0 0.0
    %2415 = vmatpush1.msra.mxu0 0.0
    %2416 = vmatprep.subr.mxu0 0.0
    %2417 = vmatpush1.msra.mxu0 0.0
    %2418 = vmatprep.subr.mxu0 0.0
    %2419 = vmatpush1.msra.mxu0 0.0
    %2420 = vmatprep.subr.mxu0 0.0
    %2421 = vmatpush1.msra.mxu0 0.0
    %2422 = vmatprep.subr.mxu0 0.0
    %2423 = vmatpush1.msra.mxu0 0.0
    %2424 = vmatprep.subr.mxu0 0.0
    %2425 = vmatpush1.msra.mxu0 0.0
    %2426 = vmatprep.subr.mxu0 0.0
    %2427 = vmatpush1.msra.mxu0 0.0
    %2428 = vmatprep.subr.mxu0 0.0
    %2429 = vmatpush1.msra.mxu0 0.0
    %2430 = vmatprep.subr.mxu0 0.0
    %2431 = vmatpush1.msra.mxu0 0.0
    %2432 = vmatprep.subr.mxu0 0.0
    %2433 = vmatpush1.msra.mxu0 0.0
    %2434 = vmatprep.subr.mxu0 0.0
    %2435 = vmatpush1.msra.mxu0 0.0
    %2436 = vmatprep.subr.mxu0 0.0
    %2437 = vmatpush1.msra.mxu0 0.0
    %2438 = vmatprep.subr.mxu0 0.0
    %2439 = vmatpush1.msra.mxu0 0.0
    %2440 = vmatprep.subr.mxu0 0.0
    %2441 = vmatpush1.msra.mxu0 0.0
    %2442 = vmatprep.subr.mxu0 0.0
    %2443 = vmatpush1.msra.mxu0 0.0
    %2444 = vmatprep.subr.mxu0 0.0
    %2445 = vmatpush1.msra.mxu0 0.0
    %2446 = vmatprep.subr.mxu0 0.0
    %2447 = vmatpush1.msra.mxu0 0.0
    %2448 = vmatprep.subr.mxu0 0.0
    %2449 = vmatpush1.msra.mxu0 0.0
    %2450 = vmatprep.subr.mxu0 0.0
    %2451 = vmatpush1.msra.mxu0 0.0
    %2452 = vmatprep.subr.mxu0 0.0
    %2453 = vmatpush1.msra.mxu0 0.0
    %2454 = vmatprep.subr.mxu0 0.0
    %2455 = vmatpush1.msra.mxu0 0.0
    %2456 = vmatprep.subr.mxu0 0.0
    %2457 = vmatpush1.msra.mxu0 0.0
    %2458 = vmatprep.subr.mxu0 0.0
    %2459 = vmatpush1.msra.mxu0 0.0
    %2460 = vmatprep.subr.mxu0 0.0
    %2461 = vmatpush1.msra.mxu0 0.0
    %2462 = vmatprep.subr.mxu0 0.0
    %2463 = vmatpush1.msra.mxu0 0.0
    %2464 = vmatprep.subr.mxu0 0.0
    %2465 = vmatpush1.msra.mxu0 0.0
    %2466 = vmatprep.mubr.f32.mxu0 0.0
    %v2467 = vand.u32 %v2215, 4294901760
    %v2468 = vsub.f32 %v2215, %v2467
    %2469 = vmatmul.mubr.f32.gmra.mrb[0].mxu0 %v2468
    %v2470 = vpop.f32.mrb[0].mxu0
    %v2471 = vadd.f32 %v2387, %v2470
    %v2472 = vpop.f32.mrb[0].mxu0
    %v2473 = vadd.f32 %v2389, %v2472
    %2474 = vmatprep.mubr.f32.mxu0 0.0
    %v2475 = vand.u32 %v2218, 4294901760
    %v2476 = vsub.f32 %v2218, %v2475
    %2477 = vmatmul.mubr.f32.gmra.mrb[0].mxu0 %v2476
    %v2478 = vpop.f32.mrb[0].mxu0
    %v2479 = vadd.f32 %v2394, %v2478
    %v2480 = vpop.f32.mrb[0].mxu0
    %v2481 = vadd.f32 %v2396, %v2480
    %2482 = vdwg.mxu0
    %v2483 = vand.u32 %v920, 4294901760
    %2484 = vmatprep.subr.mxu0 %v2483
    %v2485 = vand.u32 %v917, 4294901760
    %2486 = vmatpush1.msra.mxu0 %v2485
    %2487 = vmatprep.subr.mxu0 0.0
    %2488 = vmatpush1.msra.mxu0 0.0
    %2489 = vmatprep.subr.mxu0 0.0
    %2490 = vmatpush1.msra.mxu0 0.0
    %2491 = vmatprep.subr.mxu0 0.0
    %2492 = vmatpush1.msra.mxu0 0.0
    %2493 = vmatprep.subr.mxu0 0.0
    %2494 = vmatpush1.msra.mxu0 0.0
    %2495 = vmatprep.subr.mxu0 0.0
    %2496 = vmatpush1.msra.mxu0 0.0
    %2497 = vmatprep.subr.mxu0 0.0
    %2498 = vmatpush1.msra.mxu0 0.0
    %2499 = vmatprep.subr.mxu0 0.0
    %2500 = vmatpush1.msra.mxu0 0.0
    %2501 = vmatprep.subr.mxu0 0.0
    %2502 = vmatpush1.msra.mxu0 0.0
    %2503 = vmatprep.subr.mxu0 0.0
    %2504 = vmatpush1.msra.mxu0 0.0
    %2505 = vmatprep.subr.mxu0 0.0
    %2506 = vmatpush1.msra.mxu0 0.0
    %2507 = vmatprep.subr.mxu0 0.0
    %2508 = vmatpush1.msra.mxu0 0.0
    %2509 = vmatprep.subr.mxu0 0.0
    %2510 = vmatpush1.msra.mxu0 0.0
    %2511 = vmatprep.subr.mxu0 0.0
    %2512 = vmatpush1.msra.mxu0 0.0
    %2513 = vmatprep.subr.mxu0 0.0
    %2514 = vmatpush1.msra.mxu0 0.0
    %2515 = vmatprep.subr.mxu0 0.0
    %2516 = vmatpush1.msra.mxu0 0.0
    %2517 = vmatprep.subr.mxu0 0.0
    %2518 = vmatpush1.msra.mxu0 0.0
    %2519 = vmatprep.subr.mxu0 0.0
    %2520 = vmatpush1.msra.mxu0 0.0
    %2521 = vmatprep.subr.mxu0 0.0
    %2522 = vmatpush1.msra.mxu0 0.0
    %2523 = vmatprep.subr.mxu0 0.0
    %2524 = vmatpush1.msra.mxu0 0.0
    %2525 = vmatprep.subr.mxu0 0.0
    %2526 = vmatpush1.msra.mxu0 0.0
    %2527 = vmatprep.subr.mxu0 0.0
    %2528 = vmatpush1.msra.mxu0 0.0
    %2529 = vmatprep.subr.mxu0 0.0
    %2530 = vmatpush1.msra.mxu0 0.0
    %2531 = vmatprep.subr.mxu0 0.0
    %2532 = vmatpush1.msra.mxu0 0.0
    %2533 = vmatprep.subr.mxu0 0.0
    %2534 = vmatpush1.msra.mxu0 0.0
    %2535 = vmatprep.subr.mxu0 0.0
    %2536 = vmatpush1.msra.mxu0 0.0
    %2537 = vmatprep.subr.mxu0 0.0
    %2538 = vmatpush1.msra.mxu0 0.0
    %2539 = vmatprep.subr.mxu0 0.0
    %2540 = vmatpush1.msra.mxu0 0.0
    %2541 = vmatprep.subr.mxu0 0.0
    %2542 = vmatpush1.msra.mxu0 0.0
    %2543 = vmatprep.subr.mxu0 0.0
    %2544 = vmatpush1.msra.mxu0 0.0
    %2545 = vmatprep.subr.mxu0 0.0
    %2546 = vmatpush1.msra.mxu0 0.0
    %2547 = vmatprep.subr.mxu0 0.0
    %2548 = vmatpush1.msra.mxu0 0.0
    %2549 = vmatprep.mubr.f32.mxu0 0.0
    %v2550 = vand.u32 %v2215, 4294901760
    %v2551 = vsub.f32 %v2215, %v2550
    %v2552 = vand.u32 %v2551, 4294901760
    %2553 = vmatmul.mubr.f32.gmra.mrb[0].mxu0 %v2552
    %v2554 = vpop.f32.mrb[0].mxu0
    %v2555 = vadd.f32 %v2471, %v2554
    %v2556 = vpop.f32.mrb[0].mxu0
    %v2557 = vadd.f32 %v2473, %v2556
    %2558 = vmatprep.mubr.f32.mxu0 0.0
    %v2559 = vand.u32 %v2218, 4294901760
    %v2560 = vsub.f32 %v2218, %v2559
    %v2561 = vand.u32 %v2560, 4294901760
    %2562 = vmatmul.mubr.f32.gmra.mrb[0].mxu0 %v2561
    %v2563 = vpop.f32.mrb[0].mxu0
    %v2564 = vadd.f32 %v2479, %v2563
    %v2565 = vpop.f32.mrb[0].mxu0
    %v2566 = vadd.f32 %v2481, %v2565
    %2567 = vdwg.mxu0
    %v2568 = vand.u32 %v920, 4294901760
    %v2569 = vsub.f32 %v920, %v2568
    %v2570 = vand.u32 %v2569, 4294901760
    %2571 = vmatprep.subr.mxu0 %v2570
    %v2572 = vand.u32 %v917, 4294901760
    %v2573 = vsub.f32 %v917, %v2572
    %v2574 = vand.u32 %v2573, 4294901760
    %2575 = vmatpush1.msra.mxu0 %v2574
    %2576 = vmatprep.subr.mxu0 0.0
    %2577 = vmatpush1.msra.mxu0 0.0
    %2578 = vmatprep.subr.mxu0 0.0
    %2579 = vmatpush1.msra.mxu0 0.0
    %2580 = vmatprep.subr.mxu0 0.0
    %2581 = vmatpush1.msra.mxu0 0.0
    %2582 = vmatprep.subr.mxu0 0.0
    %2583 = vmatpush1.msra.mxu0 0.0
    %2584 = vmatprep.subr.mxu0 0.0
    %2585 = vmatpush1.msra.mxu0 0.0
    %2586 = vmatprep.subr.mxu0 0.0
    %2587 = vmatpush1.msra.mxu0 0.0
    %2588 = vmatprep.subr.mxu0 0.0
    %2589 = vmatpush1.msra.mxu0 0.0
    %2590 = vmatprep.subr.mxu0 0.0
    %2591 = vmatpush1.msra.mxu0 0.0
    %2592 = vmatprep.subr.mxu0 0.0
    %2593 = vmatpush1.msra.mxu0 0.0
    %2594 = vmatprep.subr.mxu0 0.0
    %2595 = vmatpush1.msra.mxu0 0.0
    %2596 = vmatprep.subr.mxu0 0.0
    %2597 = vmatpush1.msra.mxu0 0.0
    %2598 = vmatprep.subr.mxu0 0.0
    %2599 = vmatpush1.msra.mxu0 0.0
    %2600 = vmatprep.subr.mxu0 0.0
    %2601 = vmatpush1.msra.mxu0 0.0
    %2602 = vmatprep.subr.mxu0 0.0
    %2603 = vmatpush1.msra.mxu0 0.0
    %2604 = vmatprep.subr.mxu0 0.0
    %2605 = vmatpush1.msra.mxu0 0.0
    %2606 = vmatprep.subr.mxu0 0.0
    %2607 = vmatpush1.msra.mxu0 0.0
    %2608 = vmatprep.subr.mxu0 0.0
    %2609 = vmatpush1.msra.mxu0 0.0
    %2610 = vmatprep.subr.mxu0 0.0
    %2611 = vmatpush1.msra.mxu0 0.0
    %2612 = vmatprep.subr.mxu0 0.0
    %2613 = vmatpush1.msra.mxu0 0.0
    %2614 = vmatprep.subr.mxu0 0.0
    %2615 = vmatpush1.msra.mxu0 0.0
    %2616 = vmatprep.subr.mxu0 0.0
    %2617 = vmatpush1.msra.mxu0 0.0
    %2618 = vmatprep.subr.mxu0 0.0
    %2619 = vmatpush1.msra.mxu0 0.0
    %2620 = vmatprep.subr.mxu0 0.0
    %2621 = vmatpush1.msra.mxu0 0.0
    %2622 = vmatprep.subr.mxu0 0.0
    %2623 = vmatpush1.msra.mxu0 0.0
    %2624 = vmatprep.subr.mxu0 0.0
    %2625 = vmatpush1.msra.mxu0 0.0
    %2626 = vmatprep.subr.mxu0 0.0
    %2627 = vmatpush1.msra.mxu0 0.0
    %2628 = vmatprep.subr.mxu0 0.0
    %2629 = vmatpush1.msra.mxu0 0.0
    %2630 = vmatprep.subr.mxu0 0.0
    %2631 = vmatpush1.msra.mxu0 0.0
    %2632 = vmatprep.subr.mxu0 0.0
    %2633 = vmatpush1.msra.mxu0 0.0
    %2634 = vmatprep.subr.mxu0 0.0
    %2635 = vmatpush1.msra.mxu0 0.0
    %2636 = vmatprep.subr.mxu0 0.0
    %2637 = vmatpush1.msra.mxu0 0.0
    %2638 = vmatprep.mubr.f32.mxu0 0.0
    %v2639 = vand.u32 %v2215, 4294901760
    %2640 = vmatmul.mubr.f32.gmra.mrb[0].mxu0 %v2639
    %v2641 = vpop.f32.mrb[0].mxu0
    %v2642 = vadd.f32 %v2555, %v2641
    %v2643 = vpop.f32.mrb[0].mxu0
    %v2644 = vadd.f32 %v2557, %v2643
    %2645 = vmatprep.mubr.f32.mxu0 0.0
    %v2646 = vand.u32 %v2218, 4294901760
    %2647 = vmatmul.mubr.f32.gmra.mrb[0].mxu0 %v2646
    %v2648 = vpop.f32.mrb[0].mxu0
    %v2649 = vadd.f32 %v2564, %v2648
    %v2650 = vpop.f32.mrb[0].mxu0
    %v2651 = vadd.f32 %v2566, %v2650
    %2652 = vdwg.mxu0
    %v2653 = vand.u32 %v920, 4294901760
    %2654 = vmatprep.subr.mxu0 %v2653
    %v2655 = vand.u32 %v917, 4294901760
    %2656 = vmatpush1.msra.mxu0 %v2655
    %2657 = vmatprep.subr.mxu0 0.0
    %2658 = vmatpush1.msra.mxu0 0.0
    %2659 = vmatprep.subr.mxu0 0.0
    %2660 = vmatpush1.msra.mxu0 0.0
    %2661 = vmatprep.subr.mxu0 0.0
    %2662 = vmatpush1.msra.mxu0 0.0
    %2663 = vmatprep.subr.mxu0 0.0
    %2664 = vmatpush1.msra.mxu0 0.0
    %2665 = vmatprep.subr.mxu0 0.0
    %2666 = vmatpush1.msra.mxu0 0.0
    %2667 = vmatprep.subr.mxu0 0.0
    %2668 = vmatpush1.msra.mxu0 0.0
    %2669 = vmatprep.subr.mxu0 0.0
    %2670 = vmatpush1.msra.mxu0 0.0
    %2671 = vmatprep.subr.mxu0 0.0
    %2672 = vmatpush1.msra.mxu0 0.0
    %2673 = vmatprep.subr.mxu0 0.0
    %2674 = vmatpush1.msra.mxu0 0.0
    %2675 = vmatprep.subr.mxu0 0.0
    %2676 = vmatpush1.msra.mxu0 0.0
    %2677 = vmatprep.subr.mxu0 0.0
    %2678 = vmatpush1.msra.mxu0 0.0
    %2679 = vmatprep.subr.mxu0 0.0
    %2680 = vmatpush1.msra.mxu0 0.0
    %2681 = vmatprep.subr.mxu0 0.0
    %2682 = vmatpush1.msra.mxu0 0.0
    %2683 = vmatprep.subr.mxu0 0.0
    %2684 = vmatpush1.msra.mxu0 0.0
    %2685 = vmatprep.subr.mxu0 0.0
    %2686 = vmatpush1.msra.mxu0 0.0
    %2687 = vmatprep.subr.mxu0 0.0
    %2688 = vmatpush1.msra.mxu0 0.0
    %2689 = vmatprep.subr.mxu0 0.0
    %2690 = vmatpush1.msra.mxu0 0.0
    %2691 = vmatprep.subr.mxu0 0.0
    %2692 = vmatpush1.msra.mxu0 0.0
    %2693 = vmatprep.subr.mxu0 0.0
    %2694 = vmatpush1.msra.mxu0 0.0
    %2695 = vmatprep.subr.mxu0 0.0
    %2696 = vmatpush1.msra.mxu0 0.0
    %2697 = vmatprep.subr.mxu0 0.0
    %2698 = vmatpush1.msra.mxu0 0.0
    %2699 = vmatprep.subr.mxu0 0.0
    %2700 = vmatpush1.msra.mxu0 0.0
    %2701 = vmatprep.subr.mxu0 0.0
    %2702 = vmatpush1.msra.mxu0 0.0
    %2703 = vmatprep.subr.mxu0 0.0
    %2704 = vmatpush1.msra.mxu0 0.0
    %2705 = vmatprep.subr.mxu0 0.0
    %2706 = vmatpush1.msra.mxu0 0.0
    %2707 = vmatprep.subr.mxu0 0.0
    %2708 = vmatpush1.msra.mxu0 0.0
    %2709 = vmatprep.subr.mxu0 0.0
    %2710 = vmatpush1.msra.mxu0 0.0
    %2711 = vmatprep.subr.mxu0 0.0
    %2712 = vmatpush1.msra.mxu0 0.0
    %2713 = vmatprep.subr.mxu0 0.0
    %2714 = vmatpush1.msra.mxu0 0.0
    %2715 = vmatprep.subr.mxu0 0.0
    %2716 = vmatpush1.msra.mxu0 0.0
    %2717 = vmatprep.subr.mxu0 0.0
    %2718 = vmatpush1.msra.mxu0 0.0
    %2719 = vmatprep.mubr.f32.mxu0 0.0
    %v2720 = vand.u32 %v2215, 4294901760
    %2721 = vmatmul.mubr.f32.gmra.mrb[0].mxu0 %v2720
    %v2722 = vpop.f32.mrb[0].mxu0
    %v2723 = vadd.f32 %v2642, %v2722
    %v2724 = vpop.f32.mrb[0].mxu0
    %v2725 = vadd.f32 %v2644, %v2724
    %2726 = vmatprep.mubr.f32.mxu0 0.0
    %v2727 = vand.u32 %v2218, 4294901760
    %2728 = vmatmul.mubr.f32.gmra.mrb[0].mxu0 %v2727
    %v2729 = vpop.f32.mrb[0].mxu0
    %v2730 = vadd.f32 %v2649, %v2729
    %v2731 = vpop.f32.mrb[0].mxu0
    %v2732 = vadd.f32 %v2651, %v2731
    %2733 = vdwg.mxu0
    %v2734 = vmul.f32 %v1436, %v2723
    %v2735 = vmul.f32 %v1437, %v2725
    %v2736 = vmul.f32 %v1438, %v2730
    %v2737 = vmul.f32 %v1439, %v2732
    %v2738 = vld [vmem:[%s5] sm:$0xff]
    %v2739 = vld [vmem:[%s5 + $0x8] sm:$0xff]
    %v2740 = vld [vmem:[%s5 + $0x10] sm:$0xff]
    %v2741 = vld [vmem:[%s5 + $0x18] sm:$0xff]
    %v2742 = vld [vmem:[%s5 + $0x20] sm:$0xff]
    %v2743 = vld [vmem:[%s5 + $0x28] sm:$0xff]
    %v2744 = vld [vmem:[%s5 + $0x30] sm:$0xff]
    %v2745 = vld [vmem:[%s5 + $0x38] sm:$0xff]
    %v2746 = vld [vmem:[%s5 + $0x40] sm:$0xff]
    %v2747 = vld [vmem:[%s5 + $0x48] sm:$0xff]
    %v2748 = vld [vmem:[%s5 + $0x50] sm:$0xff]
    %v2749 = vld [vmem:[%s5 + $0x58] sm:$0xff]
    %v2750 = vld [vmem:[%s5 + $0x60] sm:$0xff]
    %v2751 = vld [vmem:[%s5 + $0x68] sm:$0xff]
    %v2752 = vld [vmem:[%s5 + $0x70] sm:$0xff]
    %v2753 = vld [vmem:[%s5 + $0x78] sm:$0xff]
    %v2754 = vld [vmem:[%s5 + $0x80] sm:$0xff]
    %v2755 = vld [vmem:[%s5 + $0x88] sm:$0xff]
    %v2756 = vld [vmem:[%s5 + $0x90] sm:$0xff]
    %v2757 = vld [vmem:[%s5 + $0x98] sm:$0xff]
    %v2758 = vld [vmem:[%s6] sm:$0x1]
    %v2760 = vlaneseq
    %v2761 = vshrl.u32 %v2760, 7
    %v2762 = vsub.s32 0, %v2761
    %v2763 = vrot.slane %v2758, %v2762
    %v2766 = vsel %vm67, %v2735, 0
    %v2769 = vsel %vm67, %v2737, 0
    %2771 = vmatprep.subr.mxu0 0.0
    %v2772 = vand.u32 %v2738, 4294901760
    %2773 = vmatpush1.msra.mxu0 %v2772
    %2774 = vmatprep.subr.mxu0 0.0
    %v2775 = vand.u32 %v2739, 4294901760
    %2776 = vmatpush1.msra.mxu0 %v2775
    %2777 = vmatprep.subr.mxu0 0.0
    %v2778 = vand.u32 %v2740, 4294901760
    %2779 = vmatpush1.msra.mxu0 %v2778
    %2780 = vmatprep.subr.mxu0 0.0
    %v2781 = vand.u32 %v2741, 4294901760
    %2782 = vmatpush1.msra.mxu0 %v2781
    %2783 = vmatprep.subr.mxu0 0.0
    %v2784 = vand.u32 %v2742, 4294901760
    %2785 = vmatpush1.msra.mxu0 %v2784
    %2786 = vmatprep.subr.mxu0 0.0
    %v2787 = vand.u32 %v2743, 4294901760
    %2788 = vmatpush1.msra.mxu0 %v2787
    %2789 = vmatprep.subr.mxu0 0.0
    %v2790 = vand.u32 %v2744, 4294901760
    %2791 = vmatpush1.msra.mxu0 %v2790
    %2792 = vmatprep.subr.mxu0 0.0
    %v2793 = vand.u32 %v2745, 4294901760
    %2794 = vmatpush1.msra.mxu0 %v2793
    %2795 = vmatprep.subr.mxu0 0.0
    %v2796 = vand.u32 %v2746, 4294901760
    %2797 = vmatpush1.msra.mxu0 %v2796
    %2798 = vmatprep.subr.mxu0 0.0
    %v2799 = vand.u32 %v2747, 4294901760
    %2800 = vmatpush1.msra.mxu0 %v2799
    %2801 = vmatprep.subr.mxu0 0.0
    %v2802 = vand.u32 %v2748, 4294901760
    %2803 = vmatpush1.msra.mxu0 %v2802
    %2804 = vmatprep.subr.mxu0 0.0
    %v2805 = vand.u32 %v2749, 4294901760
    %2806 = vmatpush1.msra.mxu0 %v2805
    %2807 = vmatprep.subr.mxu0 0.0
    %v2808 = vand.u32 %v2750, 4294901760
    %2809 = vmatpush1.msra.mxu0 %v2808
    %2810 = vmatprep.subr.mxu0 0.0
    %v2811 = vand.u32 %v2751, 4294901760
    %2812 = vmatpush1.msra.mxu0 %v2811
    %2813 = vmatprep.subr.mxu0 0.0
    %v2814 = vand.u32 %v2752, 4294901760
    %2815 = vmatpush1.msra.mxu0 %v2814
    %2816 = vmatprep.subr.mxu0 0.0
    %v2817 = vand.u32 %v2753, 4294901760
    %2818 = vmatpush1.msra.mxu0 %v2817
    %2819 = vmatprep.subr.mxu0 0.0
    %v2820 = vand.u32 %v2754, 4294901760
    %2821 = vmatpush1.msra.mxu0 %v2820
    %2822 = vmatprep.subr.mxu0 0.0
    %v2823 = vand.u32 %v2755, 4294901760
    %2824 = vmatpush1.msra.mxu0 %v2823
    %2825 = vmatprep.subr.mxu0 0.0
    %v2826 = vand.u32 %v2756, 4294901760
    %2827 = vmatpush1.msra.mxu0 %v2826
    %2828 = vmatprep.subr.mxu0 0.0
    %v2829 = vand.u32 %v2757, 4294901760
    %2830 = vmatpush1.msra.mxu0 %v2829
    %2831 = vmatprep.subr.mxu0 0.0
    %2832 = vmatpush1.msra.mxu0 0.0
    %2833 = vmatprep.subr.mxu0 0.0
    %2834 = vmatpush1.msra.mxu0 0.0
    %2835 = vmatprep.subr.mxu0 0.0
    %2836 = vmatpush1.msra.mxu0 0.0
    %2837 = vmatprep.subr.mxu0 0.0
    %2838 = vmatpush1.msra.mxu0 0.0
    %2839 = vmatprep.subr.mxu0 0.0
    %2840 = vmatpush1.msra.mxu0 0.0
    %2841 = vmatprep.subr.mxu0 0.0
    %2842 = vmatpush1.msra.mxu0 0.0
    %2843 = vmatprep.subr.mxu0 0.0
    %2844 = vmatpush1.msra.mxu0 0.0
    %2845 = vmatprep.subr.mxu0 0.0
    %2846 = vmatpush1.msra.mxu0 0.0
    %2847 = vmatprep.subr.mxu0 0.0
    %2848 = vmatpush1.msra.mxu0 0.0
    %2849 = vmatprep.subr.mxu0 0.0
    %2850 = vmatpush1.msra.mxu0 0.0
    %2851 = vmatprep.subr.mxu0 0.0
    %2852 = vmatpush1.msra.mxu0 0.0
    %2853 = vmatprep.subr.mxu0 0.0
    %2854 = vmatpush1.msra.mxu0 0.0
    %v2855 = vand.u32 %v2766, 4294901760
    %v2856 = vsub.f32 %v2766, %v2855
    %v2857 = vand.u32 %v2856, 4294901760
    %v2858 = vsub.f32 %v2856, %v2857
    %v2859 = vand.u32 %v2858, 4294901760
    %2860 = vmatprep.mubr.f32.mxu0 %v2859
    %v2861 = vand.u32 %v2734, 4294901760
    %v2862 = vsub.f32 %v2734, %v2861
    %v2863 = vand.u32 %v2862, 4294901760
    %v2864 = vsub.f32 %v2862, %v2863
    %v2865 = vand.u32 %v2864, 4294901760
    %2866 = vmatmul.mubr.f32.gmra.mrb[0].mxu0 %v2865
    %v2867 = vpop.f32.mrb[0].mxu0
    %v2868 = vadd.f32 %v2763, %v2867
    %v2869 = vpop.f32.mrb[0].mxu0
    %v2870 = vand.u32 %v2769, 4294901760
    %v2871 = vsub.f32 %v2769, %v2870
    %v2872 = vand.u32 %v2871, 4294901760
    %v2873 = vsub.f32 %v2871, %v2872
    %v2874 = vand.u32 %v2873, 4294901760
    %2875 = vmatprep.mubr.f32.mxu0 %v2874
    %v2876 = vand.u32 %v2736, 4294901760
    %v2877 = vsub.f32 %v2736, %v2876
    %v2878 = vand.u32 %v2877, 4294901760
    %v2879 = vsub.f32 %v2877, %v2878
    %v2880 = vand.u32 %v2879, 4294901760
    %2881 = vmatmul.mubr.f32.gmra.mrb[0].mxu0 %v2880
    %v2882 = vpop.f32.mrb[0].mxu0
    %v2883 = vadd.f32 %v2763, %v2882
    %v2884 = vpop.f32.mrb[0].mxu0
    %2885 = vdwg.mxu0
    %2886 = vmatprep.subr.mxu0 0.0
    %v2887 = vand.u32 %v2738, 4294901760
    %v2888 = vsub.f32 %v2738, %v2887
    %v2889 = vand.u32 %v2888, 4294901760
    %v2890 = vsub.f32 %v2888, %v2889
    %v2891 = vand.u32 %v2890, 4294901760
    %2892 = vmatpush1.msra.mxu0 %v2891
    %2893 = vmatprep.subr.mxu0 0.0
    %v2894 = vand.u32 %v2739, 4294901760
    %v2895 = vsub.f32 %v2739, %v2894
    %v2896 = vand.u32 %v2895, 4294901760
    %v2897 = vsub.f32 %v2895, %v2896
    %v2898 = vand.u32 %v2897, 4294901760
    %2899 = vmatpush1.msra.mxu0 %v2898
    %2900 = vmatprep.subr.mxu0 0.0
    %v2901 = vand.u32 %v2740, 4294901760
    %v2902 = vsub.f32 %v2740, %v2901
    %v2903 = vand.u32 %v2902, 4294901760
    %v2904 = vsub.f32 %v2902, %v2903
    %v2905 = vand.u32 %v2904, 4294901760
    %2906 = vmatpush1.msra.mxu0 %v2905
    %2907 = vmatprep.subr.mxu0 0.0
    %v2908 = vand.u32 %v2741, 4294901760
    %v2909 = vsub.f32 %v2741, %v2908
    %v2910 = vand.u32 %v2909, 4294901760
    %v2911 = vsub.f32 %v2909, %v2910
    %v2912 = vand.u32 %v2911, 4294901760
    %2913 = vmatpush1.msra.mxu0 %v2912
    %2914 = vmatprep.subr.mxu0 0.0
    %v2915 = vand.u32 %v2742, 4294901760
    %v2916 = vsub.f32 %v2742, %v2915
    %v2917 = vand.u32 %v2916, 4294901760
    %v2918 = vsub.f32 %v2916, %v2917
    %v2919 = vand.u32 %v2918, 4294901760
    %2920 = vmatpush1.msra.mxu0 %v2919
    %2921 = vmatprep.subr.mxu0 0.0
    %v2922 = vand.u32 %v2743, 4294901760
    %v2923 = vsub.f32 %v2743, %v2922
    %v2924 = vand.u32 %v2923, 4294901760
    %v2925 = vsub.f32 %v2923, %v2924
    %v2926 = vand.u32 %v2925, 4294901760
    %2927 = vmatpush1.msra.mxu0 %v2926
    %2928 = vmatprep.subr.mxu0 0.0
    %v2929 = vand.u32 %v2744, 4294901760
    %v2930 = vsub.f32 %v2744, %v2929
    %v2931 = vand.u32 %v2930, 4294901760
    %v2932 = vsub.f32 %v2930, %v2931
    %v2933 = vand.u32 %v2932, 4294901760
    %2934 = vmatpush1.msra.mxu0 %v2933
    %2935 = vmatprep.subr.mxu0 0.0
    %v2936 = vand.u32 %v2745, 4294901760
    %v2937 = vsub.f32 %v2745, %v2936
    %v2938 = vand.u32 %v2937, 4294901760
    %v2939 = vsub.f32 %v2937, %v2938
    %v2940 = vand.u32 %v2939, 4294901760
    %2941 = vmatpush1.msra.mxu0 %v2940
    %2942 = vmatprep.subr.mxu0 0.0
    %v2943 = vand.u32 %v2746, 4294901760
    %v2944 = vsub.f32 %v2746, %v2943
    %v2945 = vand.u32 %v2944, 4294901760
    %v2946 = vsub.f32 %v2944, %v2945
    %v2947 = vand.u32 %v2946, 4294901760
    %2948 = vmatpush1.msra.mxu0 %v2947
    %2949 = vmatprep.subr.mxu0 0.0
    %v2950 = vand.u32 %v2747, 4294901760
    %v2951 = vsub.f32 %v2747, %v2950
    %v2952 = vand.u32 %v2951, 4294901760
    %v2953 = vsub.f32 %v2951, %v2952
    %v2954 = vand.u32 %v2953, 4294901760
    %2955 = vmatpush1.msra.mxu0 %v2954
    %2956 = vmatprep.subr.mxu0 0.0
    %v2957 = vand.u32 %v2748, 4294901760
    %v2958 = vsub.f32 %v2748, %v2957
    %v2959 = vand.u32 %v2958, 4294901760
    %v2960 = vsub.f32 %v2958, %v2959
    %v2961 = vand.u32 %v2960, 4294901760
    %2962 = vmatpush1.msra.mxu0 %v2961
    %2963 = vmatprep.subr.mxu0 0.0
    %v2964 = vand.u32 %v2749, 4294901760
    %v2965 = vsub.f32 %v2749, %v2964
    %v2966 = vand.u32 %v2965, 4294901760
    %v2967 = vsub.f32 %v2965, %v2966
    %v2968 = vand.u32 %v2967, 4294901760
    %2969 = vmatpush1.msra.mxu0 %v2968
    %2970 = vmatprep.subr.mxu0 0.0
    %v2971 = vand.u32 %v2750, 4294901760
    %v2972 = vsub.f32 %v2750, %v2971
    %v2973 = vand.u32 %v2972, 4294901760
    %v2974 = vsub.f32 %v2972, %v2973
    %v2975 = vand.u32 %v2974, 4294901760
    %2976 = vmatpush1.msra.mxu0 %v2975
    %2977 = vmatprep.subr.mxu0 0.0
    %v2978 = vand.u32 %v2751, 4294901760
    %v2979 = vsub.f32 %v2751, %v2978
    %v2980 = vand.u32 %v2979, 4294901760
    %v2981 = vsub.f32 %v2979, %v2980
    %v2982 = vand.u32 %v2981, 4294901760
    %2983 = vmatpush1.msra.mxu0 %v2982
    %2984 = vmatprep.subr.mxu0 0.0
    %v2985 = vand.u32 %v2752, 4294901760
    %v2986 = vsub.f32 %v2752, %v2985
    %v2987 = vand.u32 %v2986, 4294901760
    %v2988 = vsub.f32 %v2986, %v2987
    %v2989 = vand.u32 %v2988, 4294901760
    %2990 = vmatpush1.msra.mxu0 %v2989
    %2991 = vmatprep.subr.mxu0 0.0
    %v2992 = vand.u32 %v2753, 4294901760
    %v2993 = vsub.f32 %v2753, %v2992
    %v2994 = vand.u32 %v2993, 4294901760
    %v2995 = vsub.f32 %v2993, %v2994
    %v2996 = vand.u32 %v2995, 4294901760
    %2997 = vmatpush1.msra.mxu0 %v2996
    %2998 = vmatprep.subr.mxu0 0.0
    %v2999 = vand.u32 %v2754, 4294901760
    %v3000 = vsub.f32 %v2754, %v2999
    %v3001 = vand.u32 %v3000, 4294901760
    %v3002 = vsub.f32 %v3000, %v3001
    %v3003 = vand.u32 %v3002, 4294901760
    %3004 = vmatpush1.msra.mxu0 %v3003
    %3005 = vmatprep.subr.mxu0 0.0
    %v3006 = vand.u32 %v2755, 4294901760
    %v3007 = vsub.f32 %v2755, %v3006
    %v3008 = vand.u32 %v3007, 4294901760
    %v3009 = vsub.f32 %v3007, %v3008
    %v3010 = vand.u32 %v3009, 4294901760
    %3011 = vmatpush1.msra.mxu0 %v3010
    %3012 = vmatprep.subr.mxu0 0.0
    %v3013 = vand.u32 %v2756, 4294901760
    %v3014 = vsub.f32 %v2756, %v3013
    %v3015 = vand.u32 %v3014, 4294901760
    %v3016 = vsub.f32 %v3014, %v3015
    %v3017 = vand.u32 %v3016, 4294901760
    %3018 = vmatpush1.msra.mxu0 %v3017
    %3019 = vmatprep.subr.mxu0 0.0
    %v3020 = vand.u32 %v2757, 4294901760
    %v3021 = vsub.f32 %v2757, %v3020
    %v3022 = vand.u32 %v3021, 4294901760
    %v3023 = vsub.f32 %v3021, %v3022
    %v3024 = vand.u32 %v3023, 4294901760
    %3025 = vmatpush1.msra.mxu0 %v3024
    %3026 = vmatprep.subr.mxu0 0.0
    %3027 = vmatpush1.msra.mxu0 0.0
    %3028 = vmatprep.subr.mxu0 0.0
    %3029 = vmatpush1.msra.mxu0 0.0
    %3030 = vmatprep.subr.mxu0 0.0
    %3031 = vmatpush1.msra.mxu0 0.0
    %3032 = vmatprep.subr.mxu0 0.0
    %3033 = vmatpush1.msra.mxu0 0.0
    %3034 = vmatprep.subr.mxu0 0.0
    %3035 = vmatpush1.msra.mxu0 0.0
    %3036 = vmatprep.subr.mxu0 0.0
    %3037 = vmatpush1.msra.mxu0 0.0
    %3038 = vmatprep.subr.mxu0 0.0
    %3039 = vmatpush1.msra.mxu0 0.0
    %3040 = vmatprep.subr.mxu0 0.0
    %3041 = vmatpush1.msra.mxu0 0.0
    %3042 = vmatprep.subr.mxu0 0.0
    %3043 = vmatpush1.msra.mxu0 0.0
    %3044 = vmatprep.subr.mxu0 0.0
    %3045 = vmatpush1.msra.mxu0 0.0
    %3046 = vmatprep.subr.mxu0 0.0
    %3047 = vmatpush1.msra.mxu0 0.0
    %3048 = vmatprep.subr.mxu0 0.0
    %3049 = vmatpush1.msra.mxu0 0.0
    %v3050 = vand.u32 %v2766, 4294901760
    %3051 = vmatprep.mubr.f32.mxu0 %v3050
    %v3052 = vand.u32 %v2734, 4294901760
    %3053 = vmatmul.mubr.f32.gmra.mrb[0].mxu0 %v3052
    %v3054 = vpop.f32.mrb[0].mxu0
    %v3055 = vadd.f32 %v2868, %v3054
    %v3056 = vpop.f32.mrb[0].mxu0
    %v3057 = vand.u32 %v2769, 4294901760
    %3058 = vmatprep.mubr.f32.mxu0 %v3057
    %v3059 = vand.u32 %v2736, 4294901760
    %3060 = vmatmul.mubr.f32.gmra.mrb[0].mxu0 %v3059
    %v3061 = vpop.f32.mrb[0].mxu0
    %v3062 = vadd.f32 %v2883, %v3061
    %v3063 = vpop.f32.mrb[0].mxu0
    %3064 = vdwg.mxu0
    %3065 = vmatprep.subr.mxu0 0.0
    %v3066 = vand.u32 %v2738, 4294901760
    %v3067 = vsub.f32 %v2738, %v3066
    %3068 = vmatpush1.msra.mxu0 %v3067
    %3069 = vmatprep.subr.mxu0 0.0
    %v3070 = vand.u32 %v2739, 4294901760
    %v3071 = vsub.f32 %v2739, %v3070
    %3072 = vmatpush1.msra.mxu0 %v3071
    %3073 = vmatprep.subr.mxu0 0.0
    %v3074 = vand.u32 %v2740, 4294901760
    %v3075 = vsub.f32 %v2740, %v3074
    %3076 = vmatpush1.msra.mxu0 %v3075
    %3077 = vmatprep.subr.mxu0 0.0
    %v3078 = vand.u32 %v2741, 4294901760
    %v3079 = vsub.f32 %v2741, %v3078
    %3080 = vmatpush1.msra.mxu0 %v3079
    %3081 = vmatprep.subr.mxu0 0.0
    %v3082 = vand.u32 %v2742, 4294901760
    %v3083 = vsub.f32 %v2742, %v3082
    %3084 = vmatpush1.msra.mxu0 %v3083
    %3085 = vmatprep.subr.mxu0 0.0
    %v3086 = vand.u32 %v2743, 4294901760
    %v3087 = vsub.f32 %v2743, %v3086
    %3088 = vmatpush1.msra.mxu0 %v3087
    %3089 = vmatprep.subr.mxu0 0.0
    %v3090 = vand.u32 %v2744, 4294901760
    %v3091 = vsub.f32 %v2744, %v3090
    %3092 = vmatpush1.msra.mxu0 %v3091
    %3093 = vmatprep.subr.mxu0 0.0
    %v3094 = vand.u32 %v2745, 4294901760
    %v3095 = vsub.f32 %v2745, %v3094
    %3096 = vmatpush1.msra.mxu0 %v3095
    %3097 = vmatprep.subr.mxu0 0.0
    %v3098 = vand.u32 %v2746, 4294901760
    %v3099 = vsub.f32 %v2746, %v3098
    %3100 = vmatpush1.msra.mxu0 %v3099
    %3101 = vmatprep.subr.mxu0 0.0
    %v3102 = vand.u32 %v2747, 4294901760
    %v3103 = vsub.f32 %v2747, %v3102
    %3104 = vmatpush1.msra.mxu0 %v3103
    %3105 = vmatprep.subr.mxu0 0.0
    %v3106 = vand.u32 %v2748, 4294901760
    %v3107 = vsub.f32 %v2748, %v3106
    %3108 = vmatpush1.msra.mxu0 %v3107
    %3109 = vmatprep.subr.mxu0 0.0
    %v3110 = vand.u32 %v2749, 4294901760
    %v3111 = vsub.f32 %v2749, %v3110
    %3112 = vmatpush1.msra.mxu0 %v3111
    %3113 = vmatprep.subr.mxu0 0.0
    %v3114 = vand.u32 %v2750, 4294901760
    %v3115 = vsub.f32 %v2750, %v3114
    %3116 = vmatpush1.msra.mxu0 %v3115
    %3117 = vmatprep.subr.mxu0 0.0
    %v3118 = vand.u32 %v2751, 4294901760
    %v3119 = vsub.f32 %v2751, %v3118
    %3120 = vmatpush1.msra.mxu0 %v3119
    %3121 = vmatprep.subr.mxu0 0.0
    %v3122 = vand.u32 %v2752, 4294901760
    %v3123 = vsub.f32 %v2752, %v3122
    %3124 = vmatpush1.msra.mxu0 %v3123
    %3125 = vmatprep.subr.mxu0 0.0
    %v3126 = vand.u32 %v2753, 4294901760
    %v3127 = vsub.f32 %v2753, %v3126
    %3128 = vmatpush1.msra.mxu0 %v3127
    %3129 = vmatprep.subr.mxu0 0.0
    %v3130 = vand.u32 %v2754, 4294901760
    %v3131 = vsub.f32 %v2754, %v3130
    %3132 = vmatpush1.msra.mxu0 %v3131
    %3133 = vmatprep.subr.mxu0 0.0
    %v3134 = vand.u32 %v2755, 4294901760
    %v3135 = vsub.f32 %v2755, %v3134
    %3136 = vmatpush1.msra.mxu0 %v3135
    %3137 = vmatprep.subr.mxu0 0.0
    %v3138 = vand.u32 %v2756, 4294901760
    %v3139 = vsub.f32 %v2756, %v3138
    %3140 = vmatpush1.msra.mxu0 %v3139
    %3141 = vmatprep.subr.mxu0 0.0
    %v3142 = vand.u32 %v2757, 4294901760
    %v3143 = vsub.f32 %v2757, %v3142
    %3144 = vmatpush1.msra.mxu0 %v3143
    %3145 = vmatprep.subr.mxu0 0.0
    %3146 = vmatpush1.msra.mxu0 0.0
    %3147 = vmatprep.subr.mxu0 0.0
    %3148 = vmatpush1.msra.mxu0 0.0
    %3149 = vmatprep.subr.mxu0 0.0
    %3150 = vmatpush1.msra.mxu0 0.0
    %3151 = vmatprep.subr.mxu0 0.0
    %3152 = vmatpush1.msra.mxu0 0.0
    %3153 = vmatprep.subr.mxu0 0.0
    %3154 = vmatpush1.msra.mxu0 0.0
    %3155 = vmatprep.subr.mxu0 0.0
    %3156 = vmatpush1.msra.mxu0 0.0
    %3157 = vmatprep.subr.mxu0 0.0
    %3158 = vmatpush1.msra.mxu0 0.0
    %3159 = vmatprep.subr.mxu0 0.0
    %3160 = vmatpush1.msra.mxu0 0.0
    %3161 = vmatprep.subr.mxu0 0.0
    %3162 = vmatpush1.msra.mxu0 0.0
    %3163 = vmatprep.subr.mxu0 0.0
    %3164 = vmatpush1.msra.mxu0 0.0
    %3165 = vmatprep.subr.mxu0 0.0
    %3166 = vmatpush1.msra.mxu0 0.0
    %3167 = vmatprep.subr.mxu0 0.0
    %3168 = vmatpush1.msra.mxu0 0.0
    %v3169 = vand.u32 %v2766, 4294901760
    %v3170 = vsub.f32 %v2766, %v3169
    %3171 = vmatprep.mubr.f32.mxu0 %v3170
    %v3172 = vand.u32 %v2734, 4294901760
    %v3173 = vsub.f32 %v2734, %v3172
    %3174 = vmatmul.mubr.f32.gmra.mrb[0].mxu0 %v3173
    %v3175 = vpop.f32.mrb[0].mxu0
    %v3176 = vadd.f32 %v3055, %v3175
    %v3177 = vpop.f32.mrb[0].mxu0
    %v3178 = vand.u32 %v2769, 4294901760
    %v3179 = vsub.f32 %v2769, %v3178
    %3180 = vmatprep.mubr.f32.mxu0 %v3179
    %v3181 = vand.u32 %v2736, 4294901760
    %v3182 = vsub.f32 %v2736, %v3181
    %3183 = vmatmul.mubr.f32.gmra.mrb[0].mxu0 %v3182
    %v3184 = vpop.f32.mrb[0].mxu0
    %v3185 = vadd.f32 %v3062, %v3184
    %v3186 = vpop.f32.mrb[0].mxu0
    %3187 = vdwg.mxu0
    %3188 = vmatprep.subr.mxu0 0.0
    %v3189 = vand.u32 %v2738, 4294901760
    %3190 = vmatpush1.msra.mxu0 %v3189
    %3191 = vmatprep.subr.mxu0 0.0
    %v3192 = vand.u32 %v2739, 4294901760
    %3193 = vmatpush1.msra.mxu0 %v3192
    %3194 = vmatprep.subr.mxu0 0.0
    %v3195 = vand.u32 %v2740, 4294901760
    %3196 = vmatpush1.msra.mxu0 %v3195
    %3197 = vmatprep.subr.mxu0 0.0
    %v3198 = vand.u32 %v2741, 4294901760
    %3199 = vmatpush1.msra.mxu0 %v3198
    %3200 = vmatprep.subr.mxu0 0.0
    %v3201 = vand.u32 %v2742, 4294901760
    %3202 = vmatpush1.msra.mxu0 %v3201
    %3203 = vmatprep.subr.mxu0 0.0
    %v3204 = vand.u32 %v2743, 4294901760
    %3205 = vmatpush1.msra.mxu0 %v3204
    %3206 = vmatprep.subr.mxu0 0.0
    %v3207 = vand.u32 %v2744, 4294901760
    %3208 = vmatpush1.msra.mxu0 %v3207
    %3209 = vmatprep.subr.mxu0 0.0
    %v3210 = vand.u32 %v2745, 4294901760
    %3211 = vmatpush1.msra.mxu0 %v3210
    %3212 = vmatprep.subr.mxu0 0.0
    %v3213 = vand.u32 %v2746, 4294901760
    %3214 = vmatpush1.msra.mxu0 %v3213
    %3215 = vmatprep.subr.mxu0 0.0
    %v3216 = vand.u32 %v2747, 4294901760
    %3217 = vmatpush1.msra.mxu0 %v3216
    %3218 = vmatprep.subr.mxu0 0.0
    %v3219 = vand.u32 %v2748, 4294901760
    %3220 = vmatpush1.msra.mxu0 %v3219
    %3221 = vmatprep.subr.mxu0 0.0
    %v3222 = vand.u32 %v2749, 4294901760
    %3223 = vmatpush1.msra.mxu0 %v3222
    %3224 = vmatprep.subr.mxu0 0.0
    %v3225 = vand.u32 %v2750, 4294901760
    %3226 = vmatpush1.msra.mxu0 %v3225
    %3227 = vmatprep.subr.mxu0 0.0
    %v3228 = vand.u32 %v2751, 4294901760
    %3229 = vmatpush1.msra.mxu0 %v3228
    %3230 = vmatprep.subr.mxu0 0.0
    %v3231 = vand.u32 %v2752, 4294901760
    %3232 = vmatpush1.msra.mxu0 %v3231
    %3233 = vmatprep.subr.mxu0 0.0
    %v3234 = vand.u32 %v2753, 4294901760
    %3235 = vmatpush1.msra.mxu0 %v3234
    %3236 = vmatprep.subr.mxu0 0.0
    %v3237 = vand.u32 %v2754, 4294901760
    %3238 = vmatpush1.msra.mxu0 %v3237
    %3239 = vmatprep.subr.mxu0 0.0
    %v3240 = vand.u32 %v2755, 4294901760
    %3241 = vmatpush1.msra.mxu0 %v3240
    %3242 = vmatprep.subr.mxu0 0.0
    %v3243 = vand.u32 %v2756, 4294901760
    %3244 = vmatpush1.msra.mxu0 %v3243
    %3245 = vmatprep.subr.mxu0 0.0
    %v3246 = vand.u32 %v2757, 4294901760
    %3247 = vmatpush1.msra.mxu0 %v3246
    %3248 = vmatprep.subr.mxu0 0.0
    %3249 = vmatpush1.msra.mxu0 0.0
    %3250 = vmatprep.subr.mxu0 0.0
    %3251 = vmatpush1.msra.mxu0 0.0
    %3252 = vmatprep.subr.mxu0 0.0
    %3253 = vmatpush1.msra.mxu0 0.0
    %3254 = vmatprep.subr.mxu0 0.0
    %3255 = vmatpush1.msra.mxu0 0.0
    %3256 = vmatprep.subr.mxu0 0.0
    %3257 = vmatpush1.msra.mxu0 0.0
    %3258 = vmatprep.subr.mxu0 0.0
    %3259 = vmatpush1.msra.mxu0 0.0
    %3260 = vmatprep.subr.mxu0 0.0
    %3261 = vmatpush1.msra.mxu0 0.0
    %3262 = vmatprep.subr.mxu0 0.0
    %3263 = vmatpush1.msra.mxu0 0.0
    %3264 = vmatprep.subr.mxu0 0.0
    %3265 = vmatpush1.msra.mxu0 0.0
    %3266 = vmatprep.subr.mxu0 0.0
    %3267 = vmatpush1.msra.mxu0 0.0
    %3268 = vmatprep.subr.mxu0 0.0
    %3269 = vmatpush1.msra.mxu0 0.0
    %3270 = vmatprep.subr.mxu0 0.0
    %3271 = vmatpush1.msra.mxu0 0.0
    %v3272 = vand.u32 %v2766, 4294901760
    %v3273 = vsub.f32 %v2766, %v3272
    %v3274 = vand.u32 %v3273, 4294901760
    %3275 = vmatprep.mubr.f32.mxu0 %v3274
    %v3276 = vand.u32 %v2734, 4294901760
    %v3277 = vsub.f32 %v2734, %v3276
    %v3278 = vand.u32 %v3277, 4294901760
    %3279 = vmatmul.mubr.f32.gmra.mrb[0].mxu0 %v3278
    %v3280 = vpop.f32.mrb[0].mxu0
    %v3281 = vadd.f32 %v3176, %v3280
    %v3282 = vpop.f32.mrb[0].mxu0
    %v3283 = vand.u32 %v2769, 4294901760
    %v3284 = vsub.f32 %v2769, %v3283
    %v3285 = vand.u32 %v3284, 4294901760
    %3286 = vmatprep.mubr.f32.mxu0 %v3285
    %v3287 = vand.u32 %v2736, 4294901760
    %v3288 = vsub.f32 %v2736, %v3287
    %v3289 = vand.u32 %v3288, 4294901760
    %3290 = vmatmul.mubr.f32.gmra.mrb[0].mxu0 %v3289
    %v3291 = vpop.f32.mrb[0].mxu0
    %v3292 = vadd.f32 %v3185, %v3291
    %v3293 = vpop.f32.mrb[0].mxu0
    %3294 = vdwg.mxu0
    %3295 = vmatprep.subr.mxu0 0.0
    %v3296 = vand.u32 %v2738, 4294901760
    %v3297 = vsub.f32 %v2738, %v3296
    %v3298 = vand.u32 %v3297, 4294901760
    %3299 = vmatpush1.msra.mxu0 %v3298
    %3300 = vmatprep.subr.mxu0 0.0
    %v3301 = vand.u32 %v2739, 4294901760
    %v3302 = vsub.f32 %v2739, %v3301
    %v3303 = vand.u32 %v3302, 4294901760
    %3304 = vmatpush1.msra.mxu0 %v3303
    %3305 = vmatprep.subr.mxu0 0.0
    %v3306 = vand.u32 %v2740, 4294901760
    %v3307 = vsub.f32 %v2740, %v3306
    %v3308 = vand.u32 %v3307, 4294901760
    %3309 = vmatpush1.msra.mxu0 %v3308
    %3310 = vmatprep.subr.mxu0 0.0
    %v3311 = vand.u32 %v2741, 4294901760
    %v3312 = vsub.f32 %v2741, %v3311
    %v3313 = vand.u32 %v3312, 4294901760
    %3314 = vmatpush1.msra.mxu0 %v3313
    %3315 = vmatprep.subr.mxu0 0.0
    %v3316 = vand.u32 %v2742, 4294901760
    %v3317 = vsub.f32 %v2742, %v3316
    %v3318 = vand.u32 %v3317, 4294901760
    %3319 = vmatpush1.msra.mxu0 %v3318
    %3320 = vmatprep.subr.mxu0 0.0
    %v3321 = vand.u32 %v2743, 4294901760
    %v3322 = vsub.f32 %v2743, %v3321
    %v3323 = vand.u32 %v3322, 4294901760
    %3324 = vmatpush1.msra.mxu0 %v3323
    %3325 = vmatprep.subr.mxu0 0.0
    %v3326 = vand.u32 %v2744, 4294901760
    %v3327 = vsub.f32 %v2744, %v3326
    %v3328 = vand.u32 %v3327, 4294901760
    %3329 = vmatpush1.msra.mxu0 %v3328
    %3330 = vmatprep.subr.mxu0 0.0
    %v3331 = vand.u32 %v2745, 4294901760
    %v3332 = vsub.f32 %v2745, %v3331
    %v3333 = vand.u32 %v3332, 4294901760
    %3334 = vmatpush1.msra.mxu0 %v3333
    %3335 = vmatprep.subr.mxu0 0.0
    %v3336 = vand.u32 %v2746, 4294901760
    %v3337 = vsub.f32 %v2746, %v3336
    %v3338 = vand.u32 %v3337, 4294901760
    %3339 = vmatpush1.msra.mxu0 %v3338
    %3340 = vmatprep.subr.mxu0 0.0
    %v3341 = vand.u32 %v2747, 4294901760
    %v3342 = vsub.f32 %v2747, %v3341
    %v3343 = vand.u32 %v3342, 4294901760
    %3344 = vmatpush1.msra.mxu0 %v3343
    %3345 = vmatprep.subr.mxu0 0.0
    %v3346 = vand.u32 %v2748, 4294901760
    %v3347 = vsub.f32 %v2748, %v3346
    %v3348 = vand.u32 %v3347, 4294901760
    %3349 = vmatpush1.msra.mxu0 %v3348
    %3350 = vmatprep.subr.mxu0 0.0
    %v3351 = vand.u32 %v2749, 4294901760
    %v3352 = vsub.f32 %v2749, %v3351
    %v3353 = vand.u32 %v3352, 4294901760
    %3354 = vmatpush1.msra.mxu0 %v3353
    %3355 = vmatprep.subr.mxu0 0.0
    %v3356 = vand.u32 %v2750, 4294901760
    %v3357 = vsub.f32 %v2750, %v3356
    %v3358 = vand.u32 %v3357, 4294901760
    %3359 = vmatpush1.msra.mxu0 %v3358
    %3360 = vmatprep.subr.mxu0 0.0
    %v3361 = vand.u32 %v2751, 4294901760
    %v3362 = vsub.f32 %v2751, %v3361
    %v3363 = vand.u32 %v3362, 4294901760
    %3364 = vmatpush1.msra.mxu0 %v3363
    %3365 = vmatprep.subr.mxu0 0.0
    %v3366 = vand.u32 %v2752, 4294901760
    %v3367 = vsub.f32 %v2752, %v3366
    %v3368 = vand.u32 %v3367, 4294901760
    %3369 = vmatpush1.msra.mxu0 %v3368
    %3370 = vmatprep.subr.mxu0 0.0
    %v3371 = vand.u32 %v2753, 4294901760
    %v3372 = vsub.f32 %v2753, %v3371
    %v3373 = vand.u32 %v3372, 4294901760
    %3374 = vmatpush1.msra.mxu0 %v3373
    %3375 = vmatprep.subr.mxu0 0.0
    %v3376 = vand.u32 %v2754, 4294901760
    %v3377 = vsub.f32 %v2754, %v3376
    %v3378 = vand.u32 %v3377, 4294901760
    %3379 = vmatpush1.msra.mxu0 %v3378
    %3380 = vmatprep.subr.mxu0 0.0
    %v3381 = vand.u32 %v2755, 4294901760
    %v3382 = vsub.f32 %v2755, %v3381
    %v3383 = vand.u32 %v3382, 4294901760
    %3384 = vmatpush1.msra.mxu0 %v3383
    %3385 = vmatprep.subr.mxu0 0.0
    %v3386 = vand.u32 %v2756, 4294901760
    %v3387 = vsub.f32 %v2756, %v3386
    %v3388 = vand.u32 %v3387, 4294901760
    %3389 = vmatpush1.msra.mxu0 %v3388
    %3390 = vmatprep.subr.mxu0 0.0
    %v3391 = vand.u32 %v2757, 4294901760
    %v3392 = vsub.f32 %v2757, %v3391
    %v3393 = vand.u32 %v3392, 4294901760
    %3394 = vmatpush1.msra.mxu0 %v3393
    %3395 = vmatprep.subr.mxu0 0.0
    %3396 = vmatpush1.msra.mxu0 0.0
    %3397 = vmatprep.subr.mxu0 0.0
    %3398 = vmatpush1.msra.mxu0 0.0
    %3399 = vmatprep.subr.mxu0 0.0
    %3400 = vmatpush1.msra.mxu0 0.0
    %3401 = vmatprep.subr.mxu0 0.0
    %3402 = vmatpush1.msra.mxu0 0.0
    %3403 = vmatprep.subr.mxu0 0.0
    %3404 = vmatpush1.msra.mxu0 0.0
    %3405 = vmatprep.subr.mxu0 0.0
    %3406 = vmatpush1.msra.mxu0 0.0
    %3407 = vmatprep.subr.mxu0 0.0
    %3408 = vmatpush1.msra.mxu0 0.0
    %3409 = vmatprep.subr.mxu0 0.0
    %3410 = vmatpush1.msra.mxu0 0.0
    %3411 = vmatprep.subr.mxu0 0.0
    %3412 = vmatpush1.msra.mxu0 0.0
    %3413 = vmatprep.subr.mxu0 0.0
    %3414 = vmatpush1.msra.mxu0 0.0
    %3415 = vmatprep.subr.mxu0 0.0
    %3416 = vmatpush1.msra.mxu0 0.0
    %3417 = vmatprep.subr.mxu0 0.0
    %3418 = vmatpush1.msra.mxu0 0.0
    %v3419 = vand.u32 %v2766, 4294901760
    %3420 = vmatprep.mubr.f32.mxu0 %v3419
    %v3421 = vand.u32 %v2734, 4294901760
    %3422 = vmatmul.mubr.f32.gmra.mrb[0].mxu0 %v3421
    %v3423 = vpop.f32.mrb[0].mxu0
    %v3424 = vadd.f32 %v3281, %v3423
    %v3425 = vpop.f32.mrb[0].mxu0
    %v3426 = vand.u32 %v2769, 4294901760
    %3427 = vmatprep.mubr.f32.mxu0 %v3426
    %v3428 = vand.u32 %v2736, 4294901760
    %3429 = vmatmul.mubr.f32.gmra.mrb[0].mxu0 %v3428
    %v3430 = vpop.f32.mrb[0].mxu0
    %v3431 = vadd.f32 %v3292, %v3430
    %v3432 = vpop.f32.mrb[0].mxu0
    %3433 = vdwg.mxu0
    %3434 = vmatprep.subr.mxu0 0.0
    %v3435 = vand.u32 %v2738, 4294901760
    %3436 = vmatpush1.msra.mxu0 %v3435
    %3437 = vmatprep.subr.mxu0 0.0
    %v3438 = vand.u32 %v2739, 4294901760
    %3439 = vmatpush1.msra.mxu0 %v3438
    %3440 = vmatprep.subr.mxu0 0.0
    %v3441 = vand.u32 %v2740, 4294901760
    %3442 = vmatpush1.msra.mxu0 %v3441
    %3443 = vmatprep.subr.mxu0 0.0
    %v3444 = vand.u32 %v2741, 4294901760
    %3445 = vmatpush1.msra.mxu0 %v3444
    %3446 = vmatprep.subr.mxu0 0.0
    %v3447 = vand.u32 %v2742, 4294901760
    %3448 = vmatpush1.msra.mxu0 %v3447
    %3449 = vmatprep.subr.mxu0 0.0
    %v3450 = vand.u32 %v2743, 4294901760
    %3451 = vmatpush1.msra.mxu0 %v3450
    %3452 = vmatprep.subr.mxu0 0.0
    %v3453 = vand.u32 %v2744, 4294901760
    %3454 = vmatpush1.msra.mxu0 %v3453
    %3455 = vmatprep.subr.mxu0 0.0
    %v3456 = vand.u32 %v2745, 4294901760
    %3457 = vmatpush1.msra.mxu0 %v3456
    %3458 = vmatprep.subr.mxu0 0.0
    %v3459 = vand.u32 %v2746, 4294901760
    %3460 = vmatpush1.msra.mxu0 %v3459
    %3461 = vmatprep.subr.mxu0 0.0
    %v3462 = vand.u32 %v2747, 4294901760
    %3463 = vmatpush1.msra.mxu0 %v3462
    %3464 = vmatprep.subr.mxu0 0.0
    %v3465 = vand.u32 %v2748, 4294901760
    %3466 = vmatpush1.msra.mxu0 %v3465
    %3467 = vmatprep.subr.mxu0 0.0
    %v3468 = vand.u32 %v2749, 4294901760
    %3469 = vmatpush1.msra.mxu0 %v3468
    %3470 = vmatprep.subr.mxu0 0.0
    %v3471 = vand.u32 %v2750, 4294901760
    %3472 = vmatpush1.msra.mxu0 %v3471
    %3473 = vmatprep.subr.mxu0 0.0
    %v3474 = vand.u32 %v2751, 4294901760
    %3475 = vmatpush1.msra.mxu0 %v3474
    %3476 = vmatprep.subr.mxu0 0.0
    %v3477 = vand.u32 %v2752, 4294901760
    %3478 = vmatpush1.msra.mxu0 %v3477
    %3479 = vmatprep.subr.mxu0 0.0
    %v3480 = vand.u32 %v2753, 4294901760
    %3481 = vmatpush1.msra.mxu0 %v3480
    %3482 = vmatprep.subr.mxu0 0.0
    %v3483 = vand.u32 %v2754, 4294901760
    %3484 = vmatpush1.msra.mxu0 %v3483
    %3485 = vmatprep.subr.mxu0 0.0
    %v3486 = vand.u32 %v2755, 4294901760
    %3487 = vmatpush1.msra.mxu0 %v3486
    %3488 = vmatprep.subr.mxu0 0.0
    %v3489 = vand.u32 %v2756, 4294901760
    %3490 = vmatpush1.msra.mxu0 %v3489
    %3491 = vmatprep.subr.mxu0 0.0
    %v3492 = vand.u32 %v2757, 4294901760
    %3493 = vmatpush1.msra.mxu0 %v3492
    %3494 = vmatprep.subr.mxu0 0.0
    %3495 = vmatpush1.msra.mxu0 0.0
    %3496 = vmatprep.subr.mxu0 0.0
    %3497 = vmatpush1.msra.mxu0 0.0
    %3498 = vmatprep.subr.mxu0 0.0
    %3499 = vmatpush1.msra.mxu0 0.0
    %3500 = vmatprep.subr.mxu0 0.0
    %3501 = vmatpush1.msra.mxu0 0.0
    %3502 = vmatprep.subr.mxu0 0.0
    %3503 = vmatpush1.msra.mxu0 0.0
    %3504 = vmatprep.subr.mxu0 0.0
    %3505 = vmatpush1.msra.mxu0 0.0
    %3506 = vmatprep.subr.mxu0 0.0
    %3507 = vmatpush1.msra.mxu0 0.0
    %3508 = vmatprep.subr.mxu0 0.0
    %3509 = vmatpush1.msra.mxu0 0.0
    %3510 = vmatprep.subr.mxu0 0.0
    %3511 = vmatpush1.msra.mxu0 0.0
    %3512 = vmatprep.subr.mxu0 0.0
    %3513 = vmatpush1.msra.mxu0 0.0
    %3514 = vmatprep.subr.mxu0 0.0
    %3515 = vmatpush1.msra.mxu0 0.0
    %3516 = vmatprep.subr.mxu0 0.0
    %3517 = vmatpush1.msra.mxu0 0.0
    %v3518 = vand.u32 %v2766, 4294901760
    %3519 = vmatprep.mubr.f32.mxu0 %v3518
    %v3520 = vand.u32 %v2734, 4294901760
    %3521 = vmatmul.mubr.f32.gmra.mrb[0].mxu0 %v3520
    %v3522 = vpop.f32.mrb[0].mxu0
    %v3523 = vadd.f32 %v3424, %v3522
    %v3524 = vpop.f32.mrb[0].mxu0
    %v3525 = vand.u32 %v2769, 4294901760
    %3526 = vmatprep.mubr.f32.mxu0 %v3525
    %v3527 = vand.u32 %v2736, 4294901760
    %3528 = vmatmul.mubr.f32.gmra.mrb[0].mxu0 %v3527
    %v3529 = vpop.f32.mrb[0].mxu0
    %v3530 = vadd.f32 %v3431, %v3529
    %v3531 = vpop.f32.mrb[0].mxu0
    %3532 = vdwg.mxu0
    %3533 = vst.msk [vmem:[#allocation2] sm:$0xff] %vm67, %v3523
    %3534 = vst.msk [vmem:[#allocation2 + $0x8] sm:$0xff] %vm67, %v3530
    // Predicated region
    $region30: #{tpu_custom_call.1} parent=1 // pred_check
      _
    $region31: #{tpu_custom_call.1} parent=1 // pred_check_branch
      %3536 = sbr.rel (0) target = $region33
    $region32: #{tpu_custom_call.1} parent=1 // pred_region
      %s3538 = ssub.s32 256, 256
      %3539 = vsyncadd [#allocation3], %s3538
      %s3540 = sshll.u32 [#allocation2], 4
      %s3541 = int_to_ptr.vmem [resolvable:$true] %s3540
      %3546 = dma.vmem_to_hbm [thread:$0]  %s3541, 256, %s7, [#allocation3], 128, 128, 8
    $region33: #{tpu_custom_call.1} parent=1 // pred_fallthru
      _
    // Predicated region
    $region34: #{tpu_custom_call.1} parent=1 // pred_check
      _
    $region35: #{tpu_custom_call.1} parent=1 // pred_check_branch
      %3548 = sbr.rel (0) target = $region37
    $region36: #{tpu_custom_call.1} parent=1 // pred_region
      %3549 = dma.done [#allocation3], 256
    $region37: #{tpu_custom_call.1} parent=1 // pred_fallthru
      _
    %3550 = vsyncpa [#allocation3], 1

</llo_original>
